<compile_context>
chip_gen: v6e
topology: v6e:2x2x1
jax: 0.10.0
libtpu: 0.0.40
codegen_flags: <defaults>
</compile_context>

<pallas_src>
import functools

import jax
import jax.numpy as jnp
from jax import lax
from jax.experimental import pallas as pl
from jax.experimental.pallas import tpu as pltpu

_LANES = 128


def _roll(v, shift, axis):
    """np.roll semantics (result[i] = v[i - shift]) with a non-negative static shift."""
    n = v.shape[axis]
    k = shift % n
    if k == 0:
        return v
    return pltpu.roll(v, k, axis=axis)


# --------------------------------- fused pyramid kernel ----------------------------------------
def _msgrad_pyramid_kernel(num_scales, channels, height, width, batch_block,
                           slab_ref, out_ref, scratch_ref):
    """batch_block elements per grid step: full blur_pool2d pyramid + per-scale masked
    gradient partial sums, everything on-chip.

    slab_ref    : (TB, 2*C*H, W) block -- [pred channel planes ; gt channel planes].
    out_ref     : (1, ROWS, 128) lane-dense partial sums (rows [0,S)=num, [S,2S)=cnt).
    scratch_ref : (2*C*H, W) VMEM staging buffer for the stride-2 row downsample.
    """
    S = num_scales
    rows_out, lanes = out_ref.shape[1], out_ref.shape[2]

    nums = [0.0] * S
    cnts = [0.0] * S

    for t in range(batch_block):                      # static unroll over blocked batch
        x = slab_ref[t].astype(jnp.float32)           # (2*C*H, W) level-0 slab
        hs, ws = height, width

        for s in range(S):                            # static unroll over pyramid levels
            rows = 2 * channels * hs                  # pred + gt channel planes
            chs = channels * hs                       # rows of the pred half

            ri = lax.broadcasted_iota(jnp.int32, (rows, ws), 0)
            ci = lax.broadcasted_iota(jnp.int32, (rows, ws), 1)
            # per-plane first / last row (each channel plane has its own H-borders)
            first_row = ri == 0
            last_row = ri == hs - 1
            for k in range(1, 2 * channels):
                first_row = jnp.logical_or(first_row, ri == k * hs)
                last_row = jnp.logical_or(last_row, ri == k * hs + hs - 1)
            first_col = ci == 0
            last_col = ci == ws - 1

            # shifted views (XLU rolls), boundary-corrected below
            ru = _roll(x, 1, 0)      # x[r-1]
            rd = _roll(x, -1, 0)     # x[r+1]
            rl = _roll(x, 1, 1)      # x[:, j-1]
            rr = _roll(x, -1, 1)     # x[:, j+1]

            # --- kornia.spatial_gradient (sobel, normalized, replicate pad) as stencils ---
            up = jnp.where(first_row, x, ru)
            dn = jnp.where(last_row, x, rd)
            lf = jnp.where(first_col, x, rl)
            rt = jnp.where(last_col, x, rr)
            s_h = up + 2.0 * x + dn                   # [1,2,1] smooth along H
            s_w = lf + 2.0 * x + rt                   # [1,2,1] smooth along W
            gx = (jnp.where(last_col, s_h, _roll(s_h, -1, 1))
                  - jnp.where(first_col, s_h, _roll(s_h, 1, 1))) * 0.125
            gy = (jnp.where(last_row, s_w, _roll(s_w, -1, 0))
                  - jnp.where(first_row, s_w, _roll(s_w, 1, 0))) * 0.125

            # --- masked |pred_grad - gt_grad| partial sums (no misaligned slices: rolls) ---
            gt_gx = _roll(gx, -chs, 0)                # gt plane aligned onto pred rows
            gt_gy = _roll(gy, -chs, 0)
            adx = jnp.abs(gx - gt_gx)
            ady = jnp.abs(gy - gt_gy)
            nzx = gt_gx != 0.0
            nzy = gt_gy != 0.0
            mx, my = nzx, nzy                         # AND over channels (torch .all(dim=1))
            adx_sum, ady_sum = adx, ady               # sum of |diff| over channels
            for cc in range(1, channels):
                mx = jnp.logical_and(mx, _roll(nzx, -cc * hs, 0))
                my = jnp.logical_and(my, _roll(nzy, -cc * hs, 0))
                adx_sum = adx_sum + _roll(adx, -cc * hs, 0)
                ady_sum = ady_sum + _roll(ady, -cc * hs, 0)

            vmask = (ri < hs).astype(jnp.float32)     # channel-0 pred rows hold the result
            fmx = mx.astype(jnp.float32) * vmask
            fmy = my.astype(jnp.float32) * vmask
            # torch.masked_select(...).mean() == masked sum / #selected (global over batch)
            nums[s] = nums[s] + jnp.sum(fmx * adx_sum + fmy * ady_sum)
            cnts[s] = cnts[s] + float(channels) * jnp.sum(fmx + fmy)

            # --- kornia.blur_pool2d(kernel=3, stride=2): next pyramid level, on-chip ---
            if s + 1 < S:
                h_next = (hs - 1) // 2 + 1
                w_next = (ws - 1) // 2 + 1
                rows_next = 2 * channels * h_next

                upz = jnp.where(first_row, 0.0, ru)   # zero pad (F.conv2d padding=1)
                dnz = jnp.where(last_row, 0.0, rd)
                bh = 0.25 * (upz + dnz) + 0.5 * x     # [1,2,1]/4 along H, full resolution

                # per-plane stride-2 row selection via scratch + strided ref read
                scratch_ref[:rows, :ws] = bh
                if hs % 2 == 0:
                    bh_ds = scratch_ref[pl.ds(0, rows_next, stride=2), pl.ds(0, ws)]
                else:
                    parts = [scratch_ref[pl.ds(k * hs, h_next, stride=2), pl.ds(0, ws)]
                             for k in range(2 * channels)]
                    bh_ds = jnp.concatenate(parts, axis=0)

                # column [1,2,1]/4 blur + stride-2 selection as one tiny matmul; the
                # (ws, w_next) matrix is built in-kernel from iota (no inputs/buffering).
                ji = lax.broadcasted_iota(jnp.int32, (ws, w_next), 0)
                oi = lax.broadcasted_iota(jnp.int32, (ws, w_next), 1)
                bw = (0.5 * (ji == 2 * oi).astype(jnp.float32)
                      + 0.25 * (ji == 2 * oi - 1).astype(jnp.float32)
                      + 0.25 * (ji == 2 * oi + 1).astype(jnp.float32))
                x = jnp.dot(bh_ds, bw,
                            precision=lax.Precision.HIGHEST,   # weights exact in bf16; cheap now
                            preferred_element_type=jnp.float32)
                hs, ws = h_next, w_next

    # lane-dense partial-sum tile: row s -> num_s, row S+s -> cnt_s
    acc = jnp.zeros((rows_out, lanes), jnp.float32)
    rid = lax.broadcasted_iota(jnp.int32, (rows_out, lanes), 0)
    for s in range(S):
        acc = acc + jnp.where(rid == s, nums[s], 0.0) + jnp.where(rid == S + s, cnts[s], 0.0)
    out_ref[0] = acc


# --------------------------------------- wrapper ------------------------------------------------
def ms_gradient_loss(depth_pred, depth_gt, num_scales: int = 4, batch_block=None):
    """JAX/Pallas port of MSGradientLoss.forward -- whole pyramid in one pallas_call."""
    assert depth_pred.shape == depth_gt.shape and depth_pred.ndim == 4
    b, c, h, w = depth_pred.shape

    # [pred channel planes ; gt channel planes] stacked on the sublane axis (single DMA stream)
    slab = jnp.concatenate(
        [depth_pred.reshape(b, c * h, w), depth_gt.reshape(b, c * h, w)],
        axis=1).astype(jnp.float32)                                      # (B, 2*C*H, W)

    if batch_block is None:
        # amortize per-grid-step overhead for small images; 1 element/step at realistic sizes
        target = max(1, (1 << 20) // max(1, 2 * c * h * w * 4))
        batch_block = 1
        for tb in range(min(b, 8, target), 0, -1):
            if b % tb == 0:
                batch_block = tb
                break
    assert b % batch_block == 0
    nb = b // batch_block

    rows_out = 8 * ((2 * num_scales + 7) // 8)        # rows [0,S)=num, [S,2S)=cnt, padded to 8

    kernel = functools.partial(_msgrad_pyramid_kernel, num_scales, c, h, w, batch_block)
    partial_sums = pl.pallas_call(
        kernel,
        out_shape=jax.ShapeDtypeStruct((nb, rows_out, _LANES), jnp.float32),
        grid=(nb,),
        in_specs=[pl.BlockSpec((batch_block, 2 * c * h, w), lambda i: (i, 0, 0))],
        out_specs=pl.BlockSpec((1, rows_out, _LANES), lambda i: (i, 0, 0)),
        scratch_shapes=[pltpu.VMEM((2 * c * h, w), jnp.float32)],
        compiler_params=pltpu.CompilerParams(
            dimension_semantics=("parallel",)),        # megacore sharding on v7x
    )(slab)

    num_s = jnp.sum(partial_sums[:, 0:num_scales, 0], axis=0)                # (S,)
    cnt_s = jnp.sum(partial_sums[:, num_scales:2 * num_scales, 0], axis=0)   # (S,)
    # per-scale masked mean over the whole batch, summed over scales
    # (NaN on an empty mask, matching torch.masked_select(...).mean()).
    return jnp.sum(num_s / cnt_s).astype(depth_gt.dtype)


# -------------------------- pure-JAX (XLA) reference for validation -----------------------------
def _reference_loss(depth_pred, depth_gt, num_scales):
    def sobel(x):                                     # replicate pad, normalized (/8)
        xp = jnp.pad(x, ((0, 0), (0, 0), (1, 1), (1, 1)), mode="edge")
        sh = xp[:, :, :-2, :] + 2.0 * xp[:, :, 1:-1, :] + xp[:, :, 2:, :]
        gx = (sh[:, :, :, 2:] - sh[:, :, :, :-2]) * 0.125
        sw = xp[:, :, :, :-2] + 2.0 * xp[:, :, :, 1:-1] + xp[:, :, :, 2:]
        gy = (sw[:, :, 2:, :] - sw[:, :, :-2, :]) * 0.125
        return gx, gy

    def blur1d(x, axis):                              # zero pad, [1,2,1]/4
        pad = [(0, 0)] * 4
        pad[axis] = (1, 1)
        xp = jnp.pad(x, pad)
        a, bb, cc = [slice(None)] * 4, [slice(None)] * 4, [slice(None)] * 4
        a[axis], bb[axis], cc[axis] = slice(0, -2), slice(1, -1), slice(2, None)
        return (xp[tuple(a)] + 2.0 * xp[tuple(bb)] + xp[tuple(cc)]) * 0.25

    def blur_down(x):                                 # blur_pool2d(kernel=3, stride=2)
        return blur1d(blur1d(x, 2), 3)[:, :, ::2, ::2]

    c = depth_pred.shape[1]
    p = depth_pred.astype(jnp.float32)
    g = depth_gt.astype(jnp.float32)
    loss = jnp.float32(0.0)
    for s in range(num_scales):
        pgx, pgy = sobel(p)
        ggx, ggy = sobel(g)
        mx = jnp.all(ggx != 0.0, axis=1, keepdims=True)
        my = jnp.all(ggy != 0.0, axis=1, keepdims=True)
        num = (jnp.sum(jnp.where(mx, jnp.sum(jnp.abs(pgx - ggx), axis=1, keepdims=True), 0.0))
               + jnp.sum(jnp.where(my, jnp.sum(jnp.abs(pgy - ggy), axis=1, keepdims=True), 0.0)))
        cnt = c * (jnp.sum(mx) + jnp.sum(my))
        loss = loss + num / cnt
        if s + 1 < num_scales:
            p, g = blur_down(p), blur_down(g)
    return loss.astype(depth_gt.dtype)


if __name__ == "__main__":
    key = jax.random.PRNGKey(0)
    k1, k2 = jax.random.split(key)
    shape = (2, 1, 16, 16)  # (B, C, H, W) depth maps
    depth_pred = jax.random.uniform(k1, shape, dtype=jnp.float32) * 5.0
    depth_gt = jax.random.uniform(k2, shape, dtype=jnp.float32) * 5.0

    loss = jax.jit(functools.partial(ms_gradient_loss, num_scales=4))(depth_pred, depth_gt)
    jax.block_until_ready(loss)

    ref = _reference_loss(depth_pred, depth_gt, 4)
    assert loss.shape == ()
    assert bool(jnp.isfinite(loss))
    assert abs(float(loss) - float(ref)) <= 2e-3 * abs(float(ref)) + 1e-5, (float(loss), float(ref))
    print("KERNEL_OK")
</pallas_src>

<mosaic_0001>
module attributes {stable_mosaic.version = 11 : i64} {
  func.func @_msgrad_pyramid_kernel(%arg0: i32, %arg1: memref<2x32x16xf32, #tpu.memory_space<vmem>>, %arg2: memref<1x8x128xf32, #tpu.memory_space<vmem>>, %arg3: memref<32x16xf32, #tpu.memory_space<vmem>>) attributes {dimension_semantics = [#tpu.dimension_semantics<parallel>], iteration_bounds = array<i64: 1>, scalar_prefetch = 0 : i64, scratch_operands = 1 : i64, tpu.core_type = #tpu.core_type<tc>, window_params = [{transform_indices = @transform_0, window_bounds = array<i64: 2, 32, 16>}, {transform_indices = @transform_1, window_bounds = array<i64: 1, 8, 128>}]} {
    %c0 = arith.constant 0 : index
    %c0_0 = arith.constant 0 : index
    %c0_1 = arith.constant 0 : index
    %0 = vector.load %arg1[%c0, %c0_0, %c0_1] : memref<2x32x16xf32, #tpu.memory_space<vmem>>, vector<1x32x16xf32>
    %1 = vector.shape_cast %0 : vector<1x32x16xf32> to vector<32x16xf32>
    %2 = tpu.iota {dimensions = array<i32: 0>} : vector<32x16xi32>
    %3 = tpu.iota {dimensions = array<i32: 1>} : vector<32x16xi32>
    %c0_i32 = arith.constant 0 : i32
    %4 = vector.broadcast %c0_i32 : i32 to vector<32x16xi32>
    %5 = arith.cmpi eq, %2, %4 : vector<32x16xi32>
    %c15_i32 = arith.constant 15 : i32
    %6 = vector.broadcast %c15_i32 : i32 to vector<32x16xi32>
    %7 = arith.cmpi eq, %2, %6 : vector<32x16xi32>
    %c16_i32 = arith.constant 16 : i32
    %8 = vector.broadcast %c16_i32 : i32 to vector<32x16xi32>
    %9 = arith.cmpi eq, %2, %8 : vector<32x16xi32>
    %10 = arith.ori %5, %9 : vector<32x16xi1>
    %c31_i32 = arith.constant 31 : i32
    %11 = vector.broadcast %c31_i32 : i32 to vector<32x16xi32>
    %12 = arith.cmpi eq, %2, %11 : vector<32x16xi32>
    %13 = arith.ori %7, %12 : vector<32x16xi1>
    %c0_i32_2 = arith.constant 0 : i32
    %14 = vector.broadcast %c0_i32_2 : i32 to vector<32x16xi32>
    %15 = arith.cmpi eq, %3, %14 : vector<32x16xi32>
    %c15_i32_3 = arith.constant 15 : i32
    %16 = vector.broadcast %c15_i32_3 : i32 to vector<32x16xi32>
    %17 = arith.cmpi eq, %3, %16 : vector<32x16xi32>
    %c1_i32 = arith.constant 1 : i32
    %18 = tpu.dynamic_rotate %1 by %c1_i32 dim 0 : vector<32x16xf32>, i32 -> vector<32x16xf32>
    %c31_i32_4 = arith.constant 31 : i32
    %19 = tpu.dynamic_rotate %1 by %c31_i32_4 dim 0 : vector<32x16xf32>, i32 -> vector<32x16xf32>
    %c1_i32_5 = arith.constant 1 : i32
    %20 = tpu.dynamic_rotate %1 by %c1_i32_5 dim 1 : vector<32x16xf32>, i32 -> vector<32x16xf32>
    %c15_i32_6 = arith.constant 15 : i32
    %21 = tpu.dynamic_rotate %1 by %c15_i32_6 dim 1 : vector<32x16xf32>, i32 -> vector<32x16xf32>
    %22 = arith.select %10, %1, %18 : vector<32x16xi1>, vector<32x16xf32>
    %23 = arith.select %13, %1, %19 : vector<32x16xi1>, vector<32x16xf32>
    %24 = arith.select %15, %1, %20 : vector<32x16xi1>, vector<32x16xf32>
    %25 = arith.select %17, %1, %21 : vector<32x16xi1>, vector<32x16xf32>
    %cst = arith.constant 2.000000e+00 : f32
    %26 = vector.broadcast %cst : f32 to vector<32x16xf32>
    %27 = arith.mulf %26, %1 : vector<32x16xf32>
    %28 = arith.addf %22, %27 : vector<32x16xf32>
    %29 = arith.addf %28, %23 : vector<32x16xf32>
    %cst_7 = arith.constant 2.000000e+00 : f32
    %30 = vector.broadcast %cst_7 : f32 to vector<32x16xf32>
    %31 = arith.mulf %30, %1 : vector<32x16xf32>
    %32 = arith.addf %24, %31 : vector<32x16xf32>
    %33 = arith.addf %32, %25 : vector<32x16xf32>
    %c15_i32_8 = arith.constant 15 : i32
    %34 = tpu.dynamic_rotate %29 by %c15_i32_8 dim 1 : vector<32x16xf32>, i32 -> vector<32x16xf32>
    %35 = arith.select %17, %29, %34 : vector<32x16xi1>, vector<32x16xf32>
    %c1_i32_9 = arith.constant 1 : i32
    %36 = tpu.dynamic_rotate %29 by %c1_i32_9 dim 1 : vector<32x16xf32>, i32 -> vector<32x16xf32>
    %37 = arith.select %15, %29, %36 : vector<32x16xi1>, vector<32x16xf32>
    %38 = arith.subf %35, %37 : vector<32x16xf32>
    %cst_10 = arith.constant 1.250000e-01 : f32
    %39 = vector.broadcast %cst_10 : f32 to vector<32x16xf32>
    %40 = arith.mulf %38, %39 : vector<32x16xf32>
    %c31_i32_11 = arith.constant 31 : i32
    %41 = tpu.dynamic_rotate %33 by %c31_i32_11 dim 0 : vector<32x16xf32>, i32 -> vector<32x16xf32>
    %42 = arith.select %13, %33, %41 : vector<32x16xi1>, vector<32x16xf32>
    %c1_i32_12 = arith.constant 1 : i32
    %43 = tpu.dynamic_rotate %33 by %c1_i32_12 dim 0 : vector<32x16xf32>, i32 -> vector<32x16xf32>
    %44 = arith.select %10, %33, %43 : vector<32x16xi1>, vector<32x16xf32>
    %45 = arith.subf %42, %44 : vector<32x16xf32>
    %cst_13 = arith.constant 1.250000e-01 : f32
    %46 = vector.broadcast %cst_13 : f32 to vector<32x16xf32>
    %47 = arith.mulf %45, %46 : vector<32x16xf32>
    %c16_i32_14 = arith.constant 16 : i32
    %48 = tpu.dynamic_rotate %40 by %c16_i32_14 dim 0 : vector<32x16xf32>, i32 -> vector<32x16xf32>
    %c16_i32_15 = arith.constant 16 : i32
    %49 = tpu.dynamic_rotate %47 by %c16_i32_15 dim 0 : vector<32x16xf32>, i32 -> vector<32x16xf32>
    %50 = arith.subf %40, %48 : vector<32x16xf32>
    %51 = math.absf %50 : vector<32x16xf32>
    %52 = arith.subf %47, %49 : vector<32x16xf32>
    %53 = math.absf %52 : vector<32x16xf32>
    %cst_16 = arith.constant 0.000000e+00 : f32
    %54 = vector.broadcast %cst_16 : f32 to vector<32x16xf32>
    %55 = arith.cmpf one, %48, %54 : vector<32x16xf32>
    %cst_17 = arith.constant 0.000000e+00 : f32
    %56 = vector.broadcast %cst_17 : f32 to vector<32x16xf32>
    %57 = arith.cmpf one, %49, %56 : vector<32x16xf32>
    %c16_i32_18 = arith.constant 16 : i32
    %58 = vector.broadcast %c16_i32_18 : i32 to vector<32x16xi32>
    %59 = arith.cmpi slt, %2, %58 : vector<32x16xi32>
    %60 = arith.extui %59 : vector<32x16xi1> to vector<32x16xi32>
    %61 = arith.sitofp %60 : vector<32x16xi32> to vector<32x16xf32>
    %62 = arith.extui %55 : vector<32x16xi1> to vector<32x16xi32>
    %63 = arith.sitofp %62 : vector<32x16xi32> to vector<32x16xf32>
    %64 = arith.mulf %63, %61 : vector<32x16xf32>
    %65 = arith.extui %57 : vector<32x16xi1> to vector<32x16xi32>
    %66 = arith.sitofp %65 : vector<32x16xi32> to vector<32x16xf32>
    %67 = arith.mulf %66, %61 : vector<32x16xf32>
    %68 = arith.mulf %64, %51 : vector<32x16xf32>
    %69 = arith.mulf %67, %53 : vector<32x16xf32>
    %70 = arith.addf %68, %69 : vector<32x16xf32>
    %71 = vector.shape_cast %70 : vector<32x16xf32> to vector<1x32x16xf32>
    %cst_19 = arith.constant dense<0.000000e+00> : vector<1xf32>
    %72 = vector.multi_reduction <add>, %71, %cst_19 [1, 2] : vector<1x32x16xf32> to vector<1xf32>
    %73 = vector.shape_cast %72 : vector<1xf32> to vector<1x1x1xf32>
    %74 = vector.extract %73[0, 0, 0] : f32 from vector<1x1x1xf32>
    %cst_20 = arith.constant 0.000000e+00 : f32
    %75 = arith.addf %cst_20, %74 : f32
    %76 = arith.addf %64, %67 : vector<32x16xf32>
    %77 = vector.shape_cast %76 : vector<32x16xf32> to vector<1x32x16xf32>
    %cst_21 = arith.constant dense<0.000000e+00> : vector<1xf32>
    %78 = vector.multi_reduction <add>, %77, %cst_21 [1, 2] : vector<1x32x16xf32> to vector<1xf32>
    %79 = vector.shape_cast %78 : vector<1xf32> to vector<1x1x1xf32>
    %80 = vector.extract %79[0, 0, 0] : f32 from vector<1x1x1xf32>
    %cst_22 = arith.constant 1.000000e+00 : f32
    %81 = arith.mulf %cst_22, %80 : f32
    %cst_23 = arith.constant 0.000000e+00 : f32
    %82 = arith.addf %cst_23, %81 : f32
    %cst_24 = arith.constant 0.000000e+00 : f32
    %83 = vector.broadcast %cst_24 : f32 to vector<32x16xf32>
    %84 = arith.select %10, %83, %18 : vector<32x16xi1>, vector<32x16xf32>
    %cst_25 = arith.constant 0.000000e+00 : f32
    %85 = vector.broadcast %cst_25 : f32 to vector<32x16xf32>
    %86 = arith.select %13, %85, %19 : vector<32x16xi1>, vector<32x16xf32>
    %87 = arith.addf %84, %86 : vector<32x16xf32>
    %cst_26 = arith.constant 2.500000e-01 : f32
    %88 = vector.broadcast %cst_26 : f32 to vector<32x16xf32>
    %89 = arith.mulf %88, %87 : vector<32x16xf32>
    %cst_27 = arith.constant 5.000000e-01 : f32
    %90 = vector.broadcast %cst_27 : f32 to vector<32x16xf32>
    %91 = arith.mulf %90, %1 : vector<32x16xf32>
    %92 = arith.addf %89, %91 : vector<32x16xf32>
    %c0_28 = arith.constant 0 : index
    %c0_29 = arith.constant 0 : index
    %93 = vector.load %arg3[%c0_28, %c0_29] : memref<32x16xf32, #tpu.memory_space<vmem>>, vector<32x16xf32>
    tpu.vector_store %arg3[%c0_28, %c0_29], %92 {strides = array<i32>} : memref<32x16xf32, #tpu.memory_space<vmem>>, vector<32x16xf32>,
    %c0_30 = arith.constant 0 : index
    %c0_31 = arith.constant 0 : index
    %94 = tpu.strided_load %arg3[%c0_30, %c0_31] {strides = array<i32: 2, 1>} : memref<32x16xf32, #tpu.memory_space<vmem>>, vector<16x16xf32>
    %95 = tpu.iota {dimensions = array<i32: 0>} : vector<16x8xi32>
    %96 = tpu.iota {dimensions = array<i32: 1>} : vector<16x8xi32>
    %c2_i32 = arith.constant 2 : i32
    %97 = vector.broadcast %c2_i32 : i32 to vector<16x8xi32>
    %98 = arith.muli %97, %96 : vector<16x8xi32>
    %99 = arith.cmpi eq, %95, %98 : vector<16x8xi32>
    %100 = arith.extui %99 : vector<16x8xi1> to vector<16x8xi32>
    %101 = arith.sitofp %100 : vector<16x8xi32> to vector<16x8xf32>
    %cst_32 = arith.constant 5.000000e-01 : f32
    %102 = vector.broadcast %cst_32 : f32 to vector<16x8xf32>
    %103 = arith.mulf %102, %101 : vector<16x8xf32>
    %c2_i32_33 = arith.constant 2 : i32
    %104 = vector.broadcast %c2_i32_33 : i32 to vector<16x8xi32>
    %105 = arith.muli %104, %96 : vector<16x8xi32>
    %c1_i32_34 = arith.constant 1 : i32
    %106 = vector.broadcast %c1_i32_34 : i32 to vector<16x8xi32>
    %107 = arith.subi %105, %106 : vector<16x8xi32>
    %108 = arith.cmpi eq, %95, %107 : vector<16x8xi32>
    %109 = arith.extui %108 : vector<16x8xi1> to vector<16x8xi32>
    %110 = arith.sitofp %109 : vector<16x8xi32> to vector<16x8xf32>
    %cst_35 = arith.constant 2.500000e-01 : f32
    %111 = vector.broadcast %cst_35 : f32 to vector<16x8xf32>
    %112 = arith.mulf %111, %110 : vector<16x8xf32>
    %113 = arith.addf %103, %112 : vector<16x8xf32>
    %c2_i32_36 = arith.constant 2 : i32
    %114 = vector.broadcast %c2_i32_36 : i32 to vector<16x8xi32>
    %115 = arith.muli %114, %96 : vector<16x8xi32>
    %c1_i32_37 = arith.constant 1 : i32
    %116 = vector.broadcast %c1_i32_37 : i32 to vector<16x8xi32>
    %117 = arith.addi %115, %116 : vector<16x8xi32>
    %118 = arith.cmpi eq, %95, %117 : vector<16x8xi32>
    %119 = arith.extui %118 : vector<16x8xi1> to vector<16x8xi32>
    %120 = arith.sitofp %119 : vector<16x8xi32> to vector<16x8xf32>
    %cst_38 = arith.constant 2.500000e-01 : f32
    %121 = vector.broadcast %cst_38 : f32 to vector<16x8xf32>
    %122 = arith.mulf %121, %120 : vector<16x8xf32>
    %123 = arith.addf %113, %122 : vector<16x8xf32>
    %cst_39 = arith.constant dense<0.000000e+00> : vector<16x8xf32>
    %124 = tpu.matmul %94, %123, %cst_39 {dimension_numbers = #tpu.dot_dimension_numbers<[1], [0], [0], [1], [0, 0, 1, 1], [], []>, precision = #tpu.contract_precision<fp32>} : vector<16x16xf32>, vector<16x8xf32>, vector<16x8xf32> -> vector<16x8xf32>
    %125 = tpu.iota {dimensions = array<i32: 0>} : vector<16x8xi32>
    %126 = tpu.iota {dimensions = array<i32: 1>} : vector<16x8xi32>
    %c0_i32_40 = arith.constant 0 : i32
    %127 = vector.broadcast %c0_i32_40 : i32 to vector<16x8xi32>
    %128 = arith.cmpi eq, %125, %127 : vector<16x8xi32>
    %c7_i32 = arith.constant 7 : i32
    %129 = vector.broadcast %c7_i32 : i32 to vector<16x8xi32>
    %130 = arith.cmpi eq, %125, %129 : vector<16x8xi32>
    %c8_i32 = arith.constant 8 : i32
    %131 = vector.broadcast %c8_i32 : i32 to vector<16x8xi32>
    %132 = arith.cmpi eq, %125, %131 : vector<16x8xi32>
    %133 = arith.ori %128, %132 : vector<16x8xi1>
    %c15_i32_41 = arith.constant 15 : i32
    %134 = vector.broadcast %c15_i32_41 : i32 to vector<16x8xi32>
    %135 = arith.cmpi eq, %125, %134 : vector<16x8xi32>
    %136 = arith.ori %130, %135 : vector<16x8xi1>
    %c0_i32_42 = arith.constant 0 : i32
    %137 = vector.broadcast %c0_i32_42 : i32 to vector<16x8xi32>
    %138 = arith.cmpi eq, %126, %137 : vector<16x8xi32>
    %c7_i32_43 = arith.constant 7 : i32
    %139 = vector.broadcast %c7_i32_43 : i32 to vector<16x8xi32>
    %140 = arith.cmpi eq, %126, %139 : vector<16x8xi32>
    %c1_i32_44 = arith.constant 1 : i32
    %141 = tpu.dynamic_rotate %124 by %c1_i32_44 dim 0 : vector<16x8xf32>, i32 -> vector<16x8xf32>
    %c15_i32_45 = arith.constant 15 : i32
    %142 = tpu.dynamic_rotate %124 by %c15_i32_45 dim 0 : vector<16x8xf32>, i32 -> vector<16x8xf32>
    %c1_i32_46 = arith.constant 1 : i32
    %143 = tpu.dynamic_rotate %124 by %c1_i32_46 dim 1 : vector<16x8xf32>, i32 -> vector<16x8xf32>
    %c7_i32_47 = arith.constant 7 : i32
    %144 = tpu.dynamic_rotate %124 by %c7_i32_47 dim 1 : vector<16x8xf32>, i32 -> vector<16x8xf32>
    %145 = arith.select %133, %124, %141 : vector<16x8xi1>, vector<16x8xf32>
    %146 = arith.select %136, %124, %142 : vector<16x8xi1>, vector<16x8xf32>
    %147 = arith.select %138, %124, %143 : vector<16x8xi1>, vector<16x8xf32>
    %148 = arith.select %140, %124, %144 : vector<16x8xi1>, vector<16x8xf32>
    %cst_48 = arith.constant 2.000000e+00 : f32
    %149 = vector.broadcast %cst_48 : f32 to vector<16x8xf32>
    %150 = arith.mulf %149, %124 : vector<16x8xf32>
    %151 = arith.addf %145, %150 : vector<16x8xf32>
    %152 = arith.addf %151, %146 : vector<16x8xf32>
    %cst_49 = arith.constant 2.000000e+00 : f32
    %153 = vector.broadcast %cst_49 : f32 to vector<16x8xf32>
    %154 = arith.mulf %153, %124 : vector<16x8xf32>
    %155 = arith.addf %147, %154 : vector<16x8xf32>
    %156 = arith.addf %155, %148 : vector<16x8xf32>
    %c7_i32_50 = arith.constant 7 : i32
    %157 = tpu.dynamic_rotate %152 by %c7_i32_50 dim 1 : vector<16x8xf32>, i32 -> vector<16x8xf32>
    %158 = arith.select %140, %152, %157 : vector<16x8xi1>, vector<16x8xf32>
    %c1_i32_51 = arith.constant 1 : i32
    %159 = tpu.dynamic_rotate %152 by %c1_i32_51 dim 1 : vector<16x8xf32>, i32 -> vector<16x8xf32>
    %160 = arith.select %138, %152, %159 : vector<16x8xi1>, vector<16x8xf32>
    %161 = arith.subf %158, %160 : vector<16x8xf32>
    %cst_52 = arith.constant 1.250000e-01 : f32
    %162 = vector.broadcast %cst_52 : f32 to vector<16x8xf32>
    %163 = arith.mulf %161, %162 : vector<16x8xf32>
    %c15_i32_53 = arith.constant 15 : i32
    %164 = tpu.dynamic_rotate %156 by %c15_i32_53 dim 0 : vector<16x8xf32>, i32 -> vector<16x8xf32>
    %165 = arith.select %136, %156, %164 : vector<16x8xi1>, vector<16x8xf32>
    %c1_i32_54 = arith.constant 1 : i32
    %166 = tpu.dynamic_rotate %156 by %c1_i32_54 dim 0 : vector<16x8xf32>, i32 -> vector<16x8xf32>
    %167 = arith.select %133, %156, %166 : vector<16x8xi1>, vector<16x8xf32>
    %168 = arith.subf %165, %167 : vector<16x8xf32>
    %cst_55 = arith.constant 1.250000e-01 : f32
    %169 = vector.broadcast %cst_55 : f32 to vector<16x8xf32>
    %170 = arith.mulf %168, %169 : vector<16x8xf32>
    %c8_i32_56 = arith.constant 8 : i32
    %171 = tpu.dynamic_rotate %163 by %c8_i32_56 dim 0 : vector<16x8xf32>, i32 -> vector<16x8xf32>
    %c8_i32_57 = arith.constant 8 : i32
    %172 = tpu.dynamic_rotate %170 by %c8_i32_57 dim 0 : vector<16x8xf32>, i32 -> vector<16x8xf32>
    %173 = arith.subf %163, %171 : vector<16x8xf32>
    %174 = math.absf %173 : vector<16x8xf32>
    %175 = arith.subf %170, %172 : vector<16x8xf32>
    %176 = math.absf %175 : vector<16x8xf32>
    %cst_58 = arith.constant 0.000000e+00 : f32
    %177 = vector.broadcast %cst_58 : f32 to vector<16x8xf32>
    %178 = arith.cmpf one, %171, %177 : vector<16x8xf32>
    %cst_59 = arith.constant 0.000000e+00 : f32
    %179 = vector.broadcast %cst_59 : f32 to vector<16x8xf32>
    %180 = arith.cmpf one, %172, %179 : vector<16x8xf32>
    %c8_i32_60 = arith.constant 8 : i32
    %181 = vector.broadcast %c8_i32_60 : i32 to vector<16x8xi32>
    %182 = arith.cmpi slt, %125, %181 : vector<16x8xi32>
    %183 = arith.extui %182 : vector<16x8xi1> to vector<16x8xi32>
    %184 = arith.sitofp %183 : vector<16x8xi32> to vector<16x8xf32>
    %185 = arith.extui %178 : vector<16x8xi1> to vector<16x8xi32>
    %186 = arith.sitofp %185 : vector<16x8xi32> to vector<16x8xf32>
    %187 = arith.mulf %186, %184 : vector<16x8xf32>
    %188 = arith.extui %180 : vector<16x8xi1> to vector<16x8xi32>
    %189 = arith.sitofp %188 : vector<16x8xi32> to vector<16x8xf32>
    %190 = arith.mulf %189, %184 : vector<16x8xf32>
    %191 = arith.mulf %187, %174 : vector<16x8xf32>
    %192 = arith.mulf %190, %176 : vector<16x8xf32>
    %193 = arith.addf %191, %192 : vector<16x8xf32>
    %194 = vector.shape_cast %193 : vector<16x8xf32> to vector<1x16x8xf32>
    %cst_61 = arith.constant dense<0.000000e+00> : vector<1xf32>
    %195 = vector.multi_reduction <add>, %194, %cst_61 [1, 2] : vector<1x16x8xf32> to vector<1xf32>
    %196 = vector.shape_cast %195 : vector<1xf32> to vector<1x1x1xf32>
    %197 = vector.extract %196[0, 0, 0] : f32 from vector<1x1x1xf32>
    %cst_62 = arith.constant 0.000000e+00 : f32
    %198 = arith.addf %cst_62, %197 : f32
    %199 = arith.addf %187, %190 : vector<16x8xf32>
    %200 = vector.shape_cast %199 : vector<16x8xf32> to vector<1x16x8xf32>
    %cst_63 = arith.constant dense<0.000000e+00> : vector<1xf32>
    %201 = vector.multi_reduction <add>, %200, %cst_63 [1, 2] : vector<1x16x8xf32> to vector<1xf32>
    %202 = vector.shape_cast %201 : vector<1xf32> to vector<1x1x1xf32>
    %203 = vector.extract %202[0, 0, 0] : f32 from vector<1x1x1xf32>
    %cst_64 = arith.constant 1.000000e+00 : f32
    %204 = arith.mulf %cst_64, %203 : f32
    %cst_65 = arith.constant 0.000000e+00 : f32
    %205 = arith.addf %cst_65, %204 : f32
    %cst_66 = arith.constant 0.000000e+00 : f32
    %206 = vector.broadcast %cst_66 : f32 to vector<16x8xf32>
    %207 = arith.select %133, %206, %141 : vector<16x8xi1>, vector<16x8xf32>
    %cst_67 = arith.constant 0.000000e+00 : f32
    %208 = vector.broadcast %cst_67 : f32 to vector<16x8xf32>
    %209 = arith.select %136, %208, %142 : vector<16x8xi1>, vector<16x8xf32>
    %210 = arith.addf %207, %209 : vector<16x8xf32>
    %cst_68 = arith.constant 2.500000e-01 : f32
    %211 = vector.broadcast %cst_68 : f32 to vector<16x8xf32>
    %212 = arith.mulf %211, %210 : vector<16x8xf32>
    %cst_69 = arith.constant 5.000000e-01 : f32
    %213 = vector.broadcast %cst_69 : f32 to vector<16x8xf32>
    %214 = arith.mulf %213, %124 : vector<16x8xf32>
    %215 = arith.addf %212, %214 : vector<16x8xf32>
    %c0_70 = arith.constant 0 : index
    %c0_71 = arith.constant 0 : index
    %216 = vector.load %arg3[%c0_70, %c0_71] : memref<32x16xf32, #tpu.memory_space<vmem>>, vector<16x8xf32>
    tpu.vector_store %arg3[%c0_70, %c0_71], %215 {strides = array<i32>} : memref<32x16xf32, #tpu.memory_space<vmem>>, vector<16x8xf32>,
    %c0_72 = arith.constant 0 : index
    %c0_73 = arith.constant 0 : index
    %217 = tpu.strided_load %arg3[%c0_72, %c0_73] {strides = array<i32: 2, 1>} : memref<32x16xf32, #tpu.memory_space<vmem>>, vector<8x8xf32>
    %218 = tpu.iota {dimensions = array<i32: 0>} : vector<8x4xi32>
    %219 = tpu.iota {dimensions = array<i32: 1>} : vector<8x4xi32>
    %c2_i32_74 = arith.constant 2 : i32
    %220 = vector.broadcast %c2_i32_74 : i32 to vector<8x4xi32>
    %221 = arith.muli %220, %219 : vector<8x4xi32>
    %222 = arith.cmpi eq, %218, %221 : vector<8x4xi32>
    %223 = arith.extui %222 : vector<8x4xi1> to vector<8x4xi32>
    %224 = arith.sitofp %223 : vector<8x4xi32> to vector<8x4xf32>
    %cst_75 = arith.constant 5.000000e-01 : f32
    %225 = vector.broadcast %cst_75 : f32 to vector<8x4xf32>
    %226 = arith.mulf %225, %224 : vector<8x4xf32>
    %c2_i32_76 = arith.constant 2 : i32
    %227 = vector.broadcast %c2_i32_76 : i32 to vector<8x4xi32>
    %228 = arith.muli %227, %219 : vector<8x4xi32>
    %c1_i32_77 = arith.constant 1 : i32
    %229 = vector.broadcast %c1_i32_77 : i32 to vector<8x4xi32>
    %230 = arith.subi %228, %229 : vector<8x4xi32>
    %231 = arith.cmpi eq, %218, %230 : vector<8x4xi32>
    %232 = arith.extui %231 : vector<8x4xi1> to vector<8x4xi32>
    %233 = arith.sitofp %232 : vector<8x4xi32> to vector<8x4xf32>
    %cst_78 = arith.constant 2.500000e-01 : f32
    %234 = vector.broadcast %cst_78 : f32 to vector<8x4xf32>
    %235 = arith.mulf %234, %233 : vector<8x4xf32>
    %236 = arith.addf %226, %235 : vector<8x4xf32>
    %c2_i32_79 = arith.constant 2 : i32
    %237 = vector.broadcast %c2_i32_79 : i32 to vector<8x4xi32>
    %238 = arith.muli %237, %219 : vector<8x4xi32>
    %c1_i32_80 = arith.constant 1 : i32
    %239 = vector.broadcast %c1_i32_80 : i32 to vector<8x4xi32>
    %240 = arith.addi %238, %239 : vector<8x4xi32>
    %241 = arith.cmpi eq, %218, %240 : vector<8x4xi32>
    %242 = arith.extui %241 : vector<8x4xi1> to vector<8x4xi32>
    %243 = arith.sitofp %242 : vector<8x4xi32> to vector<8x4xf32>
    %cst_81 = arith.constant 2.500000e-01 : f32
    %244 = vector.broadcast %cst_81 : f32 to vector<8x4xf32>
    %245 = arith.mulf %244, %243 : vector<8x4xf32>
    %246 = arith.addf %236, %245 : vector<8x4xf32>
    %cst_82 = arith.constant dense<0.000000e+00> : vector<8x4xf32>
    %247 = tpu.matmul %217, %246, %cst_82 {dimension_numbers = #tpu.dot_dimension_numbers<[1], [0], [0], [1], [0, 0, 1, 1], [], []>, precision = #tpu.contract_precision<fp32>} : vector<8x8xf32>, vector<8x4xf32>, vector<8x4xf32> -> vector<8x4xf32>
    %248 = tpu.iota {dimensions = array<i32: 0>} : vector<8x4xi32>
    %249 = tpu.iota {dimensions = array<i32: 1>} : vector<8x4xi32>
    %c0_i32_83 = arith.constant 0 : i32
    %250 = vector.broadcast %c0_i32_83 : i32 to vector<8x4xi32>
    %251 = arith.cmpi eq, %248, %250 : vector<8x4xi32>
    %c3_i32 = arith.constant 3 : i32
    %252 = vector.broadcast %c3_i32 : i32 to vector<8x4xi32>
    %253 = arith.cmpi eq, %248, %252 : vector<8x4xi32>
    %c4_i32 = arith.constant 4 : i32
    %254 = vector.broadcast %c4_i32 : i32 to vector<8x4xi32>
    %255 = arith.cmpi eq, %248, %254 : vector<8x4xi32>
    %256 = arith.ori %251, %255 : vector<8x4xi1>
    %c7_i32_84 = arith.constant 7 : i32
    %257 = vector.broadcast %c7_i32_84 : i32 to vector<8x4xi32>
    %258 = arith.cmpi eq, %248, %257 : vector<8x4xi32>
    %259 = arith.ori %253, %258 : vector<8x4xi1>
    %c0_i32_85 = arith.constant 0 : i32
    %260 = vector.broadcast %c0_i32_85 : i32 to vector<8x4xi32>
    %261 = arith.cmpi eq, %249, %260 : vector<8x4xi32>
    %c3_i32_86 = arith.constant 3 : i32
    %262 = vector.broadcast %c3_i32_86 : i32 to vector<8x4xi32>
    %263 = arith.cmpi eq, %249, %262 : vector<8x4xi32>
    %c1_i32_87 = arith.constant 1 : i32
    %264 = tpu.dynamic_rotate %247 by %c1_i32_87 dim 0 : vector<8x4xf32>, i32 -> vector<8x4xf32>
    %c7_i32_88 = arith.constant 7 : i32
    %265 = tpu.dynamic_rotate %247 by %c7_i32_88 dim 0 : vector<8x4xf32>, i32 -> vector<8x4xf32>
    %c1_i32_89 = arith.constant 1 : i32
    %266 = tpu.dynamic_rotate %247 by %c1_i32_89 dim 1 : vector<8x4xf32>, i32 -> vector<8x4xf32>
    %c3_i32_90 = arith.constant 3 : i32
    %267 = tpu.dynamic_rotate %247 by %c3_i32_90 dim 1 : vector<8x4xf32>, i32 -> vector<8x4xf32>
    %268 = arith.select %256, %247, %264 : vector<8x4xi1>, vector<8x4xf32>
    %269 = arith.select %259, %247, %265 : vector<8x4xi1>, vector<8x4xf32>
    %270 = arith.select %261, %247, %266 : vector<8x4xi1>, vector<8x4xf32>
    %271 = arith.select %263, %247, %267 : vector<8x4xi1>, vector<8x4xf32>
    %cst_91 = arith.constant 2.000000e+00 : f32
    %272 = vector.broadcast %cst_91 : f32 to vector<8x4xf32>
    %273 = arith.mulf %272, %247 : vector<8x4xf32>
    %274 = arith.addf %268, %273 : vector<8x4xf32>
    %275 = arith.addf %274, %269 : vector<8x4xf32>
    %cst_92 = arith.constant 2.000000e+00 : f32
    %276 = vector.broadcast %cst_92 : f32 to vector<8x4xf32>
    %277 = arith.mulf %276, %247 : vector<8x4xf32>
    %278 = arith.addf %270, %277 : vector<8x4xf32>
    %279 = arith.addf %278, %271 : vector<8x4xf32>
    %c3_i32_93 = arith.constant 3 : i32
    %280 = tpu.dynamic_rotate %275 by %c3_i32_93 dim 1 : vector<8x4xf32>, i32 -> vector<8x4xf32>
    %281 = arith.select %263, %275, %280 : vector<8x4xi1>, vector<8x4xf32>
    %c1_i32_94 = arith.constant 1 : i32
    %282 = tpu.dynamic_rotate %275 by %c1_i32_94 dim 1 : vector<8x4xf32>, i32 -> vector<8x4xf32>
    %283 = arith.select %261, %275, %282 : vector<8x4xi1>, vector<8x4xf32>
    %284 = arith.subf %281, %283 : vector<8x4xf32>
    %cst_95 = arith.constant 1.250000e-01 : f32
    %285 = vector.broadcast %cst_95 : f32 to vector<8x4xf32>
    %286 = arith.mulf %284, %285 : vector<8x4xf32>
    %c7_i32_96 = arith.constant 7 : i32
    %287 = tpu.dynamic_rotate %279 by %c7_i32_96 dim 0 : vector<8x4xf32>, i32 -> vector<8x4xf32>
    %288 = arith.select %259, %279, %287 : vector<8x4xi1>, vector<8x4xf32>
    %c1_i32_97 = arith.constant 1 : i32
    %289 = tpu.dynamic_rotate %279 by %c1_i32_97 dim 0 : vector<8x4xf32>, i32 -> vector<8x4xf32>
    %290 = arith.select %256, %279, %289 : vector<8x4xi1>, vector<8x4xf32>
    %291 = arith.subf %288, %290 : vector<8x4xf32>
    %cst_98 = arith.constant 1.250000e-01 : f32
    %292 = vector.broadcast %cst_98 : f32 to vector<8x4xf32>
    %293 = arith.mulf %291, %292 : vector<8x4xf32>
    %c4_i32_99 = arith.constant 4 : i32
    %294 = tpu.dynamic_rotate %286 by %c4_i32_99 dim 0 : vector<8x4xf32>, i32 -> vector<8x4xf32>
    %c4_i32_100 = arith.constant 4 : i32
    %295 = tpu.dynamic_rotate %293 by %c4_i32_100 dim 0 : vector<8x4xf32>, i32 -> vector<8x4xf32>
    %296 = arith.subf %286, %294 : vector<8x4xf32>
    %297 = math.absf %296 : vector<8x4xf32>
    %298 = arith.subf %293, %295 : vector<8x4xf32>
    %299 = math.absf %298 : vector<8x4xf32>
    %cst_101 = arith.constant 0.000000e+00 : f32
    %300 = vector.broadcast %cst_101 : f32 to vector<8x4xf32>
    %301 = arith.cmpf one, %294, %300 : vector<8x4xf32>
    %cst_102 = arith.constant 0.000000e+00 : f32
    %302 = vector.broadcast %cst_102 : f32 to vector<8x4xf32>
    %303 = arith.cmpf one, %295, %302 : vector<8x4xf32>
    %c4_i32_103 = arith.constant 4 : i32
    %304 = vector.broadcast %c4_i32_103 : i32 to vector<8x4xi32>
    %305 = arith.cmpi slt, %248, %304 : vector<8x4xi32>
    %306 = arith.extui %305 : vector<8x4xi1> to vector<8x4xi32>
    %307 = arith.sitofp %306 : vector<8x4xi32> to vector<8x4xf32>
    %308 = arith.extui %301 : vector<8x4xi1> to vector<8x4xi32>
    %309 = arith.sitofp %308 : vector<8x4xi32> to vector<8x4xf32>
    %310 = arith.mulf %309, %307 : vector<8x4xf32>
    %311 = arith.extui %303 : vector<8x4xi1> to vector<8x4xi32>
    %312 = arith.sitofp %311 : vector<8x4xi32> to vector<8x4xf32>
    %313 = arith.mulf %312, %307 : vector<8x4xf32>
    %314 = arith.mulf %310, %297 : vector<8x4xf32>
    %315 = arith.mulf %313, %299 : vector<8x4xf32>
    %316 = arith.addf %314, %315 : vector<8x4xf32>
    %317 = vector.shape_cast %316 : vector<8x4xf32> to vector<1x8x4xf32>
    %cst_104 = arith.constant dense<0.000000e+00> : vector<1xf32>
    %318 = vector.multi_reduction <add>, %317, %cst_104 [1, 2] : vector<1x8x4xf32> to vector<1xf32>
    %319 = vector.shape_cast %318 : vector<1xf32> to vector<1x1x1xf32>
    %320 = vector.extract %319[0, 0, 0] : f32 from vector<1x1x1xf32>
    %cst_105 = arith.constant 0.000000e+00 : f32
    %321 = arith.addf %cst_105, %320 : f32
    %322 = arith.addf %310, %313 : vector<8x4xf32>
    %323 = vector.shape_cast %322 : vector<8x4xf32> to vector<1x8x4xf32>
    %cst_106 = arith.constant dense<0.000000e+00> : vector<1xf32>
    %324 = vector.multi_reduction <add>, %323, %cst_106 [1, 2] : vector<1x8x4xf32> to vector<1xf32>
    %325 = vector.shape_cast %324 : vector<1xf32> to vector<1x1x1xf32>
    %326 = vector.extract %325[0, 0, 0] : f32 from vector<1x1x1xf32>
    %cst_107 = arith.constant 1.000000e+00 : f32
    %327 = arith.mulf %cst_107, %326 : f32
    %cst_108 = arith.constant 0.000000e+00 : f32
    %328 = arith.addf %cst_108, %327 : f32
    %cst_109 = arith.constant 0.000000e+00 : f32
    %329 = vector.broadcast %cst_109 : f32 to vector<8x4xf32>
    %330 = arith.select %256, %329, %264 : vector<8x4xi1>, vector<8x4xf32>
    %cst_110 = arith.constant 0.000000e+00 : f32
    %331 = vector.broadcast %cst_110 : f32 to vector<8x4xf32>
    %332 = arith.select %259, %331, %265 : vector<8x4xi1>, vector<8x4xf32>
    %333 = arith.addf %330, %332 : vector<8x4xf32>
    %cst_111 = arith.constant 2.500000e-01 : f32
    %334 = vector.broadcast %cst_111 : f32 to vector<8x4xf32>
    %335 = arith.mulf %334, %333 : vector<8x4xf32>
    %cst_112 = arith.constant 5.000000e-01 : f32
    %336 = vector.broadcast %cst_112 : f32 to vector<8x4xf32>
    %337 = arith.mulf %336, %247 : vector<8x4xf32>
    %338 = arith.addf %335, %337 : vector<8x4xf32>
    %c0_113 = arith.constant 0 : index
    %c0_114 = arith.constant 0 : index
    %339 = vector.load %arg3[%c0_113, %c0_114] : memref<32x16xf32, #tpu.memory_space<vmem>>, vector<8x4xf32>
    tpu.vector_store %arg3[%c0_113, %c0_114], %338 {strides = array<i32>} : memref<32x16xf32, #tpu.memory_space<vmem>>, vector<8x4xf32>,
    %c0_115 = arith.constant 0 : index
    %c0_116 = arith.constant 0 : index
    %340 = tpu.strided_load %arg3[%c0_115, %c0_116] {strides = array<i32: 2, 1>} : memref<32x16xf32, #tpu.memory_space<vmem>>, vector<4x4xf32>
    %341 = tpu.iota {dimensions = array<i32: 0>} : vector<4x2xi32>
    %342 = tpu.iota {dimensions = array<i32: 1>} : vector<4x2xi32>
    %c2_i32_117 = arith.constant 2 : i32
    %343 = vector.broadcast %c2_i32_117 : i32 to vector<4x2xi32>
    %344 = arith.muli %343, %342 : vector<4x2xi32>
    %345 = arith.cmpi eq, %341, %344 : vector<4x2xi32>
    %346 = arith.extui %345 : vector<4x2xi1> to vector<4x2xi32>
    %347 = arith.sitofp %346 : vector<4x2xi32> to vector<4x2xf32>
    %cst_118 = arith.constant 5.000000e-01 : f32
    %348 = vector.broadcast %cst_118 : f32 to vector<4x2xf32>
    %349 = arith.mulf %348, %347 : vector<4x2xf32>
    %c2_i32_119 = arith.constant 2 : i32
    %350 = vector.broadcast %c2_i32_119 : i32 to vector<4x2xi32>
    %351 = arith.muli %350, %342 : vector<4x2xi32>
    %c1_i32_120 = arith.constant 1 : i32
    %352 = vector.broadcast %c1_i32_120 : i32 to vector<4x2xi32>
    %353 = arith.subi %351, %352 : vector<4x2xi32>
    %354 = arith.cmpi eq, %341, %353 : vector<4x2xi32>
    %355 = arith.extui %354 : vector<4x2xi1> to vector<4x2xi32>
    %356 = arith.sitofp %355 : vector<4x2xi32> to vector<4x2xf32>
    %cst_121 = arith.constant 2.500000e-01 : f32
    %357 = vector.broadcast %cst_121 : f32 to vector<4x2xf32>
    %358 = arith.mulf %357, %356 : vector<4x2xf32>
    %359 = arith.addf %349, %358 : vector<4x2xf32>
    %c2_i32_122 = arith.constant 2 : i32
    %360 = vector.broadcast %c2_i32_122 : i32 to vector<4x2xi32>
    %361 = arith.muli %360, %342 : vector<4x2xi32>
    %c1_i32_123 = arith.constant 1 : i32
    %362 = vector.broadcast %c1_i32_123 : i32 to vector<4x2xi32>
    %363 = arith.addi %361, %362 : vector<4x2xi32>
    %364 = arith.cmpi eq, %341, %363 : vector<4x2xi32>
    %365 = arith.extui %364 : vector<4x2xi1> to vector<4x2xi32>
    %366 = arith.sitofp %365 : vector<4x2xi32> to vector<4x2xf32>
    %cst_124 = arith.constant 2.500000e-01 : f32
    %367 = vector.broadcast %cst_124 : f32 to vector<4x2xf32>
    %368 = arith.mulf %367, %366 : vector<4x2xf32>
    %369 = arith.addf %359, %368 : vector<4x2xf32>
    %cst_125 = arith.constant dense<0.000000e+00> : vector<4x2xf32>
    %370 = tpu.matmul %340, %369, %cst_125 {dimension_numbers = #tpu.dot_dimension_numbers<[1], [0], [0], [1], [0, 0, 1, 1], [], []>, precision = #tpu.contract_precision<fp32>} : vector<4x4xf32>, vector<4x2xf32>, vector<4x2xf32> -> vector<4x2xf32>
    %371 = tpu.iota {dimensions = array<i32: 0>} : vector<4x2xi32>
    %372 = tpu.iota {dimensions = array<i32: 1>} : vector<4x2xi32>
    %c0_i32_126 = arith.constant 0 : i32
    %373 = vector.broadcast %c0_i32_126 : i32 to vector<4x2xi32>
    %374 = arith.cmpi eq, %371, %373 : vector<4x2xi32>
    %c1_i32_127 = arith.constant 1 : i32
    %375 = vector.broadcast %c1_i32_127 : i32 to vector<4x2xi32>
    %376 = arith.cmpi eq, %371, %375 : vector<4x2xi32>
    %c2_i32_128 = arith.constant 2 : i32
    %377 = vector.broadcast %c2_i32_128 : i32 to vector<4x2xi32>
    %378 = arith.cmpi eq, %371, %377 : vector<4x2xi32>
    %379 = arith.ori %374, %378 : vector<4x2xi1>
    %c3_i32_129 = arith.constant 3 : i32
    %380 = vector.broadcast %c3_i32_129 : i32 to vector<4x2xi32>
    %381 = arith.cmpi eq, %371, %380 : vector<4x2xi32>
    %382 = arith.ori %376, %381 : vector<4x2xi1>
    %c0_i32_130 = arith.constant 0 : i32
    %383 = vector.broadcast %c0_i32_130 : i32 to vector<4x2xi32>
    %384 = arith.cmpi eq, %372, %383 : vector<4x2xi32>
    %c1_i32_131 = arith.constant 1 : i32
    %385 = vector.broadcast %c1_i32_131 : i32 to vector<4x2xi32>
    %386 = arith.cmpi eq, %372, %385 : vector<4x2xi32>
    %c1_i32_132 = arith.constant 1 : i32
    %387 = tpu.dynamic_rotate %370 by %c1_i32_132 dim 0 : vector<4x2xf32>, i32 -> vector<4x2xf32>
    %c3_i32_133 = arith.constant 3 : i32
    %388 = tpu.dynamic_rotate %370 by %c3_i32_133 dim 0 : vector<4x2xf32>, i32 -> vector<4x2xf32>
    %c1_i32_134 = arith.constant 1 : i32
    %389 = tpu.dynamic_rotate %370 by %c1_i32_134 dim 1 : vector<4x2xf32>, i32 -> vector<4x2xf32>
    %c1_i32_135 = arith.constant 1 : i32
    %390 = tpu.dynamic_rotate %370 by %c1_i32_135 dim 1 : vector<4x2xf32>, i32 -> vector<4x2xf32>
    %391 = arith.select %379, %370, %387 : vector<4x2xi1>, vector<4x2xf32>
    %392 = arith.select %382, %370, %388 : vector<4x2xi1>, vector<4x2xf32>
    %393 = arith.select %384, %370, %389 : vector<4x2xi1>, vector<4x2xf32>
    %394 = arith.select %386, %370, %390 : vector<4x2xi1>, vector<4x2xf32>
    %cst_136 = arith.constant 2.000000e+00 : f32
    %395 = vector.broadcast %cst_136 : f32 to vector<4x2xf32>
    %396 = arith.mulf %395, %370 : vector<4x2xf32>
    %397 = arith.addf %391, %396 : vector<4x2xf32>
    %398 = arith.addf %397, %392 : vector<4x2xf32>
    %cst_137 = arith.constant 2.000000e+00 : f32
    %399 = vector.broadcast %cst_137 : f32 to vector<4x2xf32>
    %400 = arith.mulf %399, %370 : vector<4x2xf32>
    %401 = arith.addf %393, %400 : vector<4x2xf32>
    %402 = arith.addf %401, %394 : vector<4x2xf32>
    %c1_i32_138 = arith.constant 1 : i32
    %403 = tpu.dynamic_rotate %398 by %c1_i32_138 dim 1 : vector<4x2xf32>, i32 -> vector<4x2xf32>
    %404 = arith.select %386, %398, %403 : vector<4x2xi1>, vector<4x2xf32>
    %c1_i32_139 = arith.constant 1 : i32
    %405 = tpu.dynamic_rotate %398 by %c1_i32_139 dim 1 : vector<4x2xf32>, i32 -> vector<4x2xf32>
    %406 = arith.select %384, %398, %405 : vector<4x2xi1>, vector<4x2xf32>
    %407 = arith.subf %404, %406 : vector<4x2xf32>
    %cst_140 = arith.constant 1.250000e-01 : f32
    %408 = vector.broadcast %cst_140 : f32 to vector<4x2xf32>
    %409 = arith.mulf %407, %408 : vector<4x2xf32>
    %c3_i32_141 = arith.constant 3 : i32
    %410 = tpu.dynamic_rotate %402 by %c3_i32_141 dim 0 : vector<4x2xf32>, i32 -> vector<4x2xf32>
    %411 = arith.select %382, %402, %410 : vector<4x2xi1>, vector<4x2xf32>
    %c1_i32_142 = arith.constant 1 : i32
    %412 = tpu.dynamic_rotate %402 by %c1_i32_142 dim 0 : vector<4x2xf32>, i32 -> vector<4x2xf32>
    %413 = arith.select %379, %402, %412 : vector<4x2xi1>, vector<4x2xf32>
    %414 = arith.subf %411, %413 : vector<4x2xf32>
    %cst_143 = arith.constant 1.250000e-01 : f32
    %415 = vector.broadcast %cst_143 : f32 to vector<4x2xf32>
    %416 = arith.mulf %414, %415 : vector<4x2xf32>
    %c2_i32_144 = arith.constant 2 : i32
    %417 = tpu.dynamic_rotate %409 by %c2_i32_144 dim 0 : vector<4x2xf32>, i32 -> vector<4x2xf32>
    %c2_i32_145 = arith.constant 2 : i32
    %418 = tpu.dynamic_rotate %416 by %c2_i32_145 dim 0 : vector<4x2xf32>, i32 -> vector<4x2xf32>
    %419 = arith.subf %409, %417 : vector<4x2xf32>
    %420 = math.absf %419 : vector<4x2xf32>
    %421 = arith.subf %416, %418 : vector<4x2xf32>
    %422 = math.absf %421 : vector<4x2xf32>
    %cst_146 = arith.constant 0.000000e+00 : f32
    %423 = vector.broadcast %cst_146 : f32 to vector<4x2xf32>
    %424 = arith.cmpf one, %417, %423 : vector<4x2xf32>
    %cst_147 = arith.constant 0.000000e+00 : f32
    %425 = vector.broadcast %cst_147 : f32 to vector<4x2xf32>
    %426 = arith.cmpf one, %418, %425 : vector<4x2xf32>
    %c2_i32_148 = arith.constant 2 : i32
    %427 = vector.broadcast %c2_i32_148 : i32 to vector<4x2xi32>
    %428 = arith.cmpi slt, %371, %427 : vector<4x2xi32>
    %429 = arith.extui %428 : vector<4x2xi1> to vector<4x2xi32>
    %430 = arith.sitofp %429 : vector<4x2xi32> to vector<4x2xf32>
    %431 = arith.extui %424 : vector<4x2xi1> to vector<4x2xi32>
    %432 = arith.sitofp %431 : vector<4x2xi32> to vector<4x2xf32>
    %433 = arith.mulf %432, %430 : vector<4x2xf32>
    %434 = arith.extui %426 : vector<4x2xi1> to vector<4x2xi32>
    %435 = arith.sitofp %434 : vector<4x2xi32> to vector<4x2xf32>
    %436 = arith.mulf %435, %430 : vector<4x2xf32>
    %437 = arith.mulf %433, %420 : vector<4x2xf32>
    %438 = arith.mulf %436, %422 : vector<4x2xf32>
    %439 = arith.addf %437, %438 : vector<4x2xf32>
    %440 = vector.shape_cast %439 : vector<4x2xf32> to vector<1x4x2xf32>
    %cst_149 = arith.constant dense<0.000000e+00> : vector<1xf32>
    %441 = vector.multi_reduction <add>, %440, %cst_149 [1, 2] : vector<1x4x2xf32> to vector<1xf32>
    %442 = vector.shape_cast %441 : vector<1xf32> to vector<1x1x1xf32>
    %443 = vector.extract %442[0, 0, 0] : f32 from vector<1x1x1xf32>
    %cst_150 = arith.constant 0.000000e+00 : f32
    %444 = arith.addf %cst_150, %443 : f32
    %445 = arith.addf %433, %436 : vector<4x2xf32>
    %446 = vector.shape_cast %445 : vector<4x2xf32> to vector<1x4x2xf32>
    %cst_151 = arith.constant dense<0.000000e+00> : vector<1xf32>
    %447 = vector.multi_reduction <add>, %446, %cst_151 [1, 2] : vector<1x4x2xf32> to vector<1xf32>
    %448 = vector.shape_cast %447 : vector<1xf32> to vector<1x1x1xf32>
    %449 = vector.extract %448[0, 0, 0] : f32 from vector<1x1x1xf32>
    %cst_152 = arith.constant 1.000000e+00 : f32
    %450 = arith.mulf %cst_152, %449 : f32
    %cst_153 = arith.constant 0.000000e+00 : f32
    %451 = arith.addf %cst_153, %450 : f32
    %c1 = arith.constant 1 : index
    %c0_154 = arith.constant 0 : index
    %c0_155 = arith.constant 0 : index
    %452 = vector.load %arg1[%c1, %c0_154, %c0_155] : memref<2x32x16xf32, #tpu.memory_space<vmem>>, vector<1x32x16xf32>
    %453 = vector.shape_cast %452 : vector<1x32x16xf32> to vector<32x16xf32>
    %454 = tpu.iota {dimensions = array<i32: 0>} : vector<32x16xi32>
    %455 = tpu.iota {dimensions = array<i32: 1>} : vector<32x16xi32>
    %c0_i32_156 = arith.constant 0 : i32
    %456 = vector.broadcast %c0_i32_156 : i32 to vector<32x16xi32>
    %457 = arith.cmpi eq, %454, %456 : vector<32x16xi32>
    %c15_i32_157 = arith.constant 15 : i32
    %458 = vector.broadcast %c15_i32_157 : i32 to vector<32x16xi32>
    %459 = arith.cmpi eq, %454, %458 : vector<32x16xi32>
    %c16_i32_158 = arith.constant 16 : i32
    %460 = vector.broadcast %c16_i32_158 : i32 to vector<32x16xi32>
    %461 = arith.cmpi eq, %454, %460 : vector<32x16xi32>
    %462 = arith.ori %457, %461 : vector<32x16xi1>
    %c31_i32_159 = arith.constant 31 : i32
    %463 = vector.broadcast %c31_i32_159 : i32 to vector<32x16xi32>
    %464 = arith.cmpi eq, %454, %463 : vector<32x16xi32>
    %465 = arith.ori %459, %464 : vector<32x16xi1>
    %c0_i32_160 = arith.constant 0 : i32
    %466 = vector.broadcast %c0_i32_160 : i32 to vector<32x16xi32>
    %467 = arith.cmpi eq, %455, %466 : vector<32x16xi32>
    %c15_i32_161 = arith.constant 15 : i32
    %468 = vector.broadcast %c15_i32_161 : i32 to vector<32x16xi32>
    %469 = arith.cmpi eq, %455, %468 : vector<32x16xi32>
    %c1_i32_162 = arith.constant 1 : i32
    %470 = tpu.dynamic_rotate %453 by %c1_i32_162 dim 0 : vector<32x16xf32>, i32 -> vector<32x16xf32>
    %c31_i32_163 = arith.constant 31 : i32
    %471 = tpu.dynamic_rotate %453 by %c31_i32_163 dim 0 : vector<32x16xf32>, i32 -> vector<32x16xf32>
    %c1_i32_164 = arith.constant 1 : i32
    %472 = tpu.dynamic_rotate %453 by %c1_i32_164 dim 1 : vector<32x16xf32>, i32 -> vector<32x16xf32>
    %c15_i32_165 = arith.constant 15 : i32
    %473 = tpu.dynamic_rotate %453 by %c15_i32_165 dim 1 : vector<32x16xf32>, i32 -> vector<32x16xf32>
    %474 = arith.select %462, %453, %470 : vector<32x16xi1>, vector<32x16xf32>
    %475 = arith.select %465, %453, %471 : vector<32x16xi1>, vector<32x16xf32>
    %476 = arith.select %467, %453, %472 : vector<32x16xi1>, vector<32x16xf32>
    %477 = arith.select %469, %453, %473 : vector<32x16xi1>, vector<32x16xf32>
    %cst_166 = arith.constant 2.000000e+00 : f32
    %478 = vector.broadcast %cst_166 : f32 to vector<32x16xf32>
    %479 = arith.mulf %478, %453 : vector<32x16xf32>
    %480 = arith.addf %474, %479 : vector<32x16xf32>
    %481 = arith.addf %480, %475 : vector<32x16xf32>
    %cst_167 = arith.constant 2.000000e+00 : f32
    %482 = vector.broadcast %cst_167 : f32 to vector<32x16xf32>
    %483 = arith.mulf %482, %453 : vector<32x16xf32>
    %484 = arith.addf %476, %483 : vector<32x16xf32>
    %485 = arith.addf %484, %477 : vector<32x16xf32>
    %c15_i32_168 = arith.constant 15 : i32
    %486 = tpu.dynamic_rotate %481 by %c15_i32_168 dim 1 : vector<32x16xf32>, i32 -> vector<32x16xf32>
    %487 = arith.select %469, %481, %486 : vector<32x16xi1>, vector<32x16xf32>
    %c1_i32_169 = arith.constant 1 : i32
    %488 = tpu.dynamic_rotate %481 by %c1_i32_169 dim 1 : vector<32x16xf32>, i32 -> vector<32x16xf32>
    %489 = arith.select %467, %481, %488 : vector<32x16xi1>, vector<32x16xf32>
    %490 = arith.subf %487, %489 : vector<32x16xf32>
    %cst_170 = arith.constant 1.250000e-01 : f32
    %491 = vector.broadcast %cst_170 : f32 to vector<32x16xf32>
    %492 = arith.mulf %490, %491 : vector<32x16xf32>
    %c31_i32_171 = arith.constant 31 : i32
    %493 = tpu.dynamic_rotate %485 by %c31_i32_171 dim 0 : vector<32x16xf32>, i32 -> vector<32x16xf32>
    %494 = arith.select %465, %485, %493 : vector<32x16xi1>, vector<32x16xf32>
    %c1_i32_172 = arith.constant 1 : i32
    %495 = tpu.dynamic_rotate %485 by %c1_i32_172 dim 0 : vector<32x16xf32>, i32 -> vector<32x16xf32>
    %496 = arith.select %462, %485, %495 : vector<32x16xi1>, vector<32x16xf32>
    %497 = arith.subf %494, %496 : vector<32x16xf32>
    %cst_173 = arith.constant 1.250000e-01 : f32
    %498 = vector.broadcast %cst_173 : f32 to vector<32x16xf32>
    %499 = arith.mulf %497, %498 : vector<32x16xf32>
    %c16_i32_174 = arith.constant 16 : i32
    %500 = tpu.dynamic_rotate %492 by %c16_i32_174 dim 0 : vector<32x16xf32>, i32 -> vector<32x16xf32>
    %c16_i32_175 = arith.constant 16 : i32
    %501 = tpu.dynamic_rotate %499 by %c16_i32_175 dim 0 : vector<32x16xf32>, i32 -> vector<32x16xf32>
    %502 = arith.subf %492, %500 : vector<32x16xf32>
    %503 = math.absf %502 : vector<32x16xf32>
    %504 = arith.subf %499, %501 : vector<32x16xf32>
    %505 = math.absf %504 : vector<32x16xf32>
    %cst_176 = arith.constant 0.000000e+00 : f32
    %506 = vector.broadcast %cst_176 : f32 to vector<32x16xf32>
    %507 = arith.cmpf one, %500, %506 : vector<32x16xf32>
    %cst_177 = arith.constant 0.000000e+00 : f32
    %508 = vector.broadcast %cst_177 : f32 to vector<32x16xf32>
    %509 = arith.cmpf one, %501, %508 : vector<32x16xf32>
    %c16_i32_178 = arith.constant 16 : i32
    %510 = vector.broadcast %c16_i32_178 : i32 to vector<32x16xi32>
    %511 = arith.cmpi slt, %454, %510 : vector<32x16xi32>
    %512 = arith.extui %511 : vector<32x16xi1> to vector<32x16xi32>
    %513 = arith.sitofp %512 : vector<32x16xi32> to vector<32x16xf32>
    %514 = arith.extui %507 : vector<32x16xi1> to vector<32x16xi32>
    %515 = arith.sitofp %514 : vector<32x16xi32> to vector<32x16xf32>
    %516 = arith.mulf %515, %513 : vector<32x16xf32>
    %517 = arith.extui %509 : vector<32x16xi1> to vector<32x16xi32>
    %518 = arith.sitofp %517 : vector<32x16xi32> to vector<32x16xf32>
    %519 = arith.mulf %518, %513 : vector<32x16xf32>
    %520 = arith.mulf %516, %503 : vector<32x16xf32>
    %521 = arith.mulf %519, %505 : vector<32x16xf32>
    %522 = arith.addf %520, %521 : vector<32x16xf32>
    %523 = vector.shape_cast %522 : vector<32x16xf32> to vector<1x32x16xf32>
    %cst_179 = arith.constant dense<0.000000e+00> : vector<1xf32>
    %524 = vector.multi_reduction <add>, %523, %cst_179 [1, 2] : vector<1x32x16xf32> to vector<1xf32>
    %525 = vector.shape_cast %524 : vector<1xf32> to vector<1x1x1xf32>
    %526 = vector.extract %525[0, 0, 0] : f32 from vector<1x1x1xf32>
    %527 = arith.addf %75, %526 : f32
    %528 = arith.addf %516, %519 : vector<32x16xf32>
    %529 = vector.shape_cast %528 : vector<32x16xf32> to vector<1x32x16xf32>
    %cst_180 = arith.constant dense<0.000000e+00> : vector<1xf32>
    %530 = vector.multi_reduction <add>, %529, %cst_180 [1, 2] : vector<1x32x16xf32> to vector<1xf32>
    %531 = vector.shape_cast %530 : vector<1xf32> to vector<1x1x1xf32>
    %532 = vector.extract %531[0, 0, 0] : f32 from vector<1x1x1xf32>
    %cst_181 = arith.constant 1.000000e+00 : f32
    %533 = arith.mulf %cst_181, %532 : f32
    %534 = arith.addf %82, %533 : f32
    %cst_182 = arith.constant 0.000000e+00 : f32
    %535 = vector.broadcast %cst_182 : f32 to vector<32x16xf32>
    %536 = arith.select %462, %535, %470 : vector<32x16xi1>, vector<32x16xf32>
    %cst_183 = arith.constant 0.000000e+00 : f32
    %537 = vector.broadcast %cst_183 : f32 to vector<32x16xf32>
    %538 = arith.select %465, %537, %471 : vector<32x16xi1>, vector<32x16xf32>
    %539 = arith.addf %536, %538 : vector<32x16xf32>
    %cst_184 = arith.constant 2.500000e-01 : f32
    %540 = vector.broadcast %cst_184 : f32 to vector<32x16xf32>
    %541 = arith.mulf %540, %539 : vector<32x16xf32>
    %cst_185 = arith.constant 5.000000e-01 : f32
    %542 = vector.broadcast %cst_185 : f32 to vector<32x16xf32>
    %543 = arith.mulf %542, %453 : vector<32x16xf32>
    %544 = arith.addf %541, %543 : vector<32x16xf32>
    %c0_186 = arith.constant 0 : index
    %c0_187 = arith.constant 0 : index
    %545 = vector.load %arg3[%c0_186, %c0_187] : memref<32x16xf32, #tpu.memory_space<vmem>>, vector<32x16xf32>
    tpu.vector_store %arg3[%c0_186, %c0_187], %544 {strides = array<i32>} : memref<32x16xf32, #tpu.memory_space<vmem>>, vector<32x16xf32>,
    %c0_188 = arith.constant 0 : index
    %c0_189 = arith.constant 0 : index
    %546 = tpu.strided_load %arg3[%c0_188, %c0_189] {strides = array<i32: 2, 1>} : memref<32x16xf32, #tpu.memory_space<vmem>>, vector<16x16xf32>
    %547 = tpu.iota {dimensions = array<i32: 0>} : vector<16x8xi32>
    %548 = tpu.iota {dimensions = array<i32: 1>} : vector<16x8xi32>
    %c2_i32_190 = arith.constant 2 : i32
    %549 = vector.broadcast %c2_i32_190 : i32 to vector<16x8xi32>
    %550 = arith.muli %549, %548 : vector<16x8xi32>
    %551 = arith.cmpi eq, %547, %550 : vector<16x8xi32>
    %552 = arith.extui %551 : vector<16x8xi1> to vector<16x8xi32>
    %553 = arith.sitofp %552 : vector<16x8xi32> to vector<16x8xf32>
    %cst_191 = arith.constant 5.000000e-01 : f32
    %554 = vector.broadcast %cst_191 : f32 to vector<16x8xf32>
    %555 = arith.mulf %554, %553 : vector<16x8xf32>
    %c2_i32_192 = arith.constant 2 : i32
    %556 = vector.broadcast %c2_i32_192 : i32 to vector<16x8xi32>
    %557 = arith.muli %556, %548 : vector<16x8xi32>
    %c1_i32_193 = arith.constant 1 : i32
    %558 = vector.broadcast %c1_i32_193 : i32 to vector<16x8xi32>
    %559 = arith.subi %557, %558 : vector<16x8xi32>
    %560 = arith.cmpi eq, %547, %559 : vector<16x8xi32>
    %561 = arith.extui %560 : vector<16x8xi1> to vector<16x8xi32>
    %562 = arith.sitofp %561 : vector<16x8xi32> to vector<16x8xf32>
    %cst_194 = arith.constant 2.500000e-01 : f32
    %563 = vector.broadcast %cst_194 : f32 to vector<16x8xf32>
    %564 = arith.mulf %563, %562 : vector<16x8xf32>
    %565 = arith.addf %555, %564 : vector<16x8xf32>
    %c2_i32_195 = arith.constant 2 : i32
    %566 = vector.broadcast %c2_i32_195 : i32 to vector<16x8xi32>
    %567 = arith.muli %566, %548 : vector<16x8xi32>
    %c1_i32_196 = arith.constant 1 : i32
    %568 = vector.broadcast %c1_i32_196 : i32 to vector<16x8xi32>
    %569 = arith.addi %567, %568 : vector<16x8xi32>
    %570 = arith.cmpi eq, %547, %569 : vector<16x8xi32>
    %571 = arith.extui %570 : vector<16x8xi1> to vector<16x8xi32>
    %572 = arith.sitofp %571 : vector<16x8xi32> to vector<16x8xf32>
    %cst_197 = arith.constant 2.500000e-01 : f32
    %573 = vector.broadcast %cst_197 : f32 to vector<16x8xf32>
    %574 = arith.mulf %573, %572 : vector<16x8xf32>
    %575 = arith.addf %565, %574 : vector<16x8xf32>
    %cst_198 = arith.constant dense<0.000000e+00> : vector<16x8xf32>
    %576 = tpu.matmul %546, %575, %cst_198 {dimension_numbers = #tpu.dot_dimension_numbers<[1], [0], [0], [1], [0, 0, 1, 1], [], []>, precision = #tpu.contract_precision<fp32>} : vector<16x16xf32>, vector<16x8xf32>, vector<16x8xf32> -> vector<16x8xf32>
    %577 = tpu.iota {dimensions = array<i32: 0>} : vector<16x8xi32>
    %578 = tpu.iota {dimensions = array<i32: 1>} : vector<16x8xi32>
    %c0_i32_199 = arith.constant 0 : i32
    %579 = vector.broadcast %c0_i32_199 : i32 to vector<16x8xi32>
    %580 = arith.cmpi eq, %577, %579 : vector<16x8xi32>
    %c7_i32_200 = arith.constant 7 : i32
    %581 = vector.broadcast %c7_i32_200 : i32 to vector<16x8xi32>
    %582 = arith.cmpi eq, %577, %581 : vector<16x8xi32>
    %c8_i32_201 = arith.constant 8 : i32
    %583 = vector.broadcast %c8_i32_201 : i32 to vector<16x8xi32>
    %584 = arith.cmpi eq, %577, %583 : vector<16x8xi32>
    %585 = arith.ori %580, %584 : vector<16x8xi1>
    %c15_i32_202 = arith.constant 15 : i32
    %586 = vector.broadcast %c15_i32_202 : i32 to vector<16x8xi32>
    %587 = arith.cmpi eq, %577, %586 : vector<16x8xi32>
    %588 = arith.ori %582, %587 : vector<16x8xi1>
    %c0_i32_203 = arith.constant 0 : i32
    %589 = vector.broadcast %c0_i32_203 : i32 to vector<16x8xi32>
    %590 = arith.cmpi eq, %578, %589 : vector<16x8xi32>
    %c7_i32_204 = arith.constant 7 : i32
    %591 = vector.broadcast %c7_i32_204 : i32 to vector<16x8xi32>
    %592 = arith.cmpi eq, %578, %591 : vector<16x8xi32>
    %c1_i32_205 = arith.constant 1 : i32
    %593 = tpu.dynamic_rotate %576 by %c1_i32_205 dim 0 : vector<16x8xf32>, i32 -> vector<16x8xf32>
    %c15_i32_206 = arith.constant 15 : i32
    %594 = tpu.dynamic_rotate %576 by %c15_i32_206 dim 0 : vector<16x8xf32>, i32 -> vector<16x8xf32>
    %c1_i32_207 = arith.constant 1 : i32
    %595 = tpu.dynamic_rotate %576 by %c1_i32_207 dim 1 : vector<16x8xf32>, i32 -> vector<16x8xf32>
    %c7_i32_208 = arith.constant 7 : i32
    %596 = tpu.dynamic_rotate %576 by %c7_i32_208 dim 1 : vector<16x8xf32>, i32 -> vector<16x8xf32>
    %597 = arith.select %585, %576, %593 : vector<16x8xi1>, vector<16x8xf32>
    %598 = arith.select %588, %576, %594 : vector<16x8xi1>, vector<16x8xf32>
    %599 = arith.select %590, %576, %595 : vector<16x8xi1>, vector<16x8xf32>
    %600 = arith.select %592, %576, %596 : vector<16x8xi1>, vector<16x8xf32>
    %cst_209 = arith.constant 2.000000e+00 : f32
    %601 = vector.broadcast %cst_209 : f32 to vector<16x8xf32>
    %602 = arith.mulf %601, %576 : vector<16x8xf32>
    %603 = arith.addf %597, %602 : vector<16x8xf32>
    %604 = arith.addf %603, %598 : vector<16x8xf32>
    %cst_210 = arith.constant 2.000000e+00 : f32
    %605 = vector.broadcast %cst_210 : f32 to vector<16x8xf32>
    %606 = arith.mulf %605, %576 : vector<16x8xf32>
    %607 = arith.addf %599, %606 : vector<16x8xf32>
    %608 = arith.addf %607, %600 : vector<16x8xf32>
    %c7_i32_211 = arith.constant 7 : i32
    %609 = tpu.dynamic_rotate %604 by %c7_i32_211 dim 1 : vector<16x8xf32>, i32 -> vector<16x8xf32>
    %610 = arith.select %592, %604, %609 : vector<16x8xi1>, vector<16x8xf32>
    %c1_i32_212 = arith.constant 1 : i32
    %611 = tpu.dynamic_rotate %604 by %c1_i32_212 dim 1 : vector<16x8xf32>, i32 -> vector<16x8xf32>
    %612 = arith.select %590, %604, %611 : vector<16x8xi1>, vector<16x8xf32>
    %613 = arith.subf %610, %612 : vector<16x8xf32>
    %cst_213 = arith.constant 1.250000e-01 : f32
    %614 = vector.broadcast %cst_213 : f32 to vector<16x8xf32>
    %615 = arith.mulf %613, %614 : vector<16x8xf32>
    %c15_i32_214 = arith.constant 15 : i32
    %616 = tpu.dynamic_rotate %608 by %c15_i32_214 dim 0 : vector<16x8xf32>, i32 -> vector<16x8xf32>
    %617 = arith.select %588, %608, %616 : vector<16x8xi1>, vector<16x8xf32>
    %c1_i32_215 = arith.constant 1 : i32
    %618 = tpu.dynamic_rotate %608 by %c1_i32_215 dim 0 : vector<16x8xf32>, i32 -> vector<16x8xf32>
    %619 = arith.select %585, %608, %618 : vector<16x8xi1>, vector<16x8xf32>
    %620 = arith.subf %617, %619 : vector<16x8xf32>
    %cst_216 = arith.constant 1.250000e-01 : f32
    %621 = vector.broadcast %cst_216 : f32 to vector<16x8xf32>
    %622 = arith.mulf %620, %621 : vector<16x8xf32>
    %c8_i32_217 = arith.constant 8 : i32
    %623 = tpu.dynamic_rotate %615 by %c8_i32_217 dim 0 : vector<16x8xf32>, i32 -> vector<16x8xf32>
    %c8_i32_218 = arith.constant 8 : i32
    %624 = tpu.dynamic_rotate %622 by %c8_i32_218 dim 0 : vector<16x8xf32>, i32 -> vector<16x8xf32>
    %625 = arith.subf %615, %623 : vector<16x8xf32>
    %626 = math.absf %625 : vector<16x8xf32>
    %627 = arith.subf %622, %624 : vector<16x8xf32>
    %628 = math.absf %627 : vector<16x8xf32>
    %cst_219 = arith.constant 0.000000e+00 : f32
    %629 = vector.broadcast %cst_219 : f32 to vector<16x8xf32>
    %630 = arith.cmpf one, %623, %629 : vector<16x8xf32>
    %cst_220 = arith.constant 0.000000e+00 : f32
    %631 = vector.broadcast %cst_220 : f32 to vector<16x8xf32>
    %632 = arith.cmpf one, %624, %631 : vector<16x8xf32>
    %c8_i32_221 = arith.constant 8 : i32
    %633 = vector.broadcast %c8_i32_221 : i32 to vector<16x8xi32>
    %634 = arith.cmpi slt, %577, %633 : vector<16x8xi32>
    %635 = arith.extui %634 : vector<16x8xi1> to vector<16x8xi32>
    %636 = arith.sitofp %635 : vector<16x8xi32> to vector<16x8xf32>
    %637 = arith.extui %630 : vector<16x8xi1> to vector<16x8xi32>
    %638 = arith.sitofp %637 : vector<16x8xi32> to vector<16x8xf32>
    %639 = arith.mulf %638, %636 : vector<16x8xf32>
    %640 = arith.extui %632 : vector<16x8xi1> to vector<16x8xi32>
    %641 = arith.sitofp %640 : vector<16x8xi32> to vector<16x8xf32>
    %642 = arith.mulf %641, %636 : vector<16x8xf32>
    %643 = arith.mulf %639, %626 : vector<16x8xf32>
    %644 = arith.mulf %642, %628 : vector<16x8xf32>
    %645 = arith.addf %643, %644 : vector<16x8xf32>
    %646 = vector.shape_cast %645 : vector<16x8xf32> to vector<1x16x8xf32>
    %cst_222 = arith.constant dense<0.000000e+00> : vector<1xf32>
    %647 = vector.multi_reduction <add>, %646, %cst_222 [1, 2] : vector<1x16x8xf32> to vector<1xf32>
    %648 = vector.shape_cast %647 : vector<1xf32> to vector<1x1x1xf32>
    %649 = vector.extract %648[0, 0, 0] : f32 from vector<1x1x1xf32>
    %650 = arith.addf %198, %649 : f32
    %651 = arith.addf %639, %642 : vector<16x8xf32>
    %652 = vector.shape_cast %651 : vector<16x8xf32> to vector<1x16x8xf32>
    %cst_223 = arith.constant dense<0.000000e+00> : vector<1xf32>
    %653 = vector.multi_reduction <add>, %652, %cst_223 [1, 2] : vector<1x16x8xf32> to vector<1xf32>
    %654 = vector.shape_cast %653 : vector<1xf32> to vector<1x1x1xf32>
    %655 = vector.extract %654[0, 0, 0] : f32 from vector<1x1x1xf32>
    %cst_224 = arith.constant 1.000000e+00 : f32
    %656 = arith.mulf %cst_224, %655 : f32
    %657 = arith.addf %205, %656 : f32
    %cst_225 = arith.constant 0.000000e+00 : f32
    %658 = vector.broadcast %cst_225 : f32 to vector<16x8xf32>
    %659 = arith.select %585, %658, %593 : vector<16x8xi1>, vector<16x8xf32>
    %cst_226 = arith.constant 0.000000e+00 : f32
    %660 = vector.broadcast %cst_226 : f32 to vector<16x8xf32>
    %661 = arith.select %588, %660, %594 : vector<16x8xi1>, vector<16x8xf32>
    %662 = arith.addf %659, %661 : vector<16x8xf32>
    %cst_227 = arith.constant 2.500000e-01 : f32
    %663 = vector.broadcast %cst_227 : f32 to vector<16x8xf32>
    %664 = arith.mulf %663, %662 : vector<16x8xf32>
    %cst_228 = arith.constant 5.000000e-01 : f32
    %665 = vector.broadcast %cst_228 : f32 to vector<16x8xf32>
    %666 = arith.mulf %665, %576 : vector<16x8xf32>
    %667 = arith.addf %664, %666 : vector<16x8xf32>
    %c0_229 = arith.constant 0 : index
    %c0_230 = arith.constant 0 : index
    %668 = vector.load %arg3[%c0_229, %c0_230] : memref<32x16xf32, #tpu.memory_space<vmem>>, vector<16x8xf32>
    tpu.vector_store %arg3[%c0_229, %c0_230], %667 {strides = array<i32>} : memref<32x16xf32, #tpu.memory_space<vmem>>, vector<16x8xf32>,
    %c0_231 = arith.constant 0 : index
    %c0_232 = arith.constant 0 : index
    %669 = tpu.strided_load %arg3[%c0_231, %c0_232] {strides = array<i32: 2, 1>} : memref<32x16xf32, #tpu.memory_space<vmem>>, vector<8x8xf32>
    %670 = tpu.iota {dimensions = array<i32: 0>} : vector<8x4xi32>
    %671 = tpu.iota {dimensions = array<i32: 1>} : vector<8x4xi32>
    %c2_i32_233 = arith.constant 2 : i32
    %672 = vector.broadcast %c2_i32_233 : i32 to vector<8x4xi32>
    %673 = arith.muli %672, %671 : vector<8x4xi32>
    %674 = arith.cmpi eq, %670, %673 : vector<8x4xi32>
    %675 = arith.extui %674 : vector<8x4xi1> to vector<8x4xi32>
    %676 = arith.sitofp %675 : vector<8x4xi32> to vector<8x4xf32>
    %cst_234 = arith.constant 5.000000e-01 : f32
    %677 = vector.broadcast %cst_234 : f32 to vector<8x4xf32>
    %678 = arith.mulf %677, %676 : vector<8x4xf32>
    %c2_i32_235 = arith.constant 2 : i32
    %679 = vector.broadcast %c2_i32_235 : i32 to vector<8x4xi32>
    %680 = arith.muli %679, %671 : vector<8x4xi32>
    %c1_i32_236 = arith.constant 1 : i32
    %681 = vector.broadcast %c1_i32_236 : i32 to vector<8x4xi32>
    %682 = arith.subi %680, %681 : vector<8x4xi32>
    %683 = arith.cmpi eq, %670, %682 : vector<8x4xi32>
    %684 = arith.extui %683 : vector<8x4xi1> to vector<8x4xi32>
    %685 = arith.sitofp %684 : vector<8x4xi32> to vector<8x4xf32>
    %cst_237 = arith.constant 2.500000e-01 : f32
    %686 = vector.broadcast %cst_237 : f32 to vector<8x4xf32>
    %687 = arith.mulf %686, %685 : vector<8x4xf32>
    %688 = arith.addf %678, %687 : vector<8x4xf32>
    %c2_i32_238 = arith.constant 2 : i32
    %689 = vector.broadcast %c2_i32_238 : i32 to vector<8x4xi32>
    %690 = arith.muli %689, %671 : vector<8x4xi32>
    %c1_i32_239 = arith.constant 1 : i32
    %691 = vector.broadcast %c1_i32_239 : i32 to vector<8x4xi32>
    %692 = arith.addi %690, %691 : vector<8x4xi32>
    %693 = arith.cmpi eq, %670, %692 : vector<8x4xi32>
    %694 = arith.extui %693 : vector<8x4xi1> to vector<8x4xi32>
    %695 = arith.sitofp %694 : vector<8x4xi32> to vector<8x4xf32>
    %cst_240 = arith.constant 2.500000e-01 : f32
    %696 = vector.broadcast %cst_240 : f32 to vector<8x4xf32>
    %697 = arith.mulf %696, %695 : vector<8x4xf32>
    %698 = arith.addf %688, %697 : vector<8x4xf32>
    %cst_241 = arith.constant dense<0.000000e+00> : vector<8x4xf32>
    %699 = tpu.matmul %669, %698, %cst_241 {dimension_numbers = #tpu.dot_dimension_numbers<[1], [0], [0], [1], [0, 0, 1, 1], [], []>, precision = #tpu.contract_precision<fp32>} : vector<8x8xf32>, vector<8x4xf32>, vector<8x4xf32> -> vector<8x4xf32>
    %700 = tpu.iota {dimensions = array<i32: 0>} : vector<8x4xi32>
    %701 = tpu.iota {dimensions = array<i32: 1>} : vector<8x4xi32>
    %c0_i32_242 = arith.constant 0 : i32
    %702 = vector.broadcast %c0_i32_242 : i32 to vector<8x4xi32>
    %703 = arith.cmpi eq, %700, %702 : vector<8x4xi32>
    %c3_i32_243 = arith.constant 3 : i32
    %704 = vector.broadcast %c3_i32_243 : i32 to vector<8x4xi32>
    %705 = arith.cmpi eq, %700, %704 : vector<8x4xi32>
    %c4_i32_244 = arith.constant 4 : i32
    %706 = vector.broadcast %c4_i32_244 : i32 to vector<8x4xi32>
    %707 = arith.cmpi eq, %700, %706 : vector<8x4xi32>
    %708 = arith.ori %703, %707 : vector<8x4xi1>
    %c7_i32_245 = arith.constant 7 : i32
    %709 = vector.broadcast %c7_i32_245 : i32 to vector<8x4xi32>
    %710 = arith.cmpi eq, %700, %709 : vector<8x4xi32>
    %711 = arith.ori %705, %710 : vector<8x4xi1>
    %c0_i32_246 = arith.constant 0 : i32
    %712 = vector.broadcast %c0_i32_246 : i32 to vector<8x4xi32>
    %713 = arith.cmpi eq, %701, %712 : vector<8x4xi32>
    %c3_i32_247 = arith.constant 3 : i32
    %714 = vector.broadcast %c3_i32_247 : i32 to vector<8x4xi32>
    %715 = arith.cmpi eq, %701, %714 : vector<8x4xi32>
    %c1_i32_248 = arith.constant 1 : i32
    %716 = tpu.dynamic_rotate %699 by %c1_i32_248 dim 0 : vector<8x4xf32>, i32 -> vector<8x4xf32>
    %c7_i32_249 = arith.constant 7 : i32
    %717 = tpu.dynamic_rotate %699 by %c7_i32_249 dim 0 : vector<8x4xf32>, i32 -> vector<8x4xf32>
    %c1_i32_250 = arith.constant 1 : i32
    %718 = tpu.dynamic_rotate %699 by %c1_i32_250 dim 1 : vector<8x4xf32>, i32 -> vector<8x4xf32>
    %c3_i32_251 = arith.constant 3 : i32
    %719 = tpu.dynamic_rotate %699 by %c3_i32_251 dim 1 : vector<8x4xf32>, i32 -> vector<8x4xf32>
    %720 = arith.select %708, %699, %716 : vector<8x4xi1>, vector<8x4xf32>
    %721 = arith.select %711, %699, %717 : vector<8x4xi1>, vector<8x4xf32>
    %722 = arith.select %713, %699, %718 : vector<8x4xi1>, vector<8x4xf32>
    %723 = arith.select %715, %699, %719 : vector<8x4xi1>, vector<8x4xf32>
    %cst_252 = arith.constant 2.000000e+00 : f32
    %724 = vector.broadcast %cst_252 : f32 to vector<8x4xf32>
    %725 = arith.mulf %724, %699 : vector<8x4xf32>
    %726 = arith.addf %720, %725 : vector<8x4xf32>
    %727 = arith.addf %726, %721 : vector<8x4xf32>
    %cst_253 = arith.constant 2.000000e+00 : f32
    %728 = vector.broadcast %cst_253 : f32 to vector<8x4xf32>
    %729 = arith.mulf %728, %699 : vector<8x4xf32>
    %730 = arith.addf %722, %729 : vector<8x4xf32>
    %731 = arith.addf %730, %723 : vector<8x4xf32>
    %c3_i32_254 = arith.constant 3 : i32
    %732 = tpu.dynamic_rotate %727 by %c3_i32_254 dim 1 : vector<8x4xf32>, i32 -> vector<8x4xf32>
    %733 = arith.select %715, %727, %732 : vector<8x4xi1>, vector<8x4xf32>
    %c1_i32_255 = arith.constant 1 : i32
    %734 = tpu.dynamic_rotate %727 by %c1_i32_255 dim 1 : vector<8x4xf32>, i32 -> vector<8x4xf32>
    %735 = arith.select %713, %727, %734 : vector<8x4xi1>, vector<8x4xf32>
    %736 = arith.subf %733, %735 : vector<8x4xf32>
    %cst_256 = arith.constant 1.250000e-01 : f32
    %737 = vector.broadcast %cst_256 : f32 to vector<8x4xf32>
    %738 = arith.mulf %736, %737 : vector<8x4xf32>
    %c7_i32_257 = arith.constant 7 : i32
    %739 = tpu.dynamic_rotate %731 by %c7_i32_257 dim 0 : vector<8x4xf32>, i32 -> vector<8x4xf32>
    %740 = arith.select %711, %731, %739 : vector<8x4xi1>, vector<8x4xf32>
    %c1_i32_258 = arith.constant 1 : i32
    %741 = tpu.dynamic_rotate %731 by %c1_i32_258 dim 0 : vector<8x4xf32>, i32 -> vector<8x4xf32>
    %742 = arith.select %708, %731, %741 : vector<8x4xi1>, vector<8x4xf32>
    %743 = arith.subf %740, %742 : vector<8x4xf32>
    %cst_259 = arith.constant 1.250000e-01 : f32
    %744 = vector.broadcast %cst_259 : f32 to vector<8x4xf32>
    %745 = arith.mulf %743, %744 : vector<8x4xf32>
    %c4_i32_260 = arith.constant 4 : i32
    %746 = tpu.dynamic_rotate %738 by %c4_i32_260 dim 0 : vector<8x4xf32>, i32 -> vector<8x4xf32>
    %c4_i32_261 = arith.constant 4 : i32
    %747 = tpu.dynamic_rotate %745 by %c4_i32_261 dim 0 : vector<8x4xf32>, i32 -> vector<8x4xf32>
    %748 = arith.subf %738, %746 : vector<8x4xf32>
    %749 = math.absf %748 : vector<8x4xf32>
    %750 = arith.subf %745, %747 : vector<8x4xf32>
    %751 = math.absf %750 : vector<8x4xf32>
    %cst_262 = arith.constant 0.000000e+00 : f32
    %752 = vector.broadcast %cst_262 : f32 to vector<8x4xf32>
    %753 = arith.cmpf one, %746, %752 : vector<8x4xf32>
    %cst_263 = arith.constant 0.000000e+00 : f32
    %754 = vector.broadcast %cst_263 : f32 to vector<8x4xf32>
    %755 = arith.cmpf one, %747, %754 : vector<8x4xf32>
    %c4_i32_264 = arith.constant 4 : i32
    %756 = vector.broadcast %c4_i32_264 : i32 to vector<8x4xi32>
    %757 = arith.cmpi slt, %700, %756 : vector<8x4xi32>
    %758 = arith.extui %757 : vector<8x4xi1> to vector<8x4xi32>
    %759 = arith.sitofp %758 : vector<8x4xi32> to vector<8x4xf32>
    %760 = arith.extui %753 : vector<8x4xi1> to vector<8x4xi32>
    %761 = arith.sitofp %760 : vector<8x4xi32> to vector<8x4xf32>
    %762 = arith.mulf %761, %759 : vector<8x4xf32>
    %763 = arith.extui %755 : vector<8x4xi1> to vector<8x4xi32>
    %764 = arith.sitofp %763 : vector<8x4xi32> to vector<8x4xf32>
    %765 = arith.mulf %764, %759 : vector<8x4xf32>
    %766 = arith.mulf %762, %749 : vector<8x4xf32>
    %767 = arith.mulf %765, %751 : vector<8x4xf32>
    %768 = arith.addf %766, %767 : vector<8x4xf32>
    %769 = vector.shape_cast %768 : vector<8x4xf32> to vector<1x8x4xf32>
    %cst_265 = arith.constant dense<0.000000e+00> : vector<1xf32>
    %770 = vector.multi_reduction <add>, %769, %cst_265 [1, 2] : vector<1x8x4xf32> to vector<1xf32>
    %771 = vector.shape_cast %770 : vector<1xf32> to vector<1x1x1xf32>
    %772 = vector.extract %771[0, 0, 0] : f32 from vector<1x1x1xf32>
    %773 = arith.addf %321, %772 : f32
    %774 = arith.addf %762, %765 : vector<8x4xf32>
    %775 = vector.shape_cast %774 : vector<8x4xf32> to vector<1x8x4xf32>
    %cst_266 = arith.constant dense<0.000000e+00> : vector<1xf32>
    %776 = vector.multi_reduction <add>, %775, %cst_266 [1, 2] : vector<1x8x4xf32> to vector<1xf32>
    %777 = vector.shape_cast %776 : vector<1xf32> to vector<1x1x1xf32>
    %778 = vector.extract %777[0, 0, 0] : f32 from vector<1x1x1xf32>
    %cst_267 = arith.constant 1.000000e+00 : f32
    %779 = arith.mulf %cst_267, %778 : f32
    %780 = arith.addf %328, %779 : f32
    %cst_268 = arith.constant 0.000000e+00 : f32
    %781 = vector.broadcast %cst_268 : f32 to vector<8x4xf32>
    %782 = arith.select %708, %781, %716 : vector<8x4xi1>, vector<8x4xf32>
    %cst_269 = arith.constant 0.000000e+00 : f32
    %783 = vector.broadcast %cst_269 : f32 to vector<8x4xf32>
    %784 = arith.select %711, %783, %717 : vector<8x4xi1>, vector<8x4xf32>
    %785 = arith.addf %782, %784 : vector<8x4xf32>
    %cst_270 = arith.constant 2.500000e-01 : f32
    %786 = vector.broadcast %cst_270 : f32 to vector<8x4xf32>
    %787 = arith.mulf %786, %785 : vector<8x4xf32>
    %cst_271 = arith.constant 5.000000e-01 : f32
    %788 = vector.broadcast %cst_271 : f32 to vector<8x4xf32>
    %789 = arith.mulf %788, %699 : vector<8x4xf32>
    %790 = arith.addf %787, %789 : vector<8x4xf32>
    %c0_272 = arith.constant 0 : index
    %c0_273 = arith.constant 0 : index
    %791 = vector.load %arg3[%c0_272, %c0_273] : memref<32x16xf32, #tpu.memory_space<vmem>>, vector<8x4xf32>
    tpu.vector_store %arg3[%c0_272, %c0_273], %790 {strides = array<i32>} : memref<32x16xf32, #tpu.memory_space<vmem>>, vector<8x4xf32>,
    %c0_274 = arith.constant 0 : index
    %c0_275 = arith.constant 0 : index
    %792 = tpu.strided_load %arg3[%c0_274, %c0_275] {strides = array<i32: 2, 1>} : memref<32x16xf32, #tpu.memory_space<vmem>>, vector<4x4xf32>
    %793 = tpu.iota {dimensions = array<i32: 0>} : vector<4x2xi32>
    %794 = tpu.iota {dimensions = array<i32: 1>} : vector<4x2xi32>
    %c2_i32_276 = arith.constant 2 : i32
    %795 = vector.broadcast %c2_i32_276 : i32 to vector<4x2xi32>
    %796 = arith.muli %795, %794 : vector<4x2xi32>
    %797 = arith.cmpi eq, %793, %796 : vector<4x2xi32>
    %798 = arith.extui %797 : vector<4x2xi1> to vector<4x2xi32>
    %799 = arith.sitofp %798 : vector<4x2xi32> to vector<4x2xf32>
    %cst_277 = arith.constant 5.000000e-01 : f32
    %800 = vector.broadcast %cst_277 : f32 to vector<4x2xf32>
    %801 = arith.mulf %800, %799 : vector<4x2xf32>
    %c2_i32_278 = arith.constant 2 : i32
    %802 = vector.broadcast %c2_i32_278 : i32 to vector<4x2xi32>
    %803 = arith.muli %802, %794 : vector<4x2xi32>
    %c1_i32_279 = arith.constant 1 : i32
    %804 = vector.broadcast %c1_i32_279 : i32 to vector<4x2xi32>
    %805 = arith.subi %803, %804 : vector<4x2xi32>
    %806 = arith.cmpi eq, %793, %805 : vector<4x2xi32>
    %807 = arith.extui %806 : vector<4x2xi1> to vector<4x2xi32>
    %808 = arith.sitofp %807 : vector<4x2xi32> to vector<4x2xf32>
    %cst_280 = arith.constant 2.500000e-01 : f32
    %809 = vector.broadcast %cst_280 : f32 to vector<4x2xf32>
    %810 = arith.mulf %809, %808 : vector<4x2xf32>
    %811 = arith.addf %801, %810 : vector<4x2xf32>
    %c2_i32_281 = arith.constant 2 : i32
    %812 = vector.broadcast %c2_i32_281 : i32 to vector<4x2xi32>
    %813 = arith.muli %812, %794 : vector<4x2xi32>
    %c1_i32_282 = arith.constant 1 : i32
    %814 = vector.broadcast %c1_i32_282 : i32 to vector<4x2xi32>
    %815 = arith.addi %813, %814 : vector<4x2xi32>
    %816 = arith.cmpi eq, %793, %815 : vector<4x2xi32>
    %817 = arith.extui %816 : vector<4x2xi1> to vector<4x2xi32>
    %818 = arith.sitofp %817 : vector<4x2xi32> to vector<4x2xf32>
    %cst_283 = arith.constant 2.500000e-01 : f32
    %819 = vector.broadcast %cst_283 : f32 to vector<4x2xf32>
    %820 = arith.mulf %819, %818 : vector<4x2xf32>
    %821 = arith.addf %811, %820 : vector<4x2xf32>
    %cst_284 = arith.constant dense<0.000000e+00> : vector<4x2xf32>
    %822 = tpu.matmul %792, %821, %cst_284 {dimension_numbers = #tpu.dot_dimension_numbers<[1], [0], [0], [1], [0, 0, 1, 1], [], []>, precision = #tpu.contract_precision<fp32>} : vector<4x4xf32>, vector<4x2xf32>, vector<4x2xf32> -> vector<4x2xf32>
    %823 = tpu.iota {dimensions = array<i32: 0>} : vector<4x2xi32>
    %824 = tpu.iota {dimensions = array<i32: 1>} : vector<4x2xi32>
    %c0_i32_285 = arith.constant 0 : i32
    %825 = vector.broadcast %c0_i32_285 : i32 to vector<4x2xi32>
    %826 = arith.cmpi eq, %823, %825 : vector<4x2xi32>
    %c1_i32_286 = arith.constant 1 : i32
    %827 = vector.broadcast %c1_i32_286 : i32 to vector<4x2xi32>
    %828 = arith.cmpi eq, %823, %827 : vector<4x2xi32>
    %c2_i32_287 = arith.constant 2 : i32
    %829 = vector.broadcast %c2_i32_287 : i32 to vector<4x2xi32>
    %830 = arith.cmpi eq, %823, %829 : vector<4x2xi32>
    %831 = arith.ori %826, %830 : vector<4x2xi1>
    %c3_i32_288 = arith.constant 3 : i32
    %832 = vector.broadcast %c3_i32_288 : i32 to vector<4x2xi32>
    %833 = arith.cmpi eq, %823, %832 : vector<4x2xi32>
    %834 = arith.ori %828, %833 : vector<4x2xi1>
    %c0_i32_289 = arith.constant 0 : i32
    %835 = vector.broadcast %c0_i32_289 : i32 to vector<4x2xi32>
    %836 = arith.cmpi eq, %824, %835 : vector<4x2xi32>
    %c1_i32_290 = arith.constant 1 : i32
    %837 = vector.broadcast %c1_i32_290 : i32 to vector<4x2xi32>
    %838 = arith.cmpi eq, %824, %837 : vector<4x2xi32>
    %c1_i32_291 = arith.constant 1 : i32
    %839 = tpu.dynamic_rotate %822 by %c1_i32_291 dim 0 : vector<4x2xf32>, i32 -> vector<4x2xf32>
    %c3_i32_292 = arith.constant 3 : i32
    %840 = tpu.dynamic_rotate %822 by %c3_i32_292 dim 0 : vector<4x2xf32>, i32 -> vector<4x2xf32>
    %c1_i32_293 = arith.constant 1 : i32
    %841 = tpu.dynamic_rotate %822 by %c1_i32_293 dim 1 : vector<4x2xf32>, i32 -> vector<4x2xf32>
    %c1_i32_294 = arith.constant 1 : i32
    %842 = tpu.dynamic_rotate %822 by %c1_i32_294 dim 1 : vector<4x2xf32>, i32 -> vector<4x2xf32>
    %843 = arith.select %831, %822, %839 : vector<4x2xi1>, vector<4x2xf32>
    %844 = arith.select %834, %822, %840 : vector<4x2xi1>, vector<4x2xf32>
    %845 = arith.select %836, %822, %841 : vector<4x2xi1>, vector<4x2xf32>
    %846 = arith.select %838, %822, %842 : vector<4x2xi1>, vector<4x2xf32>
    %cst_295 = arith.constant 2.000000e+00 : f32
    %847 = vector.broadcast %cst_295 : f32 to vector<4x2xf32>
    %848 = arith.mulf %847, %822 : vector<4x2xf32>
    %849 = arith.addf %843, %848 : vector<4x2xf32>
    %850 = arith.addf %849, %844 : vector<4x2xf32>
    %cst_296 = arith.constant 2.000000e+00 : f32
    %851 = vector.broadcast %cst_296 : f32 to vector<4x2xf32>
    %852 = arith.mulf %851, %822 : vector<4x2xf32>
    %853 = arith.addf %845, %852 : vector<4x2xf32>
    %854 = arith.addf %853, %846 : vector<4x2xf32>
    %c1_i32_297 = arith.constant 1 : i32
    %855 = tpu.dynamic_rotate %850 by %c1_i32_297 dim 1 : vector<4x2xf32>, i32 -> vector<4x2xf32>
    %856 = arith.select %838, %850, %855 : vector<4x2xi1>, vector<4x2xf32>
    %c1_i32_298 = arith.constant 1 : i32
    %857 = tpu.dynamic_rotate %850 by %c1_i32_298 dim 1 : vector<4x2xf32>, i32 -> vector<4x2xf32>
    %858 = arith.select %836, %850, %857 : vector<4x2xi1>, vector<4x2xf32>
    %859 = arith.subf %856, %858 : vector<4x2xf32>
    %cst_299 = arith.constant 1.250000e-01 : f32
    %860 = vector.broadcast %cst_299 : f32 to vector<4x2xf32>
    %861 = arith.mulf %859, %860 : vector<4x2xf32>
    %c3_i32_300 = arith.constant 3 : i32
    %862 = tpu.dynamic_rotate %854 by %c3_i32_300 dim 0 : vector<4x2xf32>, i32 -> vector<4x2xf32>
    %863 = arith.select %834, %854, %862 : vector<4x2xi1>, vector<4x2xf32>
    %c1_i32_301 = arith.constant 1 : i32
    %864 = tpu.dynamic_rotate %854 by %c1_i32_301 dim 0 : vector<4x2xf32>, i32 -> vector<4x2xf32>
    %865 = arith.select %831, %854, %864 : vector<4x2xi1>, vector<4x2xf32>
    %866 = arith.subf %863, %865 : vector<4x2xf32>
    %cst_302 = arith.constant 1.250000e-01 : f32
    %867 = vector.broadcast %cst_302 : f32 to vector<4x2xf32>
    %868 = arith.mulf %866, %867 : vector<4x2xf32>
    %c2_i32_303 = arith.constant 2 : i32
    %869 = tpu.dynamic_rotate %861 by %c2_i32_303 dim 0 : vector<4x2xf32>, i32 -> vector<4x2xf32>
    %c2_i32_304 = arith.constant 2 : i32
    %870 = tpu.dynamic_rotate %868 by %c2_i32_304 dim 0 : vector<4x2xf32>, i32 -> vector<4x2xf32>
    %871 = arith.subf %861, %869 : vector<4x2xf32>
    %872 = math.absf %871 : vector<4x2xf32>
    %873 = arith.subf %868, %870 : vector<4x2xf32>
    %874 = math.absf %873 : vector<4x2xf32>
    %cst_305 = arith.constant 0.000000e+00 : f32
    %875 = vector.broadcast %cst_305 : f32 to vector<4x2xf32>
    %876 = arith.cmpf one, %869, %875 : vector<4x2xf32>
    %cst_306 = arith.constant 0.000000e+00 : f32
    %877 = vector.broadcast %cst_306 : f32 to vector<4x2xf32>
    %878 = arith.cmpf one, %870, %877 : vector<4x2xf32>
    %c2_i32_307 = arith.constant 2 : i32
    %879 = vector.broadcast %c2_i32_307 : i32 to vector<4x2xi32>
    %880 = arith.cmpi slt, %823, %879 : vector<4x2xi32>
    %881 = arith.extui %880 : vector<4x2xi1> to vector<4x2xi32>
    %882 = arith.sitofp %881 : vector<4x2xi32> to vector<4x2xf32>
    %883 = arith.extui %876 : vector<4x2xi1> to vector<4x2xi32>
    %884 = arith.sitofp %883 : vector<4x2xi32> to vector<4x2xf32>
    %885 = arith.mulf %884, %882 : vector<4x2xf32>
    %886 = arith.extui %878 : vector<4x2xi1> to vector<4x2xi32>
    %887 = arith.sitofp %886 : vector<4x2xi32> to vector<4x2xf32>
    %888 = arith.mulf %887, %882 : vector<4x2xf32>
    %889 = arith.mulf %885, %872 : vector<4x2xf32>
    %890 = arith.mulf %888, %874 : vector<4x2xf32>
    %891 = arith.addf %889, %890 : vector<4x2xf32>
    %892 = vector.shape_cast %891 : vector<4x2xf32> to vector<1x4x2xf32>
    %cst_308 = arith.constant dense<0.000000e+00> : vector<1xf32>
    %893 = vector.multi_reduction <add>, %892, %cst_308 [1, 2] : vector<1x4x2xf32> to vector<1xf32>
    %894 = vector.shape_cast %893 : vector<1xf32> to vector<1x1x1xf32>
    %895 = vector.extract %894[0, 0, 0] : f32 from vector<1x1x1xf32>
    %896 = arith.addf %444, %895 : f32
    %897 = arith.addf %885, %888 : vector<4x2xf32>
    %898 = vector.shape_cast %897 : vector<4x2xf32> to vector<1x4x2xf32>
    %cst_309 = arith.constant dense<0.000000e+00> : vector<1xf32>
    %899 = vector.multi_reduction <add>, %898, %cst_309 [1, 2] : vector<1x4x2xf32> to vector<1xf32>
    %900 = vector.shape_cast %899 : vector<1xf32> to vector<1x1x1xf32>
    %901 = vector.extract %900[0, 0, 0] : f32 from vector<1x1x1xf32>
    %cst_310 = arith.constant 1.000000e+00 : f32
    %902 = arith.mulf %cst_310, %901 : f32
    %903 = arith.addf %451, %902 : f32
    %cst_311 = arith.constant 0.000000e+00 : f32
    %904 = vector.broadcast %cst_311 : f32 to vector<8x128xf32>
    %905 = tpu.iota {dimensions = array<i32: 0>} : vector<8x128xi32>
    %c0_i32_312 = arith.constant 0 : i32
    %906 = vector.broadcast %c0_i32_312 : i32 to vector<8x128xi32>
    %907 = arith.cmpi eq, %905, %906 : vector<8x128xi32>
    %cst_313 = arith.constant 0.000000e+00 : f32
    %908 = vector.broadcast %527 : f32 to vector<8x128xf32>
    %909 = vector.broadcast %cst_313 : f32 to vector<8x128xf32>
    %910 = arith.select %907, %908, %909 : vector<8x128xi1>, vector<8x128xf32>
    %911 = arith.addf %904, %910 : vector<8x128xf32>
    %c4_i32_314 = arith.constant 4 : i32
    %912 = vector.broadcast %c4_i32_314 : i32 to vector<8x128xi32>
    %913 = arith.cmpi eq, %905, %912 : vector<8x128xi32>
    %cst_315 = arith.constant 0.000000e+00 : f32
    %914 = vector.broadcast %534 : f32 to vector<8x128xf32>
    %915 = vector.broadcast %cst_315 : f32 to vector<8x128xf32>
    %916 = arith.select %913, %914, %915 : vector<8x128xi1>, vector<8x128xf32>
    %917 = arith.addf %911, %916 : vector<8x128xf32>
    %c1_i32_316 = arith.constant 1 : i32
    %918 = vector.broadcast %c1_i32_316 : i32 to vector<8x128xi32>
    %919 = arith.cmpi eq, %905, %918 : vector<8x128xi32>
    %cst_317 = arith.constant 0.000000e+00 : f32
    %920 = vector.broadcast %650 : f32 to vector<8x128xf32>
    %921 = vector.broadcast %cst_317 : f32 to vector<8x128xf32>
    %922 = arith.select %919, %920, %921 : vector<8x128xi1>, vector<8x128xf32>
    %923 = arith.addf %917, %922 : vector<8x128xf32>
    %c5_i32 = arith.constant 5 : i32
    %924 = vector.broadcast %c5_i32 : i32 to vector<8x128xi32>
    %925 = arith.cmpi eq, %905, %924 : vector<8x128xi32>
    %cst_318 = arith.constant 0.000000e+00 : f32
    %926 = vector.broadcast %657 : f32 to vector<8x128xf32>
    %927 = vector.broadcast %cst_318 : f32 to vector<8x128xf32>
    %928 = arith.select %925, %926, %927 : vector<8x128xi1>, vector<8x128xf32>
    %929 = arith.addf %923, %928 : vector<8x128xf32>
    %c2_i32_319 = arith.constant 2 : i32
    %930 = vector.broadcast %c2_i32_319 : i32 to vector<8x128xi32>
    %931 = arith.cmpi eq, %905, %930 : vector<8x128xi32>
    %cst_320 = arith.constant 0.000000e+00 : f32
    %932 = vector.broadcast %773 : f32 to vector<8x128xf32>
    %933 = vector.broadcast %cst_320 : f32 to vector<8x128xf32>
    %934 = arith.select %931, %932, %933 : vector<8x128xi1>, vector<8x128xf32>
    %935 = arith.addf %929, %934 : vector<8x128xf32>
    %c6_i32 = arith.constant 6 : i32
    %936 = vector.broadcast %c6_i32 : i32 to vector<8x128xi32>
    %937 = arith.cmpi eq, %905, %936 : vector<8x128xi32>
    %cst_321 = arith.constant 0.000000e+00 : f32
    %938 = vector.broadcast %780 : f32 to vector<8x128xf32>
    %939 = vector.broadcast %cst_321 : f32 to vector<8x128xf32>
    %940 = arith.select %937, %938, %939 : vector<8x128xi1>, vector<8x128xf32>
    %941 = arith.addf %935, %940 : vector<8x128xf32>
    %c3_i32_322 = arith.constant 3 : i32
    %942 = vector.broadcast %c3_i32_322 : i32 to vector<8x128xi32>
    %943 = arith.cmpi eq, %905, %942 : vector<8x128xi32>
    %cst_323 = arith.constant 0.000000e+00 : f32
    %944 = vector.broadcast %896 : f32 to vector<8x128xf32>
    %945 = vector.broadcast %cst_323 : f32 to vector<8x128xf32>
    %946 = arith.select %943, %944, %945 : vector<8x128xi1>, vector<8x128xf32>
    %947 = arith.addf %941, %946 : vector<8x128xf32>
    %c7_i32_324 = arith.constant 7 : i32
    %948 = vector.broadcast %c7_i32_324 : i32 to vector<8x128xi32>
    %949 = arith.cmpi eq, %905, %948 : vector<8x128xi32>
    %cst_325 = arith.constant 0.000000e+00 : f32
    %950 = vector.broadcast %903 : f32 to vector<8x128xf32>
    %951 = vector.broadcast %cst_325 : f32 to vector<8x128xf32>
    %952 = arith.select %949, %950, %951 : vector<8x128xi1>, vector<8x128xf32>
    %953 = arith.addf %947, %952 : vector<8x128xf32>
    %c0_326 = arith.constant 0 : index
    %c0_327 = arith.constant 0 : index
    %c0_328 = arith.constant 0 : index
    %954 = vector.load %arg2[%c0_326, %c0_327, %c0_328] : memref<1x8x128xf32, #tpu.memory_space<vmem>>, vector<1x8x128xf32>
    %955 = vector.shape_cast %954 : vector<1x8x128xf32> to vector<8x128xf32>
    %956 = vector.shape_cast %953 : vector<8x128xf32> to vector<1x8x128xf32>
    tpu.vector_store %arg2[%c0_326, %c0_327, %c0_328], %956 {strides = array<i32>} : memref<1x8x128xf32, #tpu.memory_space<vmem>>, vector<1x8x128xf32>,
    return
  }
  func.func @transform_0(%arg0: i32) -> (i32, i32, i32) {
    %c0_i32 = arith.constant 0 : i32
    %c0_i32_0 = arith.constant 0 : i32
    %c0_i32_1 = arith.constant 0 : i32
    return %arg0, %c0_i32, %c0_i32_0 : i32, i32, i32
  }
  func.func @transform_1(%arg0: i32) -> (i32, i32, i32) {
    %c0_i32 = arith.constant 0 : i32
    %c0_i32_0 = arith.constant 0 : i32
    %c0_i32_1 = arith.constant 0 : i32
    return %arg0, %c0_i32, %c0_i32_0 : i32, i32, i32
  }
}

</mosaic_0001>

<llo_original>
// kernel: ms_gradient_loss.1
$region0: #{ms_gradient_loss.1}
  #allocation0 [shape = 'u32[]', space=smem, size = 0x4, offset = 0x4, fixed_abs, tag = 'smem constant byte address 0x4 - core index']
  #allocation1 [shape = 'u32[144,128]{1,0:T(1,128)}', space=vmem, size = 0x12000, scoped, tag = 'internal scratch']
  #allocation2 [shape = 'f32[32,16]{1,0:T(8,128)}', space=vmem, size = 0x4000, scoped, tag = 'scratch operand']
  %s0 = inlined_call_operand.vmem [shape: f32[2,32,16], index: 0, kind: input, shape index: {}]
  %s1 = inlined_call_operand.vmem [shape: f32[1,8,128], index: 1, kind: output, shape index: {}]
  %s2 = sld [smem:[#allocation0]]
  $region14: #{ms_gradient_loss.1} parent=0
    _
  %s4 = ssub.s32 1, %s2
  %s5 = scalar_select 0, %s4, %s2
  // Predicated region
  $region2: #{ms_gradient_loss.1} parent=0 // pred_check
    _
  $region3: #{ms_gradient_loss.1} parent=0 // pred_check_branch
    %7 = sbr.rel (0) target = $region5
  $region4: #{ms_gradient_loss.1} parent=0 // pred_region
    _
  $region5: #{ms_gradient_loss.1} parent=0 // pred_fallthru
    _
  %v8 = vld [vmem:[%s0] sm:$0xff]
  %v9 = vld [vmem:[%s0 + $0x8] sm:$0xff]
  %v10 = vld [vmem:[%s0 + $0x10] sm:$0xff]
  %v11 = vld [vmem:[%s0 + $0x18] sm:$0xff]
  %v12 = vlaneseq
  %v13 = vshrl.u32 %v12, 7
  %v14 = vadd.s32 %v13, 8
  %v15 = vadd.s32 %v13, 16
  %v16 = vadd.s32 %v13, 24
  %v17 = vlaneseq
  %v18 = vand.u32 %v17, 127
  %vm19 = vcmp.eq.s32.totalorder %v13, 0
  %vm20 = vcmp.eq.s32.totalorder %v14, 0
  %vm21 = vcmp.eq.s32.totalorder %v15, 0
  %vm22 = vcmp.eq.s32.totalorder %v16, 0
  %vm23 = vcmp.eq.s32.totalorder %v13, 15
  %vm24 = vcmp.eq.s32.totalorder %v14, 15
  %vm25 = vcmp.eq.s32.totalorder %v15, 15
  %vm26 = vcmp.eq.s32.totalorder %v16, 15
  %vm27 = vcmp.eq.s32.totalorder %v13, 16
  %vm28 = vcmp.eq.s32.totalorder %v14, 16
  %vm29 = vcmp.eq.s32.totalorder %v15, 16
  %vm30 = vcmp.eq.s32.totalorder %v16, 16
  %vm31 = vmor %vm19, %vm27
  %vm32 = vmor %vm20, %vm28
  %vm33 = vmor %vm21, %vm29
  %vm34 = vmor %vm22, %vm30
  %vm35 = vcmp.eq.s32.totalorder %v13, 31
  %vm36 = vcmp.eq.s32.totalorder %v14, 31
  %vm37 = vcmp.eq.s32.totalorder %v15, 31
  %vm38 = vcmp.eq.s32.totalorder %v16, 31
  %vm39 = vmor %vm23, %vm35
  %vm40 = vmor %vm24, %vm36
  %vm41 = vmor %vm25, %vm37
  %vm42 = vmor %vm26, %vm38
  %vm43 = vcmp.eq.s32.totalorder %v18, 0
  %vm44 = vcmp.eq.s32.totalorder %v18, 15
  %v45 = vrot.slane %v8, 7
  %v46 = vrot.slane %v9, 7
  %v47 = vrot.slane %v10, 7
  %v48 = vrot.slane %v11, 7
  %vm49 = vcmp.lt.s32.totalorder %v13, 1
  %v50 = vsel %vm49, %v47, %v48
  %v51 = vsel %vm49, %v46, %v47
  %v52 = vsel %vm49, %v45, %v46
  %v53 = vsel %vm49, %v48, %v45
  %v54 = vrot.slane %v8, 1
  %v55 = vrot.slane %v9, 1
  %v56 = vrot.slane %v10, 1
  %v57 = vrot.slane %v11, 1
  %vm58 = vcmp.lt.s32.totalorder %v13, 7
  %v59 = vsel %vm58, %v56, %v57
  %v60 = vsel %vm58, %v55, %v56
  %v61 = vsel %vm58, %v54, %v55
  %v62 = vsel %vm58, %v57, %v54
  %vm63 = vcmask 1047680
  %64 = vrot.lane.b32.xlu0 %v8, 16
  %v65 = vpop.permute.xlu0 %64
  %v66 = vsel %vm63, %v65, %v8
  %67 = vrot.lane.b32.xlu0 %v9, 16
  %v68 = vpop.permute.xlu0 %67
  %v69 = vsel %vm63, %v68, %v9
  %70 = vrot.lane.b32.xlu0 %v10, 16
  %v71 = vpop.permute.xlu0 %70
  %v72 = vsel %vm63, %v71, %v10
  %73 = vrot.lane.b32.xlu0 %v11, 16
  %v74 = vpop.permute.xlu0 %73
  %v75 = vsel %vm63, %v74, %v11
  %76 = vrot.lane.b32.xlu0 %v66, 16
  %v77 = vpop.permute.xlu0 %76
  %78 = vrot.lane.b32.xlu0 %v69, 16
  %v79 = vpop.permute.xlu0 %78
  %80 = vrot.lane.b32.xlu0 %v72, 16
  %v81 = vpop.permute.xlu0 %80
  %82 = vrot.lane.b32.xlu0 %v75, 16
  %v83 = vpop.permute.xlu0 %82
  %v84 = vsel %vm63, %v77, %v8
  %v85 = vsel %vm63, %v79, %v9
  %v86 = vsel %vm63, %v81, %v10
  %v87 = vsel %vm63, %v83, %v11
  %v88 = vsel %vm31, %v8, %v53
  %v89 = vsel %vm32, %v9, %v52
  %v90 = vsel %vm33, %v10, %v51
  %v91 = vsel %vm34, %v11, %v50
  %v92 = vsel %vm39, %v8, %v61
  %v93 = vsel %vm40, %v9, %v60
  %v94 = vsel %vm41, %v10, %v59
  %v95 = vsel %vm42, %v11, %v62
  %100 = vrot.lane.b32.xlu0 %v84, 113
  %v101 = vpop.permute.xlu0 %100
  %102 = vrot.lane.b32.xlu0 %v85, 113
  %v103 = vpop.permute.xlu0 %102
  %104 = vrot.lane.b32.xlu0 %v86, 113
  %v105 = vpop.permute.xlu0 %104
  %106 = vrot.lane.b32.xlu0 %v87, 113
  %v107 = vpop.permute.xlu0 %106
  %v112 = vsel %vm43, %v8, %v101
  %v113 = vsel %vm43, %v9, %v103
  %v114 = vsel %vm43, %v10, %v105
  %v115 = vsel %vm43, %v11, %v107
  %116 = vrot.lane.b32.xlu0 %v84, 127
  %v117 = vpop.permute.xlu0 %116
  %118 = vrot.lane.b32.xlu0 %v85, 127
  %v119 = vpop.permute.xlu0 %118
  %120 = vrot.lane.b32.xlu0 %v86, 127
  %v121 = vpop.permute.xlu0 %120
  %122 = vrot.lane.b32.xlu0 %v87, 127
  %v123 = vpop.permute.xlu0 %122
  %v128 = vsel %vm44, %v8, %v117
  %v129 = vsel %vm44, %v9, %v119
  %v130 = vsel %vm44, %v10, %v121
  %v131 = vsel %vm44, %v11, %v123
  %v132 = vmul.f32 %v8, 2.0
  %v133 = vmul.f32 %v9, 2.0
  %v134 = vmul.f32 %v10, 2.0
  %v135 = vmul.f32 %v11, 2.0
  %v136 = vadd.f32 %v88, %v132
  %v137 = vadd.f32 %v89, %v133
  %v138 = vadd.f32 %v90, %v134
  %v139 = vadd.f32 %v91, %v135
  %v140 = vadd.f32 %v136, %v92
  %v141 = vadd.f32 %v137, %v93
  %v142 = vadd.f32 %v138, %v94
  %v143 = vadd.f32 %v139, %v95
  %v144 = vadd.f32 %v112, %v132
  %v145 = vadd.f32 %v113, %v133
  %v146 = vadd.f32 %v114, %v134
  %v147 = vadd.f32 %v115, %v135
  %v148 = vadd.f32 %v144, %v128
  %v149 = vadd.f32 %v145, %v129
  %v150 = vadd.f32 %v146, %v130
  %v151 = vadd.f32 %v147, %v131
  %152 = vrot.lane.b32.xlu0 %v140, 16
  %v153 = vpop.permute.xlu0 %152
  %v154 = vsel %vm63, %v153, %v140
  %155 = vrot.lane.b32.xlu0 %v141, 16
  %v156 = vpop.permute.xlu0 %155
  %v157 = vsel %vm63, %v156, %v141
  %158 = vrot.lane.b32.xlu0 %v142, 16
  %v159 = vpop.permute.xlu0 %158
  %v160 = vsel %vm63, %v159, %v142
  %161 = vrot.lane.b32.xlu0 %v143, 16
  %v162 = vpop.permute.xlu0 %161
  %v163 = vsel %vm63, %v162, %v143
  %164 = vrot.lane.b32.xlu0 %v154, 16
  %v165 = vpop.permute.xlu0 %164
  %166 = vrot.lane.b32.xlu0 %v157, 16
  %v167 = vpop.permute.xlu0 %166
  %168 = vrot.lane.b32.xlu0 %v160, 16
  %v169 = vpop.permute.xlu0 %168
  %170 = vrot.lane.b32.xlu0 %v163, 16
  %v171 = vpop.permute.xlu0 %170
  %v172 = vsel %vm63, %v165, %v140
  %v173 = vsel %vm63, %v167, %v141
  %v174 = vsel %vm63, %v169, %v142
  %v175 = vsel %vm63, %v171, %v143
  %180 = vrot.lane.b32.xlu0 %v172, 127
  %v181 = vpop.permute.xlu0 %180
  %182 = vrot.lane.b32.xlu0 %v173, 127
  %v183 = vpop.permute.xlu0 %182
  %184 = vrot.lane.b32.xlu0 %v174, 127
  %v185 = vpop.permute.xlu0 %184
  %186 = vrot.lane.b32.xlu0 %v175, 127
  %v187 = vpop.permute.xlu0 %186
  %v192 = vsel %vm44, %v140, %v181
  %v193 = vsel %vm44, %v141, %v183
  %v194 = vsel %vm44, %v142, %v185
  %v195 = vsel %vm44, %v143, %v187
  %196 = vrot.lane.b32.xlu0 %v172, 113
  %v197 = vpop.permute.xlu0 %196
  %198 = vrot.lane.b32.xlu0 %v173, 113
  %v199 = vpop.permute.xlu0 %198
  %200 = vrot.lane.b32.xlu0 %v174, 113
  %v201 = vpop.permute.xlu0 %200
  %202 = vrot.lane.b32.xlu0 %v175, 113
  %v203 = vpop.permute.xlu0 %202
  %v208 = vsel %vm43, %v140, %v197
  %v209 = vsel %vm43, %v141, %v199
  %v210 = vsel %vm43, %v142, %v201
  %v211 = vsel %vm43, %v143, %v203
  %v212 = vsub.f32 %v192, %v208
  %v213 = vsub.f32 %v193, %v209
  %v214 = vsub.f32 %v194, %v210
  %v215 = vsub.f32 %v195, %v211
  %v216 = vmul.f32 %v212, 0.125
  %v217 = vmul.f32 %v213, 0.125
  %v218 = vmul.f32 %v214, 0.125
  %v219 = vmul.f32 %v215, 0.125
  %v220 = vrot.slane %v148, 1
  %v221 = vrot.slane %v149, 1
  %v222 = vrot.slane %v150, 1
  %v223 = vrot.slane %v151, 1
  %v224 = vsel %vm58, %v222, %v223
  %v225 = vsel %vm58, %v221, %v222
  %v226 = vsel %vm58, %v220, %v221
  %v227 = vsel %vm58, %v223, %v220
  %v228 = vsel %vm39, %v148, %v226
  %v229 = vsel %vm40, %v149, %v225
  %v230 = vsel %vm41, %v150, %v224
  %v231 = vsel %vm42, %v151, %v227
  %v232 = vrot.slane %v148, 7
  %v233 = vrot.slane %v149, 7
  %v234 = vrot.slane %v150, 7
  %v235 = vrot.slane %v151, 7
  %v236 = vsel %vm49, %v234, %v235
  %v237 = vsel %vm49, %v233, %v234
  %v238 = vsel %vm49, %v232, %v233
  %v239 = vsel %vm49, %v235, %v232
  %v240 = vsel %vm31, %v148, %v239
  %v241 = vsel %vm32, %v149, %v238
  %v242 = vsel %vm33, %v150, %v237
  %v243 = vsel %vm34, %v151, %v236
  %v244 = vsub.f32 %v228, %v240
  %v245 = vsub.f32 %v229, %v241
  %v246 = vsub.f32 %v230, %v242
  %v247 = vsub.f32 %v231, %v243
  %v248 = vmul.f32 %v244, 0.125
  %v249 = vmul.f32 %v245, 0.125
  %v250 = vmul.f32 %v246, 0.125
  %v251 = vmul.f32 %v247, 0.125
  %v252 = vsub.f32 %v216, %v218
  %v253 = vsub.f32 %v217, %v219
  %v254 = vsub.f32 %v218, %v216
  %v255 = vsub.f32 %v219, %v217
  %v256 = vand.u32 2147483647, %v252
  %v257 = vand.u32 2147483647, %v253
  %v258 = vand.u32 2147483647, %v254
  %v259 = vand.u32 2147483647, %v255
  %v260 = vsub.f32 %v248, %v250
  %v261 = vsub.f32 %v249, %v251
  %v262 = vsub.f32 %v250, %v248
  %v263 = vsub.f32 %v251, %v249
  %v264 = vand.u32 2147483647, %v260
  %v265 = vand.u32 2147483647, %v261
  %v266 = vand.u32 2147483647, %v262
  %v267 = vand.u32 2147483647, %v263
  %vm268 = vcmp.ne.f32.partialorder %v218, 0.0
  %vm269 = vcmp.ne.f32.partialorder %v219, 0.0
  %vm270 = vcmp.ne.f32.partialorder %v216, 0.0
  %vm271 = vcmp.ne.f32.partialorder %v217, 0.0
  %vm272 = vcmp.ne.f32.partialorder %v250, 0.0
  %vm273 = vcmp.ne.f32.partialorder %v251, 0.0
  %vm274 = vcmp.ne.f32.partialorder %v248, 0.0
  %vm275 = vcmp.ne.f32.partialorder %v249, 0.0
  %vm276 = vcmp.lt.s32.totalorder %v13, 16
  %vm277 = vcmp.lt.s32.totalorder %v14, 16
  %vm278 = vcmp.lt.s32.totalorder %v15, 16
  %vm279 = vcmp.lt.s32.totalorder %v16, 16
  %v280 = vsel %vm276, 1, 0
  %v281 = vsel %vm277, 1, 0
  %v282 = vsel %vm278, 1, 0
  %v283 = vsel %vm279, 1, 0
  %v284 = vcvt.s32.f32 %v280
  %v285 = vcvt.s32.f32 %v281
  %v286 = vcvt.s32.f32 %v282
  %v287 = vcvt.s32.f32 %v283
  %v288 = vsel %vm268, 1, 0
  %v289 = vsel %vm269, 1, 0
  %v290 = vsel %vm270, 1, 0
  %v291 = vsel %vm271, 1, 0
  %v292 = vcvt.s32.f32 %v288
  %v293 = vcvt.s32.f32 %v289
  %v294 = vcvt.s32.f32 %v290
  %v295 = vcvt.s32.f32 %v291
  %v296 = vmul.f32 %v292, %v284
  %v297 = vmul.f32 %v293, %v285
  %v298 = vmul.f32 %v294, %v286
  %v299 = vmul.f32 %v295, %v287
  %v300 = vsel %vm272, 1, 0
  %v301 = vsel %vm273, 1, 0
  %v302 = vsel %vm274, 1, 0
  %v303 = vsel %vm275, 1, 0
  %v304 = vcvt.s32.f32 %v300
  %v305 = vcvt.s32.f32 %v301
  %v306 = vcvt.s32.f32 %v302
  %v307 = vcvt.s32.f32 %v303
  %v308 = vmul.f32 %v304, %v284
  %v309 = vmul.f32 %v305, %v285
  %v310 = vmul.f32 %v306, %v286
  %v311 = vmul.f32 %v307, %v287
  %v312 = vmul.f32 %v296, %v256
  %v313 = vmul.f32 %v297, %v257
  %v314 = vmul.f32 %v298, %v258
  %v315 = vmul.f32 %v299, %v259
  %v316 = vmul.f32 %v308, %v264
  %v317 = vmul.f32 %v309, %v265
  %v318 = vmul.f32 %v310, %v266
  %v319 = vmul.f32 %v311, %v267
  %v320 = vadd.f32 %v312, %v316
  %v321 = vadd.f32 %v313, %v317
  %v322 = vadd.f32 %v314, %v318
  %v323 = vadd.f32 %v315, %v319
  %vm324 = vcmask 130048
  %v325 = vsel %vm324, %v320, 0.0
  %v326 = vsel %vm324, %v321, 0.0
  %v327 = vadd.f32 %v325, %v326
  %v328 = vsel %vm324, %v322, 0.0
  %v329 = vadd.f32 %v327, %v328
  %v330 = vsel %vm324, %v323, 0.0
  %v331 = vadd.f32 %v329, %v330
  %332 = vadd.xlane.f32.xlu0 %v331
  %v333 = vpop.xlane.xlu0 %332
  %v334 = vrot.slane %v333, 4
  %v335 = vadd.f32 %v333, %v334
  %v336 = vrot.slane %v335, 2
  %v337 = vadd.f32 %v335, %v336
  %v338 = vrot.slane %v337, 1
  %v339 = vadd.f32 %v337, %v338
  %s340 = vtos %v339
  %s341 = sadd.f32 %s340, 0.0
  %v342 = vadd.f32 %v296, %v308
  %v343 = vadd.f32 %v297, %v309
  %v344 = vadd.f32 %v298, %v310
  %v345 = vadd.f32 %v299, %v311
  %v346 = vsel %vm324, %v342, 0.0
  %v347 = vsel %vm324, %v343, 0.0
  %v348 = vadd.f32 %v346, %v347
  %v349 = vsel %vm324, %v344, 0.0
  %v350 = vadd.f32 %v348, %v349
  %v351 = vsel %vm324, %v345, 0.0
  %v352 = vadd.f32 %v350, %v351
  %353 = vadd.xlane.f32.xlu0 %v352
  %v354 = vpop.xlane.xlu0 %353
  %v355 = vrot.slane %v354, 4
  %v356 = vadd.f32 %v354, %v355
  %v357 = vrot.slane %v356, 2
  %v358 = vadd.f32 %v356, %v357
  %v359 = vrot.slane %v358, 1
  %v360 = vadd.f32 %v358, %v359
  %s361 = vtos %v360
  %s362 = sadd.f32 %s361, 0.0
  %v363 = vsel %vm31, 0.0, %v53
  %v364 = vsel %vm32, 0.0, %v52
  %v365 = vsel %vm33, 0.0, %v51
  %v366 = vsel %vm34, 0.0, %v50
  %v367 = vsel %vm39, 0.0, %v61
  %v368 = vsel %vm40, 0.0, %v60
  %v369 = vsel %vm41, 0.0, %v59
  %v370 = vsel %vm42, 0.0, %v62
  %v371 = vadd.f32 %v363, %v367
  %v372 = vadd.f32 %v364, %v368
  %v373 = vadd.f32 %v365, %v369
  %v374 = vadd.f32 %v366, %v370
  %v375 = vmul.f32 %v371, 0.25
  %v376 = vmul.f32 %v372, 0.25
  %v377 = vmul.f32 %v373, 0.25
  %v378 = vmul.f32 %v374, 0.25
  %v379 = vmul.f32 %v8, 0.5
  %v380 = vmul.f32 %v9, 0.5
  %v381 = vmul.f32 %v10, 0.5
  %v382 = vmul.f32 %v11, 0.5
  %v383 = vadd.f32 %v375, %v379
  %v384 = vadd.f32 %v376, %v380
  %v385 = vadd.f32 %v377, %v381
  %v386 = vadd.f32 %v378, %v382
  %387 = vst.msk [vmem:[#allocation2] sm:$0xff] %vm324, %v383
  %388 = vst.msk [vmem:[#allocation2 + $0x8] sm:$0xff] %vm324, %v384
  %389 = vst.msk [vmem:[#allocation2 + $0x10] sm:$0xff] %vm324, %v385
  %390 = vst.msk [vmem:[#allocation2 + $0x18] sm:$0xff] %vm324, %v386
  %v391 = vld [vmem:[#allocation2] ss:$2 sm:$0xff]
  %s392 = scalar_lea.vmem [#allocation2], 16
  %v393 = vld [vmem:[%s392] ss:$2 sm:$0xff]
  %v394 = vmul.u32 %v18, 2
  %vm395 = vcmp.eq.s32.totalorder %v13, %v394
  %vm396 = vcmp.eq.s32.totalorder %v14, %v394
  %v397 = vsel %vm395, 1, 0
  %v398 = vsel %vm396, 1, 0
  %v399 = vcvt.s32.f32 %v397
  %v400 = vcvt.s32.f32 %v398
  %v401 = vmul.f32 %v399, 0.5
  %v402 = vmul.f32 %v400, 0.5
  %v403 = vsub.s32 %v394, 1
  %vm404 = vcmp.eq.s32.totalorder %v13, %v403
  %vm405 = vcmp.eq.s32.totalorder %v14, %v403
  %v406 = vsel %vm404, 1, 0
  %v407 = vsel %vm405, 1, 0
  %v408 = vcvt.s32.f32 %v406
  %v409 = vcvt.s32.f32 %v407
  %v410 = vmul.f32 %v408, 0.25
  %v411 = vmul.f32 %v409, 0.25
  %v412 = vadd.f32 %v401, %v410
  %v413 = vadd.f32 %v402, %v411
  %v414 = vadd.s32 %v394, 1
  %vm415 = vcmp.eq.s32.totalorder %v13, %v414
  %vm416 = vcmp.eq.s32.totalorder %v14, %v414
  %v417 = vsel %vm415, 1, 0
  %v418 = vsel %vm416, 1, 0
  %v419 = vcvt.s32.f32 %v417
  %v420 = vcvt.s32.f32 %v418
  %v421 = vmul.f32 %v419, 0.25
  %v422 = vmul.f32 %v420, 0.25
  %v423 = vadd.f32 %v412, %v421
  %v424 = vadd.f32 %v413, %v422
  %v426 = vsel %vm324, %v391, 0
  %v429 = vsel %vm324, %v393, 0
  %431 = vmatprep.subr.mxu0 0.0
  %432 = vmatpush1.msra.mxu0 0.0
  %433 = vmatprep.subr.mxu0 0.0
  %434 = vmatpush1.msra.mxu0 0.0
  %435 = vmatprep.subr.mxu0 0.0
  %436 = vmatpush1.msra.mxu0 0.0
  %437 = vmatprep.subr.mxu0 0.0
  %438 = vmatpush1.msra.mxu0 0.0
  %439 = vmatprep.subr.mxu0 0.0
  %440 = vmatpush1.msra.mxu0 0.0
  %441 = vmatprep.subr.mxu0 0.0
  %442 = vmatpush1.msra.mxu0 0.0
  %443 = vmatprep.subr.mxu0 0.0
  %444 = vmatpush1.msra.mxu0 0.0
  %445 = vmatprep.subr.mxu0 0.0
  %446 = vmatpush1.msra.mxu0 0.0
  %447 = vmatprep.subr.mxu0 0.0
  %448 = vmatpush1.msra.mxu0 0.0
  %449 = vmatprep.subr.mxu0 0.0
  %450 = vmatpush1.msra.mxu0 0.0
  %451 = vmatprep.subr.mxu0 0.0
  %452 = vmatpush1.msra.mxu0 0.0
  %453 = vmatprep.subr.mxu0 0.0
  %454 = vmatpush1.msra.mxu0 0.0
  %455 = vmatprep.subr.mxu0 0.0
  %456 = vmatpush1.msra.mxu0 0.0
  %457 = vmatprep.subr.mxu0 0.0
  %458 = vmatpush1.msra.mxu0 0.0
  %459 = vmatprep.subr.mxu0 0.0
  %v460 = vand.u32 %v424, 4294901760
  %461 = vmatpush1.msra.mxu0 %v460
  %462 = vmatprep.subr.mxu0 0.0
  %v463 = vand.u32 %v423, 4294901760
  %464 = vmatpush1.msra.mxu0 %v463
  %465 = vmatprep.subr.mxu0 0.0
  %466 = vmatpush2.msra.mxu0 0.0
  %467 = vmatprep.subr.mxu0 0.0
  %468 = vmatpush2.msra.mxu0 0.0
  %469 = vmatprep.subr.mxu0 0.0
  %470 = vmatpush2.msra.mxu0 0.0
  %471 = vmatprep.subr.mxu0 0.0
  %472 = vmatpush2.msra.mxu0 0.0
  %473 = vmatprep.subr.mxu0 0.0
  %474 = vmatpush2.msra.mxu0 0.0
  %475 = vmatprep.subr.mxu0 0.0
  %476 = vmatpush2.msra.mxu0 0.0
  %477 = vmatprep.subr.mxu0 0.0
  %478 = vmatpush2.msra.mxu0 0.0
  %479 = vmatprep.subr.mxu0 0.0
  %480 = vmatpush2.msra.mxu0 0.0
  %481 = vmatprep.subr.mxu0 0.0
  %482 = vmatpush2.msra.mxu0 0.0
  %483 = vmatprep.subr.mxu0 0.0
  %484 = vmatpush2.msra.mxu0 0.0
  %485 = vmatprep.subr.mxu0 0.0
  %486 = vmatpush2.msra.mxu0 0.0
  %487 = vmatprep.subr.mxu0 0.0
  %488 = vmatpush2.msra.mxu0 0.0
  %489 = vmatprep.subr.mxu0 0.0
  %490 = vmatpush2.msra.mxu0 0.0
  %491 = vmatprep.subr.mxu0 0.0
  %492 = vmatpush2.msra.mxu0 0.0
  %493 = vmatprep.subr.mxu0 0.0
  %494 = vmatpush2.msra.mxu0 0.0
  %495 = vmatprep.subr.mxu0 0.0
  %496 = vmatpush2.msra.mxu0 0.0
  %497 = vmatprep.mubr.f32.mxu0 0.0
  %v498 = vand.u32 %v426, 4294901760
  %v499 = vsub.f32 %v426, %v498
  %v500 = vand.u32 %v499, 4294901760
  %v501 = vsub.f32 %v499, %v500
  %v502 = vand.u32 %v501, 4294901760
  %503 = vmatmul.mubr.f32.gmra.mxu0 %v502
  %v504 = vpop.f32.mrf.mxu0
  %v505 = vadd.f32 0.0, %v504
  %v506 = vpop.f32.mrf.mxu0
  %507 = vmatprep.mubr.f32.mxu0 0.0
  %v508 = vand.u32 %v429, 4294901760
  %v509 = vsub.f32 %v429, %v508
  %v510 = vand.u32 %v509, 4294901760
  %v511 = vsub.f32 %v509, %v510
  %v512 = vand.u32 %v511, 4294901760
  %513 = vmatmul.mubr.f32.gmra.mxu0 %v512
  %v514 = vpop.f32.mrf.mxu0
  %v515 = vadd.f32 0.0, %v514
  %v516 = vpop.f32.mrf.mxu0
  %517 = vdwg.mxu0
  %518 = vmatprep.subr.mxu0 0.0
  %519 = vmatpush1.msra.mxu0 0.0
  %520 = vmatprep.subr.mxu0 0.0
  %521 = vmatpush1.msra.mxu0 0.0
  %522 = vmatprep.subr.mxu0 0.0
  %523 = vmatpush1.msra.mxu0 0.0
  %524 = vmatprep.subr.mxu0 0.0
  %525 = vmatpush1.msra.mxu0 0.0
  %526 = vmatprep.subr.mxu0 0.0
  %527 = vmatpush1.msra.mxu0 0.0
  %528 = vmatprep.subr.mxu0 0.0
  %529 = vmatpush1.msra.mxu0 0.0
  %530 = vmatprep.subr.mxu0 0.0
  %531 = vmatpush1.msra.mxu0 0.0
  %532 = vmatprep.subr.mxu0 0.0
  %533 = vmatpush1.msra.mxu0 0.0
  %534 = vmatprep.subr.mxu0 0.0
  %535 = vmatpush1.msra.mxu0 0.0
  %536 = vmatprep.subr.mxu0 0.0
  %537 = vmatpush1.msra.mxu0 0.0
  %538 = vmatprep.subr.mxu0 0.0
  %539 = vmatpush1.msra.mxu0 0.0
  %540 = vmatprep.subr.mxu0 0.0
  %541 = vmatpush1.msra.mxu0 0.0
  %542 = vmatprep.subr.mxu0 0.0
  %543 = vmatpush1.msra.mxu0 0.0
  %544 = vmatprep.subr.mxu0 0.0
  %545 = vmatpush1.msra.mxu0 0.0
  %546 = vmatprep.subr.mxu0 0.0
  %v547 = vand.u32 %v424, 4294901760
  %v548 = vsub.f32 %v424, %v547
  %v549 = vand.u32 %v548, 4294901760
  %v550 = vsub.f32 %v548, %v549
  %v551 = vand.u32 %v550, 4294901760
  %552 = vmatpush1.msra.mxu0 %v551
  %553 = vmatprep.subr.mxu0 0.0
  %v554 = vand.u32 %v423, 4294901760
  %v555 = vsub.f32 %v423, %v554
  %v556 = vand.u32 %v555, 4294901760
  %v557 = vsub.f32 %v555, %v556
  %v558 = vand.u32 %v557, 4294901760
  %559 = vmatpush1.msra.mxu0 %v558
  %560 = vmatprep.subr.mxu0 0.0
  %561 = vmatpush2.msra.mxu0 0.0
  %562 = vmatprep.subr.mxu0 0.0
  %563 = vmatpush2.msra.mxu0 0.0
  %564 = vmatprep.subr.mxu0 0.0
  %565 = vmatpush2.msra.mxu0 0.0
  %566 = vmatprep.subr.mxu0 0.0
  %567 = vmatpush2.msra.mxu0 0.0
  %568 = vmatprep.subr.mxu0 0.0
  %569 = vmatpush2.msra.mxu0 0.0
  %570 = vmatprep.subr.mxu0 0.0
  %571 = vmatpush2.msra.mxu0 0.0
  %572 = vmatprep.subr.mxu0 0.0
  %573 = vmatpush2.msra.mxu0 0.0
  %574 = vmatprep.subr.mxu0 0.0
  %575 = vmatpush2.msra.mxu0 0.0
  %576 = vmatprep.subr.mxu0 0.0
  %577 = vmatpush2.msra.mxu0 0.0
  %578 = vmatprep.subr.mxu0 0.0
  %579 = vmatpush2.msra.mxu0 0.0
  %580 = vmatprep.subr.mxu0 0.0
  %581 = vmatpush2.msra.mxu0 0.0
  %582 = vmatprep.subr.mxu0 0.0
  %583 = vmatpush2.msra.mxu0 0.0
  %584 = vmatprep.subr.mxu0 0.0
  %585 = vmatpush2.msra.mxu0 0.0
  %586 = vmatprep.subr.mxu0 0.0
  %587 = vmatpush2.msra.mxu0 0.0
  %588 = vmatprep.subr.mxu0 0.0
  %589 = vmatpush2.msra.mxu0 0.0
  %590 = vmatprep.subr.mxu0 0.0
  %591 = vmatpush2.msra.mxu0 0.0
  %592 = vmatprep.mubr.f32.mxu0 0.0
  %v593 = vand.u32 %v426, 4294901760
  %594 = vmatmul.mubr.f32.gmra.mxu0 %v593
  %v595 = vpop.f32.mrf.mxu0
  %v596 = vadd.f32 %v505, %v595
  %v597 = vpop.f32.mrf.mxu0
  %598 = vmatprep.mubr.f32.mxu0 0.0
  %v599 = vand.u32 %v429, 4294901760
  %600 = vmatmul.mubr.f32.gmra.mxu0 %v599
  %v601 = vpop.f32.mrf.mxu0
  %v602 = vadd.f32 %v515, %v601
  %v603 = vpop.f32.mrf.mxu0
  %604 = vdwg.mxu0
  %605 = vmatprep.subr.mxu0 0.0
  %606 = vmatpush1.msra.mxu0 0.0
  %607 = vmatprep.subr.mxu0 0.0
  %608 = vmatpush1.msra.mxu0 0.0
  %609 = vmatprep.subr.mxu0 0.0
  %610 = vmatpush1.msra.mxu0 0.0
  %611 = vmatprep.subr.mxu0 0.0
  %612 = vmatpush1.msra.mxu0 0.0
  %613 = vmatprep.subr.mxu0 0.0
  %614 = vmatpush1.msra.mxu0 0.0
  %615 = vmatprep.subr.mxu0 0.0
  %616 = vmatpush1.msra.mxu0 0.0
  %617 = vmatprep.subr.mxu0 0.0
  %618 = vmatpush1.msra.mxu0 0.0
  %619 = vmatprep.subr.mxu0 0.0
  %620 = vmatpush1.msra.mxu0 0.0
  %621 = vmatprep.subr.mxu0 0.0
  %622 = vmatpush1.msra.mxu0 0.0
  %623 = vmatprep.subr.mxu0 0.0
  %624 = vmatpush1.msra.mxu0 0.0
  %625 = vmatprep.subr.mxu0 0.0
  %626 = vmatpush1.msra.mxu0 0.0
  %627 = vmatprep.subr.mxu0 0.0
  %628 = vmatpush1.msra.mxu0 0.0
  %629 = vmatprep.subr.mxu0 0.0
  %630 = vmatpush1.msra.mxu0 0.0
  %631 = vmatprep.subr.mxu0 0.0
  %632 = vmatpush1.msra.mxu0 0.0
  %633 = vmatprep.subr.mxu0 0.0
  %v634 = vand.u32 %v424, 4294901760
  %v635 = vsub.f32 %v424, %v634
  %636 = vmatpush1.msra.mxu0 %v635
  %637 = vmatprep.subr.mxu0 0.0
  %v638 = vand.u32 %v423, 4294901760
  %v639 = vsub.f32 %v423, %v638
  %640 = vmatpush1.msra.mxu0 %v639
  %641 = vmatprep.subr.mxu0 0.0
  %642 = vmatpush2.msra.mxu0 0.0
  %643 = vmatprep.subr.mxu0 0.0
  %644 = vmatpush2.msra.mxu0 0.0
  %645 = vmatprep.subr.mxu0 0.0
  %646 = vmatpush2.msra.mxu0 0.0
  %647 = vmatprep.subr.mxu0 0.0
  %648 = vmatpush2.msra.mxu0 0.0
  %649 = vmatprep.subr.mxu0 0.0
  %650 = vmatpush2.msra.mxu0 0.0
  %651 = vmatprep.subr.mxu0 0.0
  %652 = vmatpush2.msra.mxu0 0.0
  %653 = vmatprep.subr.mxu0 0.0
  %654 = vmatpush2.msra.mxu0 0.0
  %655 = vmatprep.subr.mxu0 0.0
  %656 = vmatpush2.msra.mxu0 0.0
  %657 = vmatprep.subr.mxu0 0.0
  %658 = vmatpush2.msra.mxu0 0.0
  %659 = vmatprep.subr.mxu0 0.0
  %660 = vmatpush2.msra.mxu0 0.0
  %661 = vmatprep.subr.mxu0 0.0
  %662 = vmatpush2.msra.mxu0 0.0
  %663 = vmatprep.subr.mxu0 0.0
  %664 = vmatpush2.msra.mxu0 0.0
  %665 = vmatprep.subr.mxu0 0.0
  %666 = vmatpush2.msra.mxu0 0.0
  %667 = vmatprep.subr.mxu0 0.0
  %668 = vmatpush2.msra.mxu0 0.0
  %669 = vmatprep.subr.mxu0 0.0
  %670 = vmatpush2.msra.mxu0 0.0
  %671 = vmatprep.subr.mxu0 0.0
  %672 = vmatpush2.msra.mxu0 0.0
  %673 = vmatprep.mubr.f32.mxu0 0.0
  %v674 = vand.u32 %v426, 4294901760
  %v675 = vsub.f32 %v426, %v674
  %676 = vmatmul.mubr.f32.gmra.mxu0 %v675
  %v677 = vpop.f32.mrf.mxu0
  %v678 = vadd.f32 %v596, %v677
  %v679 = vpop.f32.mrf.mxu0
  %680 = vmatprep.mubr.f32.mxu0 0.0
  %v681 = vand.u32 %v429, 4294901760
  %v682 = vsub.f32 %v429, %v681
  %683 = vmatmul.mubr.f32.gmra.mxu0 %v682
  %v684 = vpop.f32.mrf.mxu0
  %v685 = vadd.f32 %v602, %v684
  %v686 = vpop.f32.mrf.mxu0
  %687 = vdwg.mxu0
  %688 = vmatprep.subr.mxu0 0.0
  %689 = vmatpush1.msra.mxu0 0.0
  %690 = vmatprep.subr.mxu0 0.0
  %691 = vmatpush1.msra.mxu0 0.0
  %692 = vmatprep.subr.mxu0 0.0
  %693 = vmatpush1.msra.mxu0 0.0
  %694 = vmatprep.subr.mxu0 0.0
  %695 = vmatpush1.msra.mxu0 0.0
  %696 = vmatprep.subr.mxu0 0.0
  %697 = vmatpush1.msra.mxu0 0.0
  %698 = vmatprep.subr.mxu0 0.0
  %699 = vmatpush1.msra.mxu0 0.0
  %700 = vmatprep.subr.mxu0 0.0
  %701 = vmatpush1.msra.mxu0 0.0
  %702 = vmatprep.subr.mxu0 0.0
  %703 = vmatpush1.msra.mxu0 0.0
  %704 = vmatprep.subr.mxu0 0.0
  %705 = vmatpush1.msra.mxu0 0.0
  %706 = vmatprep.subr.mxu0 0.0
  %707 = vmatpush1.msra.mxu0 0.0
  %708 = vmatprep.subr.mxu0 0.0
  %709 = vmatpush1.msra.mxu0 0.0
  %710 = vmatprep.subr.mxu0 0.0
  %711 = vmatpush1.msra.mxu0 0.0
  %712 = vmatprep.subr.mxu0 0.0
  %713 = vmatpush1.msra.mxu0 0.0
  %714 = vmatprep.subr.mxu0 0.0
  %715 = vmatpush1.msra.mxu0 0.0
  %716 = vmatprep.subr.mxu0 0.0
  %v717 = vand.u32 %v424, 4294901760
  %718 = vmatpush1.msra.mxu0 %v717
  %719 = vmatprep.subr.mxu0 0.0
  %v720 = vand.u32 %v423, 4294901760
  %721 = vmatpush1.msra.mxu0 %v720
  %722 = vmatprep.subr.mxu0 0.0
  %723 = vmatpush2.msra.mxu0 0.0
  %724 = vmatprep.subr.mxu0 0.0
  %725 = vmatpush2.msra.mxu0 0.0
  %726 = vmatprep.subr.mxu0 0.0
  %727 = vmatpush2.msra.mxu0 0.0
  %728 = vmatprep.subr.mxu0 0.0
  %729 = vmatpush2.msra.mxu0 0.0
  %730 = vmatprep.subr.mxu0 0.0
  %731 = vmatpush2.msra.mxu0 0.0
  %732 = vmatprep.subr.mxu0 0.0
  %733 = vmatpush2.msra.mxu0 0.0
  %734 = vmatprep.subr.mxu0 0.0
  %735 = vmatpush2.msra.mxu0 0.0
  %736 = vmatprep.subr.mxu0 0.0
  %737 = vmatpush2.msra.mxu0 0.0
  %738 = vmatprep.subr.mxu0 0.0
  %739 = vmatpush2.msra.mxu0 0.0
  %740 = vmatprep.subr.mxu0 0.0
  %741 = vmatpush2.msra.mxu0 0.0
  %742 = vmatprep.subr.mxu0 0.0
  %743 = vmatpush2.msra.mxu0 0.0
  %744 = vmatprep.subr.mxu0 0.0
  %745 = vmatpush2.msra.mxu0 0.0
  %746 = vmatprep.subr.mxu0 0.0
  %747 = vmatpush2.msra.mxu0 0.0
  %748 = vmatprep.subr.mxu0 0.0
  %749 = vmatpush2.msra.mxu0 0.0
  %750 = vmatprep.subr.mxu0 0.0
  %751 = vmatpush2.msra.mxu0 0.0
  %752 = vmatprep.subr.mxu0 0.0
  %753 = vmatpush2.msra.mxu0 0.0
  %754 = vmatprep.mubr.f32.mxu0 0.0
  %v755 = vand.u32 %v426, 4294901760
  %v756 = vsub.f32 %v426, %v755
  %v757 = vand.u32 %v756, 4294901760
  %758 = vmatmul.mubr.f32.gmra.mxu0 %v757
  %v759 = vpop.f32.mrf.mxu0
  %v760 = vadd.f32 %v678, %v759
  %v761 = vpop.f32.mrf.mxu0
  %762 = vmatprep.mubr.f32.mxu0 0.0
  %v763 = vand.u32 %v429, 4294901760
  %v764 = vsub.f32 %v429, %v763
  %v765 = vand.u32 %v764, 4294901760
  %766 = vmatmul.mubr.f32.gmra.mxu0 %v765
  %v767 = vpop.f32.mrf.mxu0
  %v768 = vadd.f32 %v685, %v767
  %v769 = vpop.f32.mrf.mxu0
  %770 = vdwg.mxu0
  %771 = vmatprep.subr.mxu0 0.0
  %772 = vmatpush1.msra.mxu0 0.0
  %773 = vmatprep.subr.mxu0 0.0
  %774 = vmatpush1.msra.mxu0 0.0
  %775 = vmatprep.subr.mxu0 0.0
  %776 = vmatpush1.msra.mxu0 0.0
  %777 = vmatprep.subr.mxu0 0.0
  %778 = vmatpush1.msra.mxu0 0.0
  %779 = vmatprep.subr.mxu0 0.0
  %780 = vmatpush1.msra.mxu0 0.0
  %781 = vmatprep.subr.mxu0 0.0
  %782 = vmatpush1.msra.mxu0 0.0
  %783 = vmatprep.subr.mxu0 0.0
  %784 = vmatpush1.msra.mxu0 0.0
  %785 = vmatprep.subr.mxu0 0.0
  %786 = vmatpush1.msra.mxu0 0.0
  %787 = vmatprep.subr.mxu0 0.0
  %788 = vmatpush1.msra.mxu0 0.0
  %789 = vmatprep.subr.mxu0 0.0
  %790 = vmatpush1.msra.mxu0 0.0
  %791 = vmatprep.subr.mxu0 0.0
  %792 = vmatpush1.msra.mxu0 0.0
  %793 = vmatprep.subr.mxu0 0.0
  %794 = vmatpush1.msra.mxu0 0.0
  %795 = vmatprep.subr.mxu0 0.0
  %796 = vmatpush1.msra.mxu0 0.0
  %797 = vmatprep.subr.mxu0 0.0
  %798 = vmatpush1.msra.mxu0 0.0
  %799 = vmatprep.subr.mxu0 0.0
  %v800 = vand.u32 %v424, 4294901760
  %v801 = vsub.f32 %v424, %v800
  %v802 = vand.u32 %v801, 4294901760
  %803 = vmatpush1.msra.mxu0 %v802
  %804 = vmatprep.subr.mxu0 0.0
  %v805 = vand.u32 %v423, 4294901760
  %v806 = vsub.f32 %v423, %v805
  %v807 = vand.u32 %v806, 4294901760
  %808 = vmatpush1.msra.mxu0 %v807
  %809 = vmatprep.subr.mxu0 0.0
  %810 = vmatpush2.msra.mxu0 0.0
  %811 = vmatprep.subr.mxu0 0.0
  %812 = vmatpush2.msra.mxu0 0.0
  %813 = vmatprep.subr.mxu0 0.0
  %814 = vmatpush2.msra.mxu0 0.0
  %815 = vmatprep.subr.mxu0 0.0
  %816 = vmatpush2.msra.mxu0 0.0
  %817 = vmatprep.subr.mxu0 0.0
  %818 = vmatpush2.msra.mxu0 0.0
  %819 = vmatprep.subr.mxu0 0.0
  %820 = vmatpush2.msra.mxu0 0.0
  %821 = vmatprep.subr.mxu0 0.0
  %822 = vmatpush2.msra.mxu0 0.0
  %823 = vmatprep.subr.mxu0 0.0
  %824 = vmatpush2.msra.mxu0 0.0
  %825 = vmatprep.subr.mxu0 0.0
  %826 = vmatpush2.msra.mxu0 0.0
  %827 = vmatprep.subr.mxu0 0.0
  %828 = vmatpush2.msra.mxu0 0.0
  %829 = vmatprep.subr.mxu0 0.0
  %830 = vmatpush2.msra.mxu0 0.0
  %831 = vmatprep.subr.mxu0 0.0
  %832 = vmatpush2.msra.mxu0 0.0
  %833 = vmatprep.subr.mxu0 0.0
  %834 = vmatpush2.msra.mxu0 0.0
  %835 = vmatprep.subr.mxu0 0.0
  %836 = vmatpush2.msra.mxu0 0.0
  %837 = vmatprep.subr.mxu0 0.0
  %838 = vmatpush2.msra.mxu0 0.0
  %839 = vmatprep.subr.mxu0 0.0
  %840 = vmatpush2.msra.mxu0 0.0
  %841 = vmatprep.mubr.f32.mxu0 0.0
  %v842 = vand.u32 %v426, 4294901760
  %843 = vmatmul.mubr.f32.gmra.mxu0 %v842
  %v844 = vpop.f32.mrf.mxu0
  %v845 = vadd.f32 %v760, %v844
  %v846 = vpop.f32.mrf.mxu0
  %847 = vmatprep.mubr.f32.mxu0 0.0
  %v848 = vand.u32 %v429, 4294901760
  %849 = vmatmul.mubr.f32.gmra.mxu0 %v848
  %v850 = vpop.f32.mrf.mxu0
  %v851 = vadd.f32 %v768, %v850
  %v852 = vpop.f32.mrf.mxu0
  %853 = vdwg.mxu0
  %854 = vmatprep.subr.mxu0 0.0
  %855 = vmatpush1.msra.mxu0 0.0
  %856 = vmatprep.subr.mxu0 0.0
  %857 = vmatpush1.msra.mxu0 0.0
  %858 = vmatprep.subr.mxu0 0.0
  %859 = vmatpush1.msra.mxu0 0.0
  %860 = vmatprep.subr.mxu0 0.0
  %861 = vmatpush1.msra.mxu0 0.0
  %862 = vmatprep.subr.mxu0 0.0
  %863 = vmatpush1.msra.mxu0 0.0
  %864 = vmatprep.subr.mxu0 0.0
  %865 = vmatpush1.msra.mxu0 0.0
  %866 = vmatprep.subr.mxu0 0.0
  %867 = vmatpush1.msra.mxu0 0.0
  %868 = vmatprep.subr.mxu0 0.0
  %869 = vmatpush1.msra.mxu0 0.0
  %870 = vmatprep.subr.mxu0 0.0
  %871 = vmatpush1.msra.mxu0 0.0
  %872 = vmatprep.subr.mxu0 0.0
  %873 = vmatpush1.msra.mxu0 0.0
  %874 = vmatprep.subr.mxu0 0.0
  %875 = vmatpush1.msra.mxu0 0.0
  %876 = vmatprep.subr.mxu0 0.0
  %877 = vmatpush1.msra.mxu0 0.0
  %878 = vmatprep.subr.mxu0 0.0
  %879 = vmatpush1.msra.mxu0 0.0
  %880 = vmatprep.subr.mxu0 0.0
  %881 = vmatpush1.msra.mxu0 0.0
  %882 = vmatprep.subr.mxu0 0.0
  %v883 = vand.u32 %v424, 4294901760
  %884 = vmatpush1.msra.mxu0 %v883
  %885 = vmatprep.subr.mxu0 0.0
  %v886 = vand.u32 %v423, 4294901760
  %887 = vmatpush1.msra.mxu0 %v886
  %888 = vmatprep.subr.mxu0 0.0
  %889 = vmatpush2.msra.mxu0 0.0
  %890 = vmatprep.subr.mxu0 0.0
  %891 = vmatpush2.msra.mxu0 0.0
  %892 = vmatprep.subr.mxu0 0.0
  %893 = vmatpush2.msra.mxu0 0.0
  %894 = vmatprep.subr.mxu0 0.0
  %895 = vmatpush2.msra.mxu0 0.0
  %896 = vmatprep.subr.mxu0 0.0
  %897 = vmatpush2.msra.mxu0 0.0
  %898 = vmatprep.subr.mxu0 0.0
  %899 = vmatpush2.msra.mxu0 0.0
  %900 = vmatprep.subr.mxu0 0.0
  %901 = vmatpush2.msra.mxu0 0.0
  %902 = vmatprep.subr.mxu0 0.0
  %903 = vmatpush2.msra.mxu0 0.0
  %904 = vmatprep.subr.mxu0 0.0
  %905 = vmatpush2.msra.mxu0 0.0
  %906 = vmatprep.subr.mxu0 0.0
  %907 = vmatpush2.msra.mxu0 0.0
  %908 = vmatprep.subr.mxu0 0.0
  %909 = vmatpush2.msra.mxu0 0.0
  %910 = vmatprep.subr.mxu0 0.0
  %911 = vmatpush2.msra.mxu0 0.0
  %912 = vmatprep.subr.mxu0 0.0
  %913 = vmatpush2.msra.mxu0 0.0
  %914 = vmatprep.subr.mxu0 0.0
  %915 = vmatpush2.msra.mxu0 0.0
  %916 = vmatprep.subr.mxu0 0.0
  %917 = vmatpush2.msra.mxu0 0.0
  %918 = vmatprep.subr.mxu0 0.0
  %919 = vmatpush2.msra.mxu0 0.0
  %920 = vmatprep.mubr.f32.mxu0 0.0
  %v921 = vand.u32 %v426, 4294901760
  %922 = vmatmul.mubr.f32.gmra.mxu0 %v921
  %v923 = vpop.f32.mrf.mxu0
  %v924 = vadd.f32 %v845, %v923
  %v925 = vpop.f32.mrf.mxu0
  %926 = vmatprep.mubr.f32.mxu0 0.0
  %v927 = vand.u32 %v429, 4294901760
  %928 = vmatmul.mubr.f32.gmra.mxu0 %v927
  %v929 = vpop.f32.mrf.mxu0
  %v930 = vadd.f32 %v851, %v929
  %v931 = vpop.f32.mrf.mxu0
  %932 = vdwg.mxu0
  %vm933 = vcmp.eq.s32.totalorder %v13, 7
  %vm934 = vcmp.eq.s32.totalorder %v14, 7
  %vm935 = vcmp.eq.s32.totalorder %v13, 8
  %vm936 = vcmp.eq.s32.totalorder %v14, 8
  %vm937 = vmor %vm19, %vm935
  %vm938 = vmor %vm20, %vm936
  %vm939 = vmor %vm933, %vm23
  %vm940 = vmor %vm934, %vm24
  %vm941 = vcmp.eq.s32.totalorder %v18, 7
  %v942 = vrot.slane %v924, 7
  %v943 = vrot.slane %v930, 7
  %v944 = vsel %vm49, %v942, %v943
  %v945 = vsel %vm49, %v943, %v942
  %v946 = vrot.slane %v924, 1
  %v947 = vrot.slane %v930, 1
  %v948 = vsel %vm58, %v946, %v947
  %v949 = vsel %vm58, %v947, %v946
  %vm950 = vcmask 1047616
  %951 = vrot.lane.b32.xlu0 %v924, 8
  %v952 = vpop.permute.xlu0 %951
  %v953 = vsel %vm950, %v952, %v924
  %954 = vrot.lane.b32.xlu0 %v930, 8
  %v955 = vpop.permute.xlu0 %954
  %v956 = vsel %vm950, %v955, %v930
  %957 = vrot.lane.b32.xlu0 %v953, 8
  %v958 = vpop.permute.xlu0 %957
  %959 = vrot.lane.b32.xlu0 %v956, 8
  %v960 = vpop.permute.xlu0 %959
  %v961 = vsel %vm950, %v958, %v924
  %v962 = vsel %vm950, %v960, %v930
  %v963 = vsel %vm937, %v924, %v945
  %v964 = vsel %vm938, %v930, %v944
  %v965 = vsel %vm939, %v924, %v948
  %v966 = vsel %vm940, %v930, %v949
  %969 = vrot.lane.b32.xlu0 %v961, 121
  %v970 = vpop.permute.xlu0 %969
  %971 = vrot.lane.b32.xlu0 %v962, 121
  %v972 = vpop.permute.xlu0 %971
  %v975 = vsel %vm43, %v924, %v970
  %v976 = vsel %vm43, %v930, %v972
  %977 = vrot.lane.b32.xlu0 %v961, 127
  %v978 = vpop.permute.xlu0 %977
  %979 = vrot.lane.b32.xlu0 %v962, 127
  %v980 = vpop.permute.xlu0 %979
  %v983 = vsel %vm941, %v924, %v978
  %v984 = vsel %vm941, %v930, %v980
  %v985 = vmul.f32 %v924, 2.0
  %v986 = vmul.f32 %v930, 2.0
  %v987 = vadd.f32 %v963, %v985
  %v988 = vadd.f32 %v964, %v986
  %v989 = vadd.f32 %v987, %v965
  %v990 = vadd.f32 %v988, %v966
  %v991 = vadd.f32 %v975, %v985
  %v992 = vadd.f32 %v976, %v986
  %v993 = vadd.f32 %v991, %v983
  %v994 = vadd.f32 %v992, %v984
  %995 = vrot.lane.b32.xlu0 %v989, 8
  %v996 = vpop.permute.xlu0 %995
  %v997 = vsel %vm950, %v996, %v989
  %998 = vrot.lane.b32.xlu0 %v990, 8
  %v999 = vpop.permute.xlu0 %998
  %v1000 = vsel %vm950, %v999, %v990
  %1001 = vrot.lane.b32.xlu0 %v997, 8
  %v1002 = vpop.permute.xlu0 %1001
  %1003 = vrot.lane.b32.xlu0 %v1000, 8
  %v1004 = vpop.permute.xlu0 %1003
  %v1005 = vsel %vm950, %v1002, %v989
  %v1006 = vsel %vm950, %v1004, %v990
  %1009 = vrot.lane.b32.xlu0 %v1005, 127
  %v1010 = vpop.permute.xlu0 %1009
  %1011 = vrot.lane.b32.xlu0 %v1006, 127
  %v1012 = vpop.permute.xlu0 %1011
  %v1015 = vsel %vm941, %v989, %v1010
  %v1016 = vsel %vm941, %v990, %v1012
  %1017 = vrot.lane.b32.xlu0 %v1005, 121
  %v1018 = vpop.permute.xlu0 %1017
  %1019 = vrot.lane.b32.xlu0 %v1006, 121
  %v1020 = vpop.permute.xlu0 %1019
  %v1023 = vsel %vm43, %v989, %v1018
  %v1024 = vsel %vm43, %v990, %v1020
  %v1025 = vsub.f32 %v1015, %v1023
  %v1026 = vsub.f32 %v1016, %v1024
  %v1027 = vmul.f32 %v1025, 0.125
  %v1028 = vmul.f32 %v1026, 0.125
  %v1029 = vrot.slane %v993, 1
  %v1030 = vrot.slane %v994, 1
  %v1031 = vsel %vm58, %v1029, %v1030
  %v1032 = vsel %vm58, %v1030, %v1029
  %v1033 = vsel %vm939, %v993, %v1031
  %v1034 = vsel %vm940, %v994, %v1032
  %v1035 = vrot.slane %v993, 7
  %v1036 = vrot.slane %v994, 7
  %v1037 = vsel %vm49, %v1035, %v1036
  %v1038 = vsel %vm49, %v1036, %v1035
  %v1039 = vsel %vm937, %v993, %v1038
  %v1040 = vsel %vm938, %v994, %v1037
  %v1041 = vsub.f32 %v1033, %v1039
  %v1042 = vsub.f32 %v1034, %v1040
  %v1043 = vmul.f32 %v1041, 0.125
  %v1044 = vmul.f32 %v1042, 0.125
  %v1045 = vsub.f32 %v1027, %v1028
  %v1046 = vsub.f32 %v1028, %v1027
  %v1047 = vand.u32 2147483647, %v1045
  %v1048 = vand.u32 2147483647, %v1046
  %v1049 = vsub.f32 %v1043, %v1044
  %v1050 = vsub.f32 %v1044, %v1043
  %v1051 = vand.u32 2147483647, %v1049
  %v1052 = vand.u32 2147483647, %v1050
  %vm1053 = vcmp.ne.f32.partialorder %v1028, 0.0
  %vm1054 = vcmp.ne.f32.partialorder %v1027, 0.0
  %vm1055 = vcmp.ne.f32.partialorder %v1044, 0.0
  %vm1056 = vcmp.ne.f32.partialorder %v1043, 0.0
  %vm1057 = vcmp.lt.s32.totalorder %v13, 8
  %vm1058 = vcmp.lt.s32.totalorder %v14, 8
  %v1059 = vsel %vm1057, 1, 0
  %v1060 = vsel %vm1058, 1, 0
  %v1061 = vcvt.s32.f32 %v1059
  %v1062 = vcvt.s32.f32 %v1060
  %v1063 = vsel %vm1053, 1, 0
  %v1064 = vsel %vm1054, 1, 0
  %v1065 = vcvt.s32.f32 %v1063
  %v1066 = vcvt.s32.f32 %v1064
  %v1067 = vmul.f32 %v1065, %v1061
  %v1068 = vmul.f32 %v1066, %v1062
  %v1069 = vsel %vm1055, 1, 0
  %v1070 = vsel %vm1056, 1, 0
  %v1071 = vcvt.s32.f32 %v1069
  %v1072 = vcvt.s32.f32 %v1070
  %v1073 = vmul.f32 %v1071, %v1061
  %v1074 = vmul.f32 %v1072, %v1062
  %v1075 = vmul.f32 %v1067, %v1047
  %v1076 = vmul.f32 %v1068, %v1048
  %v1077 = vmul.f32 %v1073, %v1051
  %v1078 = vmul.f32 %v1074, %v1052
  %v1079 = vadd.f32 %v1075, %v1077
  %v1080 = vadd.f32 %v1076, %v1078
  %vm1081 = vcmask 64512
  %v1082 = vsel %vm1081, %v1079, 0.0
  %v1083 = vsel %vm1081, %v1080, 0.0
  %v1084 = vadd.f32 %v1082, %v1083
  %1085 = vadd.xlane.f32.xlu0 %v1084
  %v1086 = vpop.xlane.xlu0 %1085
  %v1087 = vrot.slane %v1086, 4
  %v1088 = vadd.f32 %v1086, %v1087
  %v1089 = vrot.slane %v1088, 2
  %v1090 = vadd.f32 %v1088, %v1089
  %v1091 = vrot.slane %v1090, 1
  %v1092 = vadd.f32 %v1090, %v1091
  %s1093 = vtos %v1092
  %s1094 = sadd.f32 %s1093, 0.0
  %v1095 = vadd.f32 %v1067, %v1073
  %v1096 = vadd.f32 %v1068, %v1074
  %v1097 = vsel %vm1081, %v1095, 0.0
  %v1098 = vsel %vm1081, %v1096, 0.0
  %v1099 = vadd.f32 %v1097, %v1098
  %1100 = vadd.xlane.f32.xlu0 %v1099
  %v1101 = vpop.xlane.xlu0 %1100
  %v1102 = vrot.slane %v1101, 4
  %v1103 = vadd.f32 %v1101, %v1102
  %v1104 = vrot.slane %v1103, 2
  %v1105 = vadd.f32 %v1103, %v1104
  %v1106 = vrot.slane %v1105, 1
  %v1107 = vadd.f32 %v1105, %v1106
  %s1108 = vtos %v1107
  %s1109 = sadd.f32 %s1108, 0.0
  %v1110 = vsel %vm937, 0.0, %v945
  %v1111 = vsel %vm938, 0.0, %v944
  %v1112 = vsel %vm939, 0.0, %v948
  %v1113 = vsel %vm940, 0.0, %v949
  %v1114 = vadd.f32 %v1110, %v1112
  %v1115 = vadd.f32 %v1111, %v1113
  %v1116 = vmul.f32 %v1114, 0.25
  %v1117 = vmul.f32 %v1115, 0.25
  %v1118 = vmul.f32 %v924, 0.5
  %v1119 = vmul.f32 %v930, 0.5
  %v1120 = vadd.f32 %v1116, %v1118
  %v1121 = vadd.f32 %v1117, %v1119
  %1122 = vst.msk [vmem:[#allocation2] sm:$0xff] %vm1081, %v1120
  %1123 = vst.msk [vmem:[#allocation2 + $0x8] sm:$0xff] %vm1081, %v1121
  %v1124 = vld [vmem:[#allocation2] ss:$2 sm:$0xff]
  %v1126 = vsel %vm1081, %v1124, 0
  %1128 = vmatprep.subr.mxu0 0.0
  %1129 = vmatpush1.msra.mxu0 0.0
  %1130 = vmatprep.subr.mxu0 0.0
  %1131 = vmatpush1.msra.mxu0 0.0
  %1132 = vmatprep.subr.mxu0 0.0
  %1133 = vmatpush1.msra.mxu0 0.0
  %1134 = vmatprep.subr.mxu0 0.0
  %1135 = vmatpush1.msra.mxu0 0.0
  %1136 = vmatprep.subr.mxu0 0.0
  %1137 = vmatpush1.msra.mxu0 0.0
  %1138 = vmatprep.subr.mxu0 0.0
  %1139 = vmatpush1.msra.mxu0 0.0
  %1140 = vmatprep.subr.mxu0 0.0
  %1141 = vmatpush1.msra.mxu0 0.0
  %1142 = vmatprep.subr.mxu0 0.0
  %1143 = vmatpush1.msra.mxu0 0.0
  %1144 = vmatprep.subr.mxu0 0.0
  %1145 = vmatpush1.msra.mxu0 0.0
  %1146 = vmatprep.subr.mxu0 0.0
  %1147 = vmatpush1.msra.mxu0 0.0
  %1148 = vmatprep.subr.mxu0 0.0
  %1149 = vmatpush1.msra.mxu0 0.0
  %1150 = vmatprep.subr.mxu0 0.0
  %1151 = vmatpush1.msra.mxu0 0.0
  %1152 = vmatprep.subr.mxu0 0.0
  %1153 = vmatpush1.msra.mxu0 0.0
  %1154 = vmatprep.subr.mxu0 0.0
  %1155 = vmatpush1.msra.mxu0 0.0
  %1156 = vmatprep.subr.mxu0 0.0
  %1157 = vmatpush1.msra.mxu0 0.0
  %1158 = vmatprep.subr.mxu0 0.0
  %v1159 = vand.u32 %v423, 4294901760
  %1160 = vmatpush1.msra.mxu0 %v1159
  %1161 = vmatprep.subr.mxu0 0.0
  %1162 = vmatpush2.msra.mxu0 0.0
  %1163 = vmatprep.subr.mxu0 0.0
  %1164 = vmatpush2.msra.mxu0 0.0
  %1165 = vmatprep.subr.mxu0 0.0
  %1166 = vmatpush2.msra.mxu0 0.0
  %1167 = vmatprep.subr.mxu0 0.0
  %1168 = vmatpush2.msra.mxu0 0.0
  %1169 = vmatprep.subr.mxu0 0.0
  %1170 = vmatpush2.msra.mxu0 0.0
  %1171 = vmatprep.subr.mxu0 0.0
  %1172 = vmatpush2.msra.mxu0 0.0
  %1173 = vmatprep.subr.mxu0 0.0
  %1174 = vmatpush2.msra.mxu0 0.0
  %1175 = vmatprep.subr.mxu0 0.0
  %1176 = vmatpush2.msra.mxu0 0.0
  %1177 = vmatprep.subr.mxu0 0.0
  %1178 = vmatpush2.msra.mxu0 0.0
  %1179 = vmatprep.subr.mxu0 0.0
  %1180 = vmatpush2.msra.mxu0 0.0
  %1181 = vmatprep.subr.mxu0 0.0
  %1182 = vmatpush2.msra.mxu0 0.0
  %1183 = vmatprep.subr.mxu0 0.0
  %1184 = vmatpush2.msra.mxu0 0.0
  %1185 = vmatprep.subr.mxu0 0.0
  %1186 = vmatpush2.msra.mxu0 0.0
  %1187 = vmatprep.subr.mxu0 0.0
  %1188 = vmatpush2.msra.mxu0 0.0
  %1189 = vmatprep.subr.mxu0 0.0
  %1190 = vmatpush2.msra.mxu0 0.0
  %1191 = vmatprep.subr.mxu0 0.0
  %1192 = vmatpush2.msra.mxu0 0.0
  %1193 = vmatprep.mubr.f32.mxu0 0.0
  %v1194 = vand.u32 %v1126, 4294901760
  %v1195 = vsub.f32 %v1126, %v1194
  %v1196 = vand.u32 %v1195, 4294901760
  %v1197 = vsub.f32 %v1195, %v1196
  %v1198 = vand.u32 %v1197, 4294901760
  %1199 = vmatmul.mubr.f32.gmra.mxu0 %v1198
  %v1200 = vpop.f32.mrf.mxu0
  %v1201 = vadd.f32 0.0, %v1200
  %v1202 = vpop.f32.mrf.mxu0
  %1203 = vdwg.mxu0
  %1204 = vmatprep.subr.mxu0 0.0
  %1205 = vmatpush1.msra.mxu0 0.0
  %1206 = vmatprep.subr.mxu0 0.0
  %1207 = vmatpush1.msra.mxu0 0.0
  %1208 = vmatprep.subr.mxu0 0.0
  %1209 = vmatpush1.msra.mxu0 0.0
  %1210 = vmatprep.subr.mxu0 0.0
  %1211 = vmatpush1.msra.mxu0 0.0
  %1212 = vmatprep.subr.mxu0 0.0
  %1213 = vmatpush1.msra.mxu0 0.0
  %1214 = vmatprep.subr.mxu0 0.0
  %1215 = vmatpush1.msra.mxu0 0.0
  %1216 = vmatprep.subr.mxu0 0.0
  %1217 = vmatpush1.msra.mxu0 0.0
  %1218 = vmatprep.subr.mxu0 0.0
  %1219 = vmatpush1.msra.mxu0 0.0
  %1220 = vmatprep.subr.mxu0 0.0
  %1221 = vmatpush1.msra.mxu0 0.0
  %1222 = vmatprep.subr.mxu0 0.0
  %1223 = vmatpush1.msra.mxu0 0.0
  %1224 = vmatprep.subr.mxu0 0.0
  %1225 = vmatpush1.msra.mxu0 0.0
  %1226 = vmatprep.subr.mxu0 0.0
  %1227 = vmatpush1.msra.mxu0 0.0
  %1228 = vmatprep.subr.mxu0 0.0
  %1229 = vmatpush1.msra.mxu0 0.0
  %1230 = vmatprep.subr.mxu0 0.0
  %1231 = vmatpush1.msra.mxu0 0.0
  %1232 = vmatprep.subr.mxu0 0.0
  %1233 = vmatpush1.msra.mxu0 0.0
  %1234 = vmatprep.subr.mxu0 0.0
  %v1235 = vand.u32 %v423, 4294901760
  %v1236 = vsub.f32 %v423, %v1235
  %v1237 = vand.u32 %v1236, 4294901760
  %v1238 = vsub.f32 %v1236, %v1237
  %v1239 = vand.u32 %v1238, 4294901760
  %1240 = vmatpush1.msra.mxu0 %v1239
  %1241 = vmatprep.subr.mxu0 0.0
  %1242 = vmatpush2.msra.mxu0 0.0
  %1243 = vmatprep.subr.mxu0 0.0
  %1244 = vmatpush2.msra.mxu0 0.0
  %1245 = vmatprep.subr.mxu0 0.0
  %1246 = vmatpush2.msra.mxu0 0.0
  %1247 = vmatprep.subr.mxu0 0.0
  %1248 = vmatpush2.msra.mxu0 0.0
  %1249 = vmatprep.subr.mxu0 0.0
  %1250 = vmatpush2.msra.mxu0 0.0
  %1251 = vmatprep.subr.mxu0 0.0
  %1252 = vmatpush2.msra.mxu0 0.0
  %1253 = vmatprep.subr.mxu0 0.0
  %1254 = vmatpush2.msra.mxu0 0.0
  %1255 = vmatprep.subr.mxu0 0.0
  %1256 = vmatpush2.msra.mxu0 0.0
  %1257 = vmatprep.subr.mxu0 0.0
  %1258 = vmatpush2.msra.mxu0 0.0
  %1259 = vmatprep.subr.mxu0 0.0
  %1260 = vmatpush2.msra.mxu0 0.0
  %1261 = vmatprep.subr.mxu0 0.0
  %1262 = vmatpush2.msra.mxu0 0.0
  %1263 = vmatprep.subr.mxu0 0.0
  %1264 = vmatpush2.msra.mxu0 0.0
  %1265 = vmatprep.subr.mxu0 0.0
  %1266 = vmatpush2.msra.mxu0 0.0
  %1267 = vmatprep.subr.mxu0 0.0
  %1268 = vmatpush2.msra.mxu0 0.0
  %1269 = vmatprep.subr.mxu0 0.0
  %1270 = vmatpush2.msra.mxu0 0.0
  %1271 = vmatprep.subr.mxu0 0.0
  %1272 = vmatpush2.msra.mxu0 0.0
  %1273 = vmatprep.mubr.f32.mxu0 0.0
  %v1274 = vand.u32 %v1126, 4294901760
  %1275 = vmatmul.mubr.f32.gmra.mxu0 %v1274
  %v1276 = vpop.f32.mrf.mxu0
  %v1277 = vadd.f32 %v1201, %v1276
  %v1278 = vpop.f32.mrf.mxu0
  %1279 = vdwg.mxu0
  %1280 = vmatprep.subr.mxu0 0.0
  %1281 = vmatpush1.msra.mxu0 0.0
  %1282 = vmatprep.subr.mxu0 0.0
  %1283 = vmatpush1.msra.mxu0 0.0
  %1284 = vmatprep.subr.mxu0 0.0
  %1285 = vmatpush1.msra.mxu0 0.0
  %1286 = vmatprep.subr.mxu0 0.0
  %1287 = vmatpush1.msra.mxu0 0.0
  %1288 = vmatprep.subr.mxu0 0.0
  %1289 = vmatpush1.msra.mxu0 0.0
  %1290 = vmatprep.subr.mxu0 0.0
  %1291 = vmatpush1.msra.mxu0 0.0
  %1292 = vmatprep.subr.mxu0 0.0
  %1293 = vmatpush1.msra.mxu0 0.0
  %1294 = vmatprep.subr.mxu0 0.0
  %1295 = vmatpush1.msra.mxu0 0.0
  %1296 = vmatprep.subr.mxu0 0.0
  %1297 = vmatpush1.msra.mxu0 0.0
  %1298 = vmatprep.subr.mxu0 0.0
  %1299 = vmatpush1.msra.mxu0 0.0
  %1300 = vmatprep.subr.mxu0 0.0
  %1301 = vmatpush1.msra.mxu0 0.0
  %1302 = vmatprep.subr.mxu0 0.0
  %1303 = vmatpush1.msra.mxu0 0.0
  %1304 = vmatprep.subr.mxu0 0.0
  %1305 = vmatpush1.msra.mxu0 0.0
  %1306 = vmatprep.subr.mxu0 0.0
  %1307 = vmatpush1.msra.mxu0 0.0
  %1308 = vmatprep.subr.mxu0 0.0
  %1309 = vmatpush1.msra.mxu0 0.0
  %1310 = vmatprep.subr.mxu0 0.0
  %v1311 = vand.u32 %v423, 4294901760
  %v1312 = vsub.f32 %v423, %v1311
  %1313 = vmatpush1.msra.mxu0 %v1312
  %1314 = vmatprep.subr.mxu0 0.0
  %1315 = vmatpush2.msra.mxu0 0.0
  %1316 = vmatprep.subr.mxu0 0.0
  %1317 = vmatpush2.msra.mxu0 0.0
  %1318 = vmatprep.subr.mxu0 0.0
  %1319 = vmatpush2.msra.mxu0 0.0
  %1320 = vmatprep.subr.mxu0 0.0
  %1321 = vmatpush2.msra.mxu0 0.0
  %1322 = vmatprep.subr.mxu0 0.0
  %1323 = vmatpush2.msra.mxu0 0.0
  %1324 = vmatprep.subr.mxu0 0.0
  %1325 = vmatpush2.msra.mxu0 0.0
  %1326 = vmatprep.subr.mxu0 0.0
  %1327 = vmatpush2.msra.mxu0 0.0
  %1328 = vmatprep.subr.mxu0 0.0
  %1329 = vmatpush2.msra.mxu0 0.0
  %1330 = vmatprep.subr.mxu0 0.0
  %1331 = vmatpush2.msra.mxu0 0.0
  %1332 = vmatprep.subr.mxu0 0.0
  %1333 = vmatpush2.msra.mxu0 0.0
  %1334 = vmatprep.subr.mxu0 0.0
  %1335 = vmatpush2.msra.mxu0 0.0
  %1336 = vmatprep.subr.mxu0 0.0
  %1337 = vmatpush2.msra.mxu0 0.0
  %1338 = vmatprep.subr.mxu0 0.0
  %1339 = vmatpush2.msra.mxu0 0.0
  %1340 = vmatprep.subr.mxu0 0.0
  %1341 = vmatpush2.msra.mxu0 0.0
  %1342 = vmatprep.subr.mxu0 0.0
  %1343 = vmatpush2.msra.mxu0 0.0
  %1344 = vmatprep.subr.mxu0 0.0
  %1345 = vmatpush2.msra.mxu0 0.0
  %1346 = vmatprep.mubr.f32.mxu0 0.0
  %v1347 = vand.u32 %v1126, 4294901760
  %v1348 = vsub.f32 %v1126, %v1347
  %1349 = vmatmul.mubr.f32.gmra.mxu0 %v1348
  %v1350 = vpop.f32.mrf.mxu0
  %v1351 = vadd.f32 %v1277, %v1350
  %v1352 = vpop.f32.mrf.mxu0
  %1353 = vdwg.mxu0
  %1354 = vmatprep.subr.mxu0 0.0
  %1355 = vmatpush1.msra.mxu0 0.0
  %1356 = vmatprep.subr.mxu0 0.0
  %1357 = vmatpush1.msra.mxu0 0.0
  %1358 = vmatprep.subr.mxu0 0.0
  %1359 = vmatpush1.msra.mxu0 0.0
  %1360 = vmatprep.subr.mxu0 0.0
  %1361 = vmatpush1.msra.mxu0 0.0
  %1362 = vmatprep.subr.mxu0 0.0
  %1363 = vmatpush1.msra.mxu0 0.0
  %1364 = vmatprep.subr.mxu0 0.0
  %1365 = vmatpush1.msra.mxu0 0.0
  %1366 = vmatprep.subr.mxu0 0.0
  %1367 = vmatpush1.msra.mxu0 0.0
  %1368 = vmatprep.subr.mxu0 0.0
  %1369 = vmatpush1.msra.mxu0 0.0
  %1370 = vmatprep.subr.mxu0 0.0
  %1371 = vmatpush1.msra.mxu0 0.0
  %1372 = vmatprep.subr.mxu0 0.0
  %1373 = vmatpush1.msra.mxu0 0.0
  %1374 = vmatprep.subr.mxu0 0.0
  %1375 = vmatpush1.msra.mxu0 0.0
  %1376 = vmatprep.subr.mxu0 0.0
  %1377 = vmatpush1.msra.mxu0 0.0
  %1378 = vmatprep.subr.mxu0 0.0
  %1379 = vmatpush1.msra.mxu0 0.0
  %1380 = vmatprep.subr.mxu0 0.0
  %1381 = vmatpush1.msra.mxu0 0.0
  %1382 = vmatprep.subr.mxu0 0.0
  %1383 = vmatpush1.msra.mxu0 0.0
  %1384 = vmatprep.subr.mxu0 0.0
  %v1385 = vand.u32 %v423, 4294901760
  %1386 = vmatpush1.msra.mxu0 %v1385
  %1387 = vmatprep.subr.mxu0 0.0
  %1388 = vmatpush2.msra.mxu0 0.0
  %1389 = vmatprep.subr.mxu0 0.0
  %1390 = vmatpush2.msra.mxu0 0.0
  %1391 = vmatprep.subr.mxu0 0.0
  %1392 = vmatpush2.msra.mxu0 0.0
  %1393 = vmatprep.subr.mxu0 0.0
  %1394 = vmatpush2.msra.mxu0 0.0
  %1395 = vmatprep.subr.mxu0 0.0
  %1396 = vmatpush2.msra.mxu0 0.0
  %1397 = vmatprep.subr.mxu0 0.0
  %1398 = vmatpush2.msra.mxu0 0.0
  %1399 = vmatprep.subr.mxu0 0.0
  %1400 = vmatpush2.msra.mxu0 0.0
  %1401 = vmatprep.subr.mxu0 0.0
  %1402 = vmatpush2.msra.mxu0 0.0
  %1403 = vmatprep.subr.mxu0 0.0
  %1404 = vmatpush2.msra.mxu0 0.0
  %1405 = vmatprep.subr.mxu0 0.0
  %1406 = vmatpush2.msra.mxu0 0.0
  %1407 = vmatprep.subr.mxu0 0.0
  %1408 = vmatpush2.msra.mxu0 0.0
  %1409 = vmatprep.subr.mxu0 0.0
  %1410 = vmatpush2.msra.mxu0 0.0
  %1411 = vmatprep.subr.mxu0 0.0
  %1412 = vmatpush2.msra.mxu0 0.0
  %1413 = vmatprep.subr.mxu0 0.0
  %1414 = vmatpush2.msra.mxu0 0.0
  %1415 = vmatprep.subr.mxu0 0.0
  %1416 = vmatpush2.msra.mxu0 0.0
  %1417 = vmatprep.subr.mxu0 0.0
  %1418 = vmatpush2.msra.mxu0 0.0
  %1419 = vmatprep.mubr.f32.mxu0 0.0
  %v1420 = vand.u32 %v1126, 4294901760
  %v1421 = vsub.f32 %v1126, %v1420
  %v1422 = vand.u32 %v1421, 4294901760
  %1423 = vmatmul.mubr.f32.gmra.mxu0 %v1422
  %v1424 = vpop.f32.mrf.mxu0
  %v1425 = vadd.f32 %v1351, %v1424
  %v1426 = vpop.f32.mrf.mxu0
  %1427 = vdwg.mxu0
  %1428 = vmatprep.subr.mxu0 0.0
  %1429 = vmatpush1.msra.mxu0 0.0
  %1430 = vmatprep.subr.mxu0 0.0
  %1431 = vmatpush1.msra.mxu0 0.0
  %1432 = vmatprep.subr.mxu0 0.0
  %1433 = vmatpush1.msra.mxu0 0.0
  %1434 = vmatprep.subr.mxu0 0.0
  %1435 = vmatpush1.msra.mxu0 0.0
  %1436 = vmatprep.subr.mxu0 0.0
  %1437 = vmatpush1.msra.mxu0 0.0
  %1438 = vmatprep.subr.mxu0 0.0
  %1439 = vmatpush1.msra.mxu0 0.0
  %1440 = vmatprep.subr.mxu0 0.0
  %1441 = vmatpush1.msra.mxu0 0.0
  %1442 = vmatprep.subr.mxu0 0.0
  %1443 = vmatpush1.msra.mxu0 0.0
  %1444 = vmatprep.subr.mxu0 0.0
  %1445 = vmatpush1.msra.mxu0 0.0
  %1446 = vmatprep.subr.mxu0 0.0
  %1447 = vmatpush1.msra.mxu0 0.0
  %1448 = vmatprep.subr.mxu0 0.0
  %1449 = vmatpush1.msra.mxu0 0.0
  %1450 = vmatprep.subr.mxu0 0.0
  %1451 = vmatpush1.msra.mxu0 0.0
  %1452 = vmatprep.subr.mxu0 0.0
  %1453 = vmatpush1.msra.mxu0 0.0
  %1454 = vmatprep.subr.mxu0 0.0
  %1455 = vmatpush1.msra.mxu0 0.0
  %1456 = vmatprep.subr.mxu0 0.0
  %1457 = vmatpush1.msra.mxu0 0.0
  %1458 = vmatprep.subr.mxu0 0.0
  %v1459 = vand.u32 %v423, 4294901760
  %v1460 = vsub.f32 %v423, %v1459
  %v1461 = vand.u32 %v1460, 4294901760
  %1462 = vmatpush1.msra.mxu0 %v1461
  %1463 = vmatprep.subr.mxu0 0.0
  %1464 = vmatpush2.msra.mxu0 0.0
  %1465 = vmatprep.subr.mxu0 0.0
  %1466 = vmatpush2.msra.mxu0 0.0
  %1467 = vmatprep.subr.mxu0 0.0
  %1468 = vmatpush2.msra.mxu0 0.0
  %1469 = vmatprep.subr.mxu0 0.0
  %1470 = vmatpush2.msra.mxu0 0.0
  %1471 = vmatprep.subr.mxu0 0.0
  %1472 = vmatpush2.msra.mxu0 0.0
  %1473 = vmatprep.subr.mxu0 0.0
  %1474 = vmatpush2.msra.mxu0 0.0
  %1475 = vmatprep.subr.mxu0 0.0
  %1476 = vmatpush2.msra.mxu0 0.0
  %1477 = vmatprep.subr.mxu0 0.0
  %1478 = vmatpush2.msra.mxu0 0.0
  %1479 = vmatprep.subr.mxu0 0.0
  %1480 = vmatpush2.msra.mxu0 0.0
  %1481 = vmatprep.subr.mxu0 0.0
  %1482 = vmatpush2.msra.mxu0 0.0
  %1483 = vmatprep.subr.mxu0 0.0
  %1484 = vmatpush2.msra.mxu0 0.0
  %1485 = vmatprep.subr.mxu0 0.0
  %1486 = vmatpush2.msra.mxu0 0.0
  %1487 = vmatprep.subr.mxu0 0.0
  %1488 = vmatpush2.msra.mxu0 0.0
  %1489 = vmatprep.subr.mxu0 0.0
  %1490 = vmatpush2.msra.mxu0 0.0
  %1491 = vmatprep.subr.mxu0 0.0
  %1492 = vmatpush2.msra.mxu0 0.0
  %1493 = vmatprep.subr.mxu0 0.0
  %1494 = vmatpush2.msra.mxu0 0.0
  %1495 = vmatprep.mubr.f32.mxu0 0.0
  %v1496 = vand.u32 %v1126, 4294901760
  %1497 = vmatmul.mubr.f32.gmra.mxu0 %v1496
  %v1498 = vpop.f32.mrf.mxu0
  %v1499 = vadd.f32 %v1425, %v1498
  %v1500 = vpop.f32.mrf.mxu0
  %1501 = vdwg.mxu0
  %1502 = vmatprep.subr.mxu0 0.0
  %1503 = vmatpush1.msra.mxu0 0.0
  %1504 = vmatprep.subr.mxu0 0.0
  %1505 = vmatpush1.msra.mxu0 0.0
  %1506 = vmatprep.subr.mxu0 0.0
  %1507 = vmatpush1.msra.mxu0 0.0
  %1508 = vmatprep.subr.mxu0 0.0
  %1509 = vmatpush1.msra.mxu0 0.0
  %1510 = vmatprep.subr.mxu0 0.0
  %1511 = vmatpush1.msra.mxu0 0.0
  %1512 = vmatprep.subr.mxu0 0.0
  %1513 = vmatpush1.msra.mxu0 0.0
  %1514 = vmatprep.subr.mxu0 0.0
  %1515 = vmatpush1.msra.mxu0 0.0
  %1516 = vmatprep.subr.mxu0 0.0
  %1517 = vmatpush1.msra.mxu0 0.0
  %1518 = vmatprep.subr.mxu0 0.0
  %1519 = vmatpush1.msra.mxu0 0.0
  %1520 = vmatprep.subr.mxu0 0.0
  %1521 = vmatpush1.msra.mxu0 0.0
  %1522 = vmatprep.subr.mxu0 0.0
  %1523 = vmatpush1.msra.mxu0 0.0
  %1524 = vmatprep.subr.mxu0 0.0
  %1525 = vmatpush1.msra.mxu0 0.0
  %1526 = vmatprep.subr.mxu0 0.0
  %1527 = vmatpush1.msra.mxu0 0.0
  %1528 = vmatprep.subr.mxu0 0.0
  %1529 = vmatpush1.msra.mxu0 0.0
  %1530 = vmatprep.subr.mxu0 0.0
  %1531 = vmatpush1.msra.mxu0 0.0
  %1532 = vmatprep.subr.mxu0 0.0
  %v1533 = vand.u32 %v423, 4294901760
  %1534 = vmatpush1.msra.mxu0 %v1533
  %1535 = vmatprep.subr.mxu0 0.0
  %1536 = vmatpush2.msra.mxu0 0.0
  %1537 = vmatprep.subr.mxu0 0.0
  %1538 = vmatpush2.msra.mxu0 0.0
  %1539 = vmatprep.subr.mxu0 0.0
  %1540 = vmatpush2.msra.mxu0 0.0
  %1541 = vmatprep.subr.mxu0 0.0
  %1542 = vmatpush2.msra.mxu0 0.0
  %1543 = vmatprep.subr.mxu0 0.0
  %1544 = vmatpush2.msra.mxu0 0.0
  %1545 = vmatprep.subr.mxu0 0.0
  %1546 = vmatpush2.msra.mxu0 0.0
  %1547 = vmatprep.subr.mxu0 0.0
  %1548 = vmatpush2.msra.mxu0 0.0
  %1549 = vmatprep.subr.mxu0 0.0
  %1550 = vmatpush2.msra.mxu0 0.0
  %1551 = vmatprep.subr.mxu0 0.0
  %1552 = vmatpush2.msra.mxu0 0.0
  %1553 = vmatprep.subr.mxu0 0.0
  %1554 = vmatpush2.msra.mxu0 0.0
  %1555 = vmatprep.subr.mxu0 0.0
  %1556 = vmatpush2.msra.mxu0 0.0
  %1557 = vmatprep.subr.mxu0 0.0
  %1558 = vmatpush2.msra.mxu0 0.0
  %1559 = vmatprep.subr.mxu0 0.0
  %1560 = vmatpush2.msra.mxu0 0.0
  %1561 = vmatprep.subr.mxu0 0.0
  %1562 = vmatpush2.msra.mxu0 0.0
  %1563 = vmatprep.subr.mxu0 0.0
  %1564 = vmatpush2.msra.mxu0 0.0
  %1565 = vmatprep.subr.mxu0 0.0
  %1566 = vmatpush2.msra.mxu0 0.0
  %1567 = vmatprep.mubr.f32.mxu0 0.0
  %v1568 = vand.u32 %v1126, 4294901760
  %1569 = vmatmul.mubr.f32.gmra.mxu0 %v1568
  %v1570 = vpop.f32.mrf.mxu0
  %v1571 = vadd.f32 %v1499, %v1570
  %v1572 = vpop.f32.mrf.mxu0
  %1573 = vdwg.mxu0
  %vm1574 = vcmp.eq.s32.totalorder %v13, 3
  %vm1575 = vcmp.eq.s32.totalorder %v13, 4
  %vm1576 = vmor %vm19, %vm1575
  %vm1577 = vmor %vm1574, %vm933
  %vm1578 = vcmp.eq.s32.totalorder %v18, 3
  %v1579 = vrot.slane %v1571, 7
  %v1580 = vrot.slane %v1571, 1
  %vm1581 = vcmask 1047584
  %1582 = vrot.lane.b32.xlu0 %v1571, 4
  %v1583 = vpop.permute.xlu0 %1582
  %v1584 = vsel %vm1581, %v1583, %v1571
  %1585 = vrot.lane.b32.xlu0 %v1584, 4
  %v1586 = vpop.permute.xlu0 %1585
  %v1587 = vsel %vm1581, %v1586, %v1571
  %v1588 = vsel %vm1576, %v1571, %v1579
  %v1589 = vsel %vm1577, %v1571, %v1580
  %1591 = vrot.lane.b32.xlu0 %v1587, 125
  %v1592 = vpop.permute.xlu0 %1591
  %v1594 = vsel %vm43, %v1571, %v1592
  %1595 = vrot.lane.b32.xlu0 %v1587, 127
  %v1596 = vpop.permute.xlu0 %1595
  %v1598 = vsel %vm1578, %v1571, %v1596
  %v1599 = vmul.f32 %v1571, 2.0
  %v1600 = vadd.f32 %v1588, %v1599
  %v1601 = vadd.f32 %v1600, %v1589
  %v1602 = vadd.f32 %v1594, %v1599
  %v1603 = vadd.f32 %v1602, %v1598
  %1604 = vrot.lane.b32.xlu0 %v1601, 4
  %v1605 = vpop.permute.xlu0 %1604
  %v1606 = vsel %vm1581, %v1605, %v1601
  %1607 = vrot.lane.b32.xlu0 %v1606, 4
  %v1608 = vpop.permute.xlu0 %1607
  %v1609 = vsel %vm1581, %v1608, %v1601
  %1611 = vrot.lane.b32.xlu0 %v1609, 127
  %v1612 = vpop.permute.xlu0 %1611
  %v1614 = vsel %vm1578, %v1601, %v1612
  %1615 = vrot.lane.b32.xlu0 %v1609, 125
  %v1616 = vpop.permute.xlu0 %1615
  %v1618 = vsel %vm43, %v1601, %v1616
  %v1619 = vsub.f32 %v1614, %v1618
  %v1620 = vmul.f32 %v1619, 0.125
  %v1621 = vrot.slane %v1603, 1
  %v1622 = vsel %vm1577, %v1603, %v1621
  %v1623 = vrot.slane %v1603, 7
  %v1624 = vsel %vm1576, %v1603, %v1623
  %v1625 = vsub.f32 %v1622, %v1624
  %v1626 = vmul.f32 %v1625, 0.125
  %v1627 = vrot.slane %v1620, 4
  %v1628 = vrot.slane %v1626, 4
  %v1629 = vsub.f32 %v1620, %v1627
  %v1630 = vand.u32 2147483647, %v1629
  %v1631 = vsub.f32 %v1626, %v1628
  %v1632 = vand.u32 2147483647, %v1631
  %vm1633 = vcmp.ne.f32.partialorder %v1627, 0.0
  %vm1634 = vcmp.ne.f32.partialorder %v1628, 0.0
  %vm1635 = vcmp.lt.s32.totalorder %v13, 4
  %v1636 = vsel %vm1635, 1, 0
  %v1637 = vcvt.s32.f32 %v1636
  %v1638 = vsel %vm1633, 1, 0
  %v1639 = vcvt.s32.f32 %v1638
  %v1640 = vmul.f32 %v1639, %v1637
  %v1641 = vsel %vm1634, 1, 0
  %v1642 = vcvt.s32.f32 %v1641
  %v1643 = vmul.f32 %v1642, %v1637
  %v1644 = vmul.f32 %v1640, %v1630
  %v1645 = vmul.f32 %v1643, %v1632
  %v1646 = vadd.f32 %v1644, %v1645
  %vm1647 = vcmask 31744
  %v1648 = vsel %vm1647, %v1646, 0.0
  %1649 = vadd.xlane.f32.xlu0 %v1648
  %v1650 = vpop.xlane.xlu0 %1649
  %v1651 = vrot.slane %v1650, 4
  %v1652 = vadd.f32 %v1650, %v1651
  %v1653 = vrot.slane %v1652, 2
  %v1654 = vadd.f32 %v1652, %v1653
  %v1655 = vrot.slane %v1654, 1
  %v1656 = vadd.f32 %v1654, %v1655
  %s1657 = vtos %v1656
  %s1658 = sadd.f32 %s1657, 0.0
  %v1659 = vadd.f32 %v1640, %v1643
  %v1660 = vsel %vm1647, %v1659, 0.0
  %1661 = vadd.xlane.f32.xlu0 %v1660
  %v1662 = vpop.xlane.xlu0 %1661
  %v1663 = vrot.slane %v1662, 4
  %v1664 = vadd.f32 %v1662, %v1663
  %v1665 = vrot.slane %v1664, 2
  %v1666 = vadd.f32 %v1664, %v1665
  %v1667 = vrot.slane %v1666, 1
  %v1668 = vadd.f32 %v1666, %v1667
  %s1669 = vtos %v1668
  %s1670 = sadd.f32 %s1669, 0.0
  %v1671 = vsel %vm1576, 0.0, %v1579
  %v1672 = vsel %vm1577, 0.0, %v1580
  %v1673 = vadd.f32 %v1671, %v1672
  %v1674 = vmul.f32 %v1673, 0.25
  %v1675 = vmul.f32 %v1571, 0.5
  %v1676 = vadd.f32 %v1674, %v1675
  %1677 = vst.msk [vmem:[#allocation2] sm:$0xff] %vm1647, %v1676
  %v1678 = vld [vmem:[#allocation2] ss:$2 sm:$0xf]
  %v1680 = vsel %vm1647, %v1678, 0
  %vm1682 = vcmask 1043456
  %v1684 = vsel %vm1682, %v423, 0
  %1686 = vmatprep.subr.mxu0 0.0
  %1687 = vmatpush1.msra.mxu0 0.0
  %1688 = vmatprep.subr.mxu0 0.0
  %1689 = vmatpush1.msra.mxu0 0.0
  %1690 = vmatprep.subr.mxu0 0.0
  %1691 = vmatpush1.msra.mxu0 0.0
  %1692 = vmatprep.subr.mxu0 0.0
  %1693 = vmatpush1.msra.mxu0 0.0
  %1694 = vmatprep.subr.mxu0 0.0
  %1695 = vmatpush1.msra.mxu0 0.0
  %1696 = vmatprep.subr.mxu0 0.0
  %1697 = vmatpush1.msra.mxu0 0.0
  %1698 = vmatprep.subr.mxu0 0.0
  %1699 = vmatpush1.msra.mxu0 0.0
  %1700 = vmatprep.subr.mxu0 0.0
  %1701 = vmatpush1.msra.mxu0 0.0
  %1702 = vmatprep.subr.mxu0 0.0
  %1703 = vmatpush1.msra.mxu0 0.0
  %1704 = vmatprep.subr.mxu0 0.0
  %1705 = vmatpush1.msra.mxu0 0.0
  %1706 = vmatprep.subr.mxu0 0.0
  %1707 = vmatpush1.msra.mxu0 0.0
  %1708 = vmatprep.subr.mxu0 0.0
  %1709 = vmatpush1.msra.mxu0 0.0
  %1710 = vmatprep.subr.mxu0 0.0
  %1711 = vmatpush1.msra.mxu0 0.0
  %1712 = vmatprep.subr.mxu0 0.0
  %1713 = vmatpush1.msra.mxu0 0.0
  %1714 = vmatprep.subr.mxu0 0.0
  %1715 = vmatpush1.msra.mxu0 0.0
  %1716 = vmatprep.subr.mxu0 0.0
  %v1717 = vand.u32 %v1684, 4294901760
  %1718 = vmatpush1.msra.mxu0 %v1717
  %1719 = vmatprep.subr.mxu0 0.0
  %1720 = vmatpush2.msra.mxu0 0.0
  %1721 = vmatprep.subr.mxu0 0.0
  %1722 = vmatpush2.msra.mxu0 0.0
  %1723 = vmatprep.subr.mxu0 0.0
  %1724 = vmatpush2.msra.mxu0 0.0
  %1725 = vmatprep.subr.mxu0 0.0
  %1726 = vmatpush2.msra.mxu0 0.0
  %1727 = vmatprep.subr.mxu0 0.0
  %1728 = vmatpush2.msra.mxu0 0.0
  %1729 = vmatprep.subr.mxu0 0.0
  %1730 = vmatpush2.msra.mxu0 0.0
  %1731 = vmatprep.subr.mxu0 0.0
  %1732 = vmatpush2.msra.mxu0 0.0
  %1733 = vmatprep.subr.mxu0 0.0
  %1734 = vmatpush2.msra.mxu0 0.0
  %1735 = vmatprep.subr.mxu0 0.0
  %1736 = vmatpush2.msra.mxu0 0.0
  %1737 = vmatprep.subr.mxu0 0.0
  %1738 = vmatpush2.msra.mxu0 0.0
  %1739 = vmatprep.subr.mxu0 0.0
  %1740 = vmatpush2.msra.mxu0 0.0
  %1741 = vmatprep.subr.mxu0 0.0
  %1742 = vmatpush2.msra.mxu0 0.0
  %1743 = vmatprep.subr.mxu0 0.0
  %1744 = vmatpush2.msra.mxu0 0.0
  %1745 = vmatprep.subr.mxu0 0.0
  %1746 = vmatpush2.msra.mxu0 0.0
  %1747 = vmatprep.subr.mxu0 0.0
  %1748 = vmatpush2.msra.mxu0 0.0
  %1749 = vmatprep.subr.mxu0 0.0
  %1750 = vmatpush2.msra.mxu0 0.0
  %1751 = vmatprep.mubr.f32.mxu0 0.0
  %v1752 = vand.u32 %v1680, 4294901760
  %v1753 = vsub.f32 %v1680, %v1752
  %v1754 = vand.u32 %v1753, 4294901760
  %v1755 = vsub.f32 %v1753, %v1754
  %v1756 = vand.u32 %v1755, 4294901760
  %1757 = vmatmul.mubr.f32.gmra.mxu0 %v1756
  %v1758 = vpop.f32.mrf.mxu0
  %v1759 = vadd.f32 0.0, %v1758
  %v1760 = vpop.f32.mrf.mxu0
  %1761 = vdwg.mxu0
  %1762 = vmatprep.subr.mxu0 0.0
  %1763 = vmatpush1.msra.mxu0 0.0
  %1764 = vmatprep.subr.mxu0 0.0
  %1765 = vmatpush1.msra.mxu0 0.0
  %1766 = vmatprep.subr.mxu0 0.0
  %1767 = vmatpush1.msra.mxu0 0.0
  %1768 = vmatprep.subr.mxu0 0.0
  %1769 = vmatpush1.msra.mxu0 0.0
  %1770 = vmatprep.subr.mxu0 0.0
  %1771 = vmatpush1.msra.mxu0 0.0
  %1772 = vmatprep.subr.mxu0 0.0
  %1773 = vmatpush1.msra.mxu0 0.0
  %1774 = vmatprep.subr.mxu0 0.0
  %1775 = vmatpush1.msra.mxu0 0.0
  %1776 = vmatprep.subr.mxu0 0.0
  %1777 = vmatpush1.msra.mxu0 0.0
  %1778 = vmatprep.subr.mxu0 0.0
  %1779 = vmatpush1.msra.mxu0 0.0
  %1780 = vmatprep.subr.mxu0 0.0
  %1781 = vmatpush1.msra.mxu0 0.0
  %1782 = vmatprep.subr.mxu0 0.0
  %1783 = vmatpush1.msra.mxu0 0.0
  %1784 = vmatprep.subr.mxu0 0.0
  %1785 = vmatpush1.msra.mxu0 0.0
  %1786 = vmatprep.subr.mxu0 0.0
  %1787 = vmatpush1.msra.mxu0 0.0
  %1788 = vmatprep.subr.mxu0 0.0
  %1789 = vmatpush1.msra.mxu0 0.0
  %1790 = vmatprep.subr.mxu0 0.0
  %1791 = vmatpush1.msra.mxu0 0.0
  %1792 = vmatprep.subr.mxu0 0.0
  %v1793 = vand.u32 %v1684, 4294901760
  %v1794 = vsub.f32 %v1684, %v1793
  %v1795 = vand.u32 %v1794, 4294901760
  %v1796 = vsub.f32 %v1794, %v1795
  %v1797 = vand.u32 %v1796, 4294901760
  %1798 = vmatpush1.msra.mxu0 %v1797
  %1799 = vmatprep.subr.mxu0 0.0
  %1800 = vmatpush2.msra.mxu0 0.0
  %1801 = vmatprep.subr.mxu0 0.0
  %1802 = vmatpush2.msra.mxu0 0.0
  %1803 = vmatprep.subr.mxu0 0.0
  %1804 = vmatpush2.msra.mxu0 0.0
  %1805 = vmatprep.subr.mxu0 0.0
  %1806 = vmatpush2.msra.mxu0 0.0
  %1807 = vmatprep.subr.mxu0 0.0
  %1808 = vmatpush2.msra.mxu0 0.0
  %1809 = vmatprep.subr.mxu0 0.0
  %1810 = vmatpush2.msra.mxu0 0.0
  %1811 = vmatprep.subr.mxu0 0.0
  %1812 = vmatpush2.msra.mxu0 0.0
  %1813 = vmatprep.subr.mxu0 0.0
  %1814 = vmatpush2.msra.mxu0 0.0
  %1815 = vmatprep.subr.mxu0 0.0
  %1816 = vmatpush2.msra.mxu0 0.0
  %1817 = vmatprep.subr.mxu0 0.0
  %1818 = vmatpush2.msra.mxu0 0.0
  %1819 = vmatprep.subr.mxu0 0.0
  %1820 = vmatpush2.msra.mxu0 0.0
  %1821 = vmatprep.subr.mxu0 0.0
  %1822 = vmatpush2.msra.mxu0 0.0
  %1823 = vmatprep.subr.mxu0 0.0
  %1824 = vmatpush2.msra.mxu0 0.0
  %1825 = vmatprep.subr.mxu0 0.0
  %1826 = vmatpush2.msra.mxu0 0.0
  %1827 = vmatprep.subr.mxu0 0.0
  %1828 = vmatpush2.msra.mxu0 0.0
  %1829 = vmatprep.subr.mxu0 0.0
  %1830 = vmatpush2.msra.mxu0 0.0
  %1831 = vmatprep.mubr.f32.mxu0 0.0
  %v1832 = vand.u32 %v1680, 4294901760
  %1833 = vmatmul.mubr.f32.gmra.mxu0 %v1832
  %v1834 = vpop.f32.mrf.mxu0
  %v1835 = vadd.f32 %v1759, %v1834
  %v1836 = vpop.f32.mrf.mxu0
  %1837 = vdwg.mxu0
  %1838 = vmatprep.subr.mxu0 0.0
  %1839 = vmatpush1.msra.mxu0 0.0
  %1840 = vmatprep.subr.mxu0 0.0
  %1841 = vmatpush1.msra.mxu0 0.0
  %1842 = vmatprep.subr.mxu0 0.0
  %1843 = vmatpush1.msra.mxu0 0.0
  %1844 = vmatprep.subr.mxu0 0.0
  %1845 = vmatpush1.msra.mxu0 0.0
  %1846 = vmatprep.subr.mxu0 0.0
  %1847 = vmatpush1.msra.mxu0 0.0
  %1848 = vmatprep.subr.mxu0 0.0
  %1849 = vmatpush1.msra.mxu0 0.0
  %1850 = vmatprep.subr.mxu0 0.0
  %1851 = vmatpush1.msra.mxu0 0.0
  %1852 = vmatprep.subr.mxu0 0.0
  %1853 = vmatpush1.msra.mxu0 0.0
  %1854 = vmatprep.subr.mxu0 0.0
  %1855 = vmatpush1.msra.mxu0 0.0
  %1856 = vmatprep.subr.mxu0 0.0
  %1857 = vmatpush1.msra.mxu0 0.0
  %1858 = vmatprep.subr.mxu0 0.0
  %1859 = vmatpush1.msra.mxu0 0.0
  %1860 = vmatprep.subr.mxu0 0.0
  %1861 = vmatpush1.msra.mxu0 0.0
  %1862 = vmatprep.subr.mxu0 0.0
  %1863 = vmatpush1.msra.mxu0 0.0
  %1864 = vmatprep.subr.mxu0 0.0
  %1865 = vmatpush1.msra.mxu0 0.0
  %1866 = vmatprep.subr.mxu0 0.0
  %1867 = vmatpush1.msra.mxu0 0.0
  %1868 = vmatprep.subr.mxu0 0.0
  %v1869 = vand.u32 %v1684, 4294901760
  %v1870 = vsub.f32 %v1684, %v1869
  %1871 = vmatpush1.msra.mxu0 %v1870
  %1872 = vmatprep.subr.mxu0 0.0
  %1873 = vmatpush2.msra.mxu0 0.0
  %1874 = vmatprep.subr.mxu0 0.0
  %1875 = vmatpush2.msra.mxu0 0.0
  %1876 = vmatprep.subr.mxu0 0.0
  %1877 = vmatpush2.msra.mxu0 0.0
  %1878 = vmatprep.subr.mxu0 0.0
  %1879 = vmatpush2.msra.mxu0 0.0
  %1880 = vmatprep.subr.mxu0 0.0
  %1881 = vmatpush2.msra.mxu0 0.0
  %1882 = vmatprep.subr.mxu0 0.0
  %1883 = vmatpush2.msra.mxu0 0.0
  %1884 = vmatprep.subr.mxu0 0.0
  %1885 = vmatpush2.msra.mxu0 0.0
  %1886 = vmatprep.subr.mxu0 0.0
  %1887 = vmatpush2.msra.mxu0 0.0
  %1888 = vmatprep.subr.mxu0 0.0
  %1889 = vmatpush2.msra.mxu0 0.0
  %1890 = vmatprep.subr.mxu0 0.0
  %1891 = vmatpush2.msra.mxu0 0.0
  %1892 = vmatprep.subr.mxu0 0.0
  %1893 = vmatpush2.msra.mxu0 0.0
  %1894 = vmatprep.subr.mxu0 0.0
  %1895 = vmatpush2.msra.mxu0 0.0
  %1896 = vmatprep.subr.mxu0 0.0
  %1897 = vmatpush2.msra.mxu0 0.0
  %1898 = vmatprep.subr.mxu0 0.0
  %1899 = vmatpush2.msra.mxu0 0.0
  %1900 = vmatprep.subr.mxu0 0.0
  %1901 = vmatpush2.msra.mxu0 0.0
  %1902 = vmatprep.subr.mxu0 0.0
  %1903 = vmatpush2.msra.mxu0 0.0
  %1904 = vmatprep.mubr.f32.mxu0 0.0
  %v1905 = vand.u32 %v1680, 4294901760
  %v1906 = vsub.f32 %v1680, %v1905
  %1907 = vmatmul.mubr.f32.gmra.mxu0 %v1906
  %v1908 = vpop.f32.mrf.mxu0
  %v1909 = vadd.f32 %v1835, %v1908
  %v1910 = vpop.f32.mrf.mxu0
  %1911 = vdwg.mxu0
  %1912 = vmatprep.subr.mxu0 0.0
  %1913 = vmatpush1.msra.mxu0 0.0
  %1914 = vmatprep.subr.mxu0 0.0
  %1915 = vmatpush1.msra.mxu0 0.0
  %1916 = vmatprep.subr.mxu0 0.0
  %1917 = vmatpush1.msra.mxu0 0.0
  %1918 = vmatprep.subr.mxu0 0.0
  %1919 = vmatpush1.msra.mxu0 0.0
  %1920 = vmatprep.subr.mxu0 0.0
  %1921 = vmatpush1.msra.mxu0 0.0
  %1922 = vmatprep.subr.mxu0 0.0
  %1923 = vmatpush1.msra.mxu0 0.0
  %1924 = vmatprep.subr.mxu0 0.0
  %1925 = vmatpush1.msra.mxu0 0.0
  %1926 = vmatprep.subr.mxu0 0.0
  %1927 = vmatpush1.msra.mxu0 0.0
  %1928 = vmatprep.subr.mxu0 0.0
  %1929 = vmatpush1.msra.mxu0 0.0
  %1930 = vmatprep.subr.mxu0 0.0
  %1931 = vmatpush1.msra.mxu0 0.0
  %1932 = vmatprep.subr.mxu0 0.0
  %1933 = vmatpush1.msra.mxu0 0.0
  %1934 = vmatprep.subr.mxu0 0.0
  %1935 = vmatpush1.msra.mxu0 0.0
  %1936 = vmatprep.subr.mxu0 0.0
  %1937 = vmatpush1.msra.mxu0 0.0
  %1938 = vmatprep.subr.mxu0 0.0
  %1939 = vmatpush1.msra.mxu0 0.0
  %1940 = vmatprep.subr.mxu0 0.0
  %1941 = vmatpush1.msra.mxu0 0.0
  %1942 = vmatprep.subr.mxu0 0.0
  %v1943 = vand.u32 %v1684, 4294901760
  %1944 = vmatpush1.msra.mxu0 %v1943
  %1945 = vmatprep.subr.mxu0 0.0
  %1946 = vmatpush2.msra.mxu0 0.0
  %1947 = vmatprep.subr.mxu0 0.0
  %1948 = vmatpush2.msra.mxu0 0.0
  %1949 = vmatprep.subr.mxu0 0.0
  %1950 = vmatpush2.msra.mxu0 0.0
  %1951 = vmatprep.subr.mxu0 0.0
  %1952 = vmatpush2.msra.mxu0 0.0
  %1953 = vmatprep.subr.mxu0 0.0
  %1954 = vmatpush2.msra.mxu0 0.0
  %1955 = vmatprep.subr.mxu0 0.0
  %1956 = vmatpush2.msra.mxu0 0.0
  %1957 = vmatprep.subr.mxu0 0.0
  %1958 = vmatpush2.msra.mxu0 0.0
  %1959 = vmatprep.subr.mxu0 0.0
  %1960 = vmatpush2.msra.mxu0 0.0
  %1961 = vmatprep.subr.mxu0 0.0
  %1962 = vmatpush2.msra.mxu0 0.0
  %1963 = vmatprep.subr.mxu0 0.0
  %1964 = vmatpush2.msra.mxu0 0.0
  %1965 = vmatprep.subr.mxu0 0.0
  %1966 = vmatpush2.msra.mxu0 0.0
  %1967 = vmatprep.subr.mxu0 0.0
  %1968 = vmatpush2.msra.mxu0 0.0
  %1969 = vmatprep.subr.mxu0 0.0
  %1970 = vmatpush2.msra.mxu0 0.0
  %1971 = vmatprep.subr.mxu0 0.0
  %1972 = vmatpush2.msra.mxu0 0.0
  %1973 = vmatprep.subr.mxu0 0.0
  %1974 = vmatpush2.msra.mxu0 0.0
  %1975 = vmatprep.subr.mxu0 0.0
  %1976 = vmatpush2.msra.mxu0 0.0
  %1977 = vmatprep.mubr.f32.mxu0 0.0
  %v1978 = vand.u32 %v1680, 4294901760
  %v1979 = vsub.f32 %v1680, %v1978
  %v1980 = vand.u32 %v1979, 4294901760
  %1981 = vmatmul.mubr.f32.gmra.mxu0 %v1980
  %v1982 = vpop.f32.mrf.mxu0
  %v1983 = vadd.f32 %v1909, %v1982
  %v1984 = vpop.f32.mrf.mxu0
  %1985 = vdwg.mxu0
  %1986 = vmatprep.subr.mxu0 0.0
  %1987 = vmatpush1.msra.mxu0 0.0
  %1988 = vmatprep.subr.mxu0 0.0
  %1989 = vmatpush1.msra.mxu0 0.0
  %1990 = vmatprep.subr.mxu0 0.0
  %1991 = vmatpush1.msra.mxu0 0.0
  %1992 = vmatprep.subr.mxu0 0.0
  %1993 = vmatpush1.msra.mxu0 0.0
  %1994 = vmatprep.subr.mxu0 0.0
  %1995 = vmatpush1.msra.mxu0 0.0
  %1996 = vmatprep.subr.mxu0 0.0
  %1997 = vmatpush1.msra.mxu0 0.0
  %1998 = vmatprep.subr.mxu0 0.0
  %1999 = vmatpush1.msra.mxu0 0.0
  %2000 = vmatprep.subr.mxu0 0.0
  %2001 = vmatpush1.msra.mxu0 0.0
  %2002 = vmatprep.subr.mxu0 0.0
  %2003 = vmatpush1.msra.mxu0 0.0
  %2004 = vmatprep.subr.mxu0 0.0
  %2005 = vmatpush1.msra.mxu0 0.0
  %2006 = vmatprep.subr.mxu0 0.0
  %2007 = vmatpush1.msra.mxu0 0.0
  %2008 = vmatprep.subr.mxu0 0.0
  %2009 = vmatpush1.msra.mxu0 0.0
  %2010 = vmatprep.subr.mxu0 0.0
  %2011 = vmatpush1.msra.mxu0 0.0
  %2012 = vmatprep.subr.mxu0 0.0
  %2013 = vmatpush1.msra.mxu0 0.0
  %2014 = vmatprep.subr.mxu0 0.0
  %2015 = vmatpush1.msra.mxu0 0.0
  %2016 = vmatprep.subr.mxu0 0.0
  %v2017 = vand.u32 %v1684, 4294901760
  %v2018 = vsub.f32 %v1684, %v2017
  %v2019 = vand.u32 %v2018, 4294901760
  %2020 = vmatpush1.msra.mxu0 %v2019
  %2021 = vmatprep.subr.mxu0 0.0
  %2022 = vmatpush2.msra.mxu0 0.0
  %2023 = vmatprep.subr.mxu0 0.0
  %2024 = vmatpush2.msra.mxu0 0.0
  %2025 = vmatprep.subr.mxu0 0.0
  %2026 = vmatpush2.msra.mxu0 0.0
  %2027 = vmatprep.subr.mxu0 0.0
  %2028 = vmatpush2.msra.mxu0 0.0
  %2029 = vmatprep.subr.mxu0 0.0
  %2030 = vmatpush2.msra.mxu0 0.0
  %2031 = vmatprep.subr.mxu0 0.0
  %2032 = vmatpush2.msra.mxu0 0.0
  %2033 = vmatprep.subr.mxu0 0.0
  %2034 = vmatpush2.msra.mxu0 0.0
  %2035 = vmatprep.subr.mxu0 0.0
  %2036 = vmatpush2.msra.mxu0 0.0
  %2037 = vmatprep.subr.mxu0 0.0
  %2038 = vmatpush2.msra.mxu0 0.0
  %2039 = vmatprep.subr.mxu0 0.0
  %2040 = vmatpush2.msra.mxu0 0.0
  %2041 = vmatprep.subr.mxu0 0.0
  %2042 = vmatpush2.msra.mxu0 0.0
  %2043 = vmatprep.subr.mxu0 0.0
  %2044 = vmatpush2.msra.mxu0 0.0
  %2045 = vmatprep.subr.mxu0 0.0
  %2046 = vmatpush2.msra.mxu0 0.0
  %2047 = vmatprep.subr.mxu0 0.0
  %2048 = vmatpush2.msra.mxu0 0.0
  %2049 = vmatprep.subr.mxu0 0.0
  %2050 = vmatpush2.msra.mxu0 0.0
  %2051 = vmatprep.subr.mxu0 0.0
  %2052 = vmatpush2.msra.mxu0 0.0
  %2053 = vmatprep.mubr.f32.mxu0 0.0
  %v2054 = vand.u32 %v1680, 4294901760
  %2055 = vmatmul.mubr.f32.gmra.mxu0 %v2054
  %v2056 = vpop.f32.mrf.mxu0
  %v2057 = vadd.f32 %v1983, %v2056
  %v2058 = vpop.f32.mrf.mxu0
  %2059 = vdwg.mxu0
  %2060 = vmatprep.subr.mxu0 0.0
  %2061 = vmatpush1.msra.mxu0 0.0
  %2062 = vmatprep.subr.mxu0 0.0
  %2063 = vmatpush1.msra.mxu0 0.0
  %2064 = vmatprep.subr.mxu0 0.0
  %2065 = vmatpush1.msra.mxu0 0.0
  %2066 = vmatprep.subr.mxu0 0.0
  %2067 = vmatpush1.msra.mxu0 0.0
  %2068 = vmatprep.subr.mxu0 0.0
  %2069 = vmatpush1.msra.mxu0 0.0
  %2070 = vmatprep.subr.mxu0 0.0
  %2071 = vmatpush1.msra.mxu0 0.0
  %2072 = vmatprep.subr.mxu0 0.0
  %2073 = vmatpush1.msra.mxu0 0.0
  %2074 = vmatprep.subr.mxu0 0.0
  %2075 = vmatpush1.msra.mxu0 0.0
  %2076 = vmatprep.subr.mxu0 0.0
  %2077 = vmatpush1.msra.mxu0 0.0
  %2078 = vmatprep.subr.mxu0 0.0
  %2079 = vmatpush1.msra.mxu0 0.0
  %2080 = vmatprep.subr.mxu0 0.0
  %2081 = vmatpush1.msra.mxu0 0.0
  %2082 = vmatprep.subr.mxu0 0.0
  %2083 = vmatpush1.msra.mxu0 0.0
  %2084 = vmatprep.subr.mxu0 0.0
  %2085 = vmatpush1.msra.mxu0 0.0
  %2086 = vmatprep.subr.mxu0 0.0
  %2087 = vmatpush1.msra.mxu0 0.0
  %2088 = vmatprep.subr.mxu0 0.0
  %2089 = vmatpush1.msra.mxu0 0.0
  %2090 = vmatprep.subr.mxu0 0.0
  %v2091 = vand.u32 %v1684, 4294901760
  %2092 = vmatpush1.msra.mxu0 %v2091
  %2093 = vmatprep.subr.mxu0 0.0
  %2094 = vmatpush2.msra.mxu0 0.0
  %2095 = vmatprep.subr.mxu0 0.0
  %2096 = vmatpush2.msra.mxu0 0.0
  %2097 = vmatprep.subr.mxu0 0.0
  %2098 = vmatpush2.msra.mxu0 0.0
  %2099 = vmatprep.subr.mxu0 0.0
  %2100 = vmatpush2.msra.mxu0 0.0
  %2101 = vmatprep.subr.mxu0 0.0
  %2102 = vmatpush2.msra.mxu0 0.0
  %2103 = vmatprep.subr.mxu0 0.0
  %2104 = vmatpush2.msra.mxu0 0.0
  %2105 = vmatprep.subr.mxu0 0.0
  %2106 = vmatpush2.msra.mxu0 0.0
  %2107 = vmatprep.subr.mxu0 0.0
  %2108 = vmatpush2.msra.mxu0 0.0
  %2109 = vmatprep.subr.mxu0 0.0
  %2110 = vmatpush2.msra.mxu0 0.0
  %2111 = vmatprep.subr.mxu0 0.0
  %2112 = vmatpush2.msra.mxu0 0.0
  %2113 = vmatprep.subr.mxu0 0.0
  %2114 = vmatpush2.msra.mxu0 0.0
  %2115 = vmatprep.subr.mxu0 0.0
  %2116 = vmatpush2.msra.mxu0 0.0
  %2117 = vmatprep.subr.mxu0 0.0
  %2118 = vmatpush2.msra.mxu0 0.0
  %2119 = vmatprep.subr.mxu0 0.0
  %2120 = vmatpush2.msra.mxu0 0.0
  %2121 = vmatprep.subr.mxu0 0.0
  %2122 = vmatpush2.msra.mxu0 0.0
  %2123 = vmatprep.subr.mxu0 0.0
  %2124 = vmatpush2.msra.mxu0 0.0
  %2125 = vmatprep.mubr.f32.mxu0 0.0
  %v2126 = vand.u32 %v1680, 4294901760
  %2127 = vmatmul.mubr.f32.gmra.mxu0 %v2126
  %v2128 = vpop.f32.mrf.mxu0
  %v2129 = vadd.f32 %v2057, %v2128
  %v2130 = vpop.f32.mrf.mxu0
  %2131 = vdwg.mxu0
  %vm2132 = vcmp.eq.s32.totalorder %v13, 1
  %vm2133 = vcmp.eq.s32.totalorder %v13, 2
  %vm2134 = vmor %vm19, %vm2133
  %vm2135 = vmor %vm2132, %vm1574
  %vm2136 = vcmp.eq.s32.totalorder %v18, 1
  %vm2137 = vcmask 1047556
  %v2138 = vrot.slane %v2129, 4
  %v2139 = vsel %vm2137, %v2138, %v2129
  %v2140 = vrot.slane %v2139, 4
  %v2141 = vsel %vm2137, %v2140, %v2129
  %vm2142 = vcmask 1047568
  %2143 = vrot.lane.b32.xlu0 %v2129, 2
  %v2144 = vpop.permute.xlu0 %2143
  %v2145 = vsel %vm2142, %v2144, %v2129
  %2146 = vrot.lane.b32.xlu0 %v2145, 2
  %v2147 = vpop.permute.xlu0 %2146
  %v2148 = vsel %vm2142, %v2147, %v2129
  %v2150 = vrot.slane %v2141, 3
  %v2152 = vsel %vm2134, %v2129, %v2150
  %v2153 = vrot.slane %v2141, 1
  %v2155 = vsel %vm2135, %v2129, %v2153
  %2157 = vrot.lane.b32.xlu0 %v2148, 127
  %v2158 = vpop.permute.xlu0 %2157
  %v2160 = vsel %vm43, %v2129, %v2158
  %v2161 = vsel %vm2136, %v2129, %v2158
  %v2162 = vmul.f32 %v2129, 2.0
  %v2163 = vadd.f32 %v2152, %v2162
  %v2164 = vadd.f32 %v2163, %v2155
  %v2165 = vadd.f32 %v2160, %v2162
  %v2166 = vadd.f32 %v2165, %v2161
  %2167 = vrot.lane.b32.xlu0 %v2164, 2
  %v2168 = vpop.permute.xlu0 %2167
  %v2169 = vsel %vm2142, %v2168, %v2164
  %2170 = vrot.lane.b32.xlu0 %v2169, 2
  %v2171 = vpop.permute.xlu0 %2170
  %v2172 = vsel %vm2142, %v2171, %v2164
  %2174 = vrot.lane.b32.xlu0 %v2172, 127
  %v2175 = vpop.permute.xlu0 %2174
  %v2177 = vsel %vm2136, %v2164, %v2175
  %v2178 = vsel %vm43, %v2164, %v2175
  %v2179 = vsub.f32 %v2177, %v2178
  %v2180 = vmul.f32 %v2179, 0.125
  %v2181 = vrot.slane %v2166, 4
  %v2182 = vsel %vm2137, %v2181, %v2166
  %v2183 = vrot.slane %v2182, 4
  %v2184 = vsel %vm2137, %v2183, %v2166
  %v2186 = vrot.slane %v2184, 1
  %v2188 = vsel %vm2135, %v2166, %v2186
  %v2189 = vrot.slane %v2184, 3
  %v2191 = vsel %vm2134, %v2166, %v2189
  %v2192 = vsub.f32 %v2188, %v2191
  %v2193 = vmul.f32 %v2192, 0.125
  %v2194 = vrot.slane %v2180, 4
  %v2195 = vsel %vm2137, %v2194, %v2180
  %v2196 = vrot.slane %v2195, 4
  %v2197 = vsel %vm2137, %v2196, %v2180
  %v2198 = vrot.slane %v2193, 4
  %v2199 = vsel %vm2137, %v2198, %v2193
  %v2200 = vrot.slane %v2199, 4
  %v2201 = vsel %vm2137, %v2200, %v2193
  %v2203 = vrot.slane %v2197, 2
  %v2205 = vsub.f32 %v2180, %v2203
  %v2206 = vand.u32 2147483647, %v2205
  %v2208 = vrot.slane %v2201, 2
  %v2210 = vsub.f32 %v2193, %v2208
  %v2211 = vand.u32 2147483647, %v2210
  %vm2212 = vcmp.ne.f32.partialorder %v2197, 0.0
  %vm2213 = vcmp.ne.f32.partialorder %v2201, 0.0
  %vm2214 = vcmp.lt.s32.totalorder %v13, 2
  %v2215 = vsel %vm2214, 1, 0
  %v2216 = vcvt.s32.f32 %v2215
  %v2217 = vsel %vm2212, 1, 0
  %v2218 = vcvt.s32.f32 %v2217
  %v2220 = vrot.slane %v2216, 6
  %v2222 = vmul.f32 %v2218, %v2220
  %v2223 = vsel %vm2213, 1, 0
  %v2224 = vcvt.s32.f32 %v2223
  %v2225 = vmul.f32 %v2224, %v2220
  %v2227 = vrot.slane %v2206, 6
  %v2229 = vmul.f32 %v2222, %v2227
  %v2231 = vrot.slane %v2211, 6
  %v2233 = vmul.f32 %v2225, %v2231
  %v2234 = vadd.f32 %v2229, %v2233
  %v2236 = vrot.slane %v2234, 2
  %vm2238 = vcmask 11264
  %v2239 = vsel %vm2238, %v2236, 0.0
  %2240 = vadd.xlane.f32.xlu0 %v2239
  %v2241 = vpop.xlane.xlu0 %2240
  %v2242 = vrot.slane %v2241, 4
  %v2243 = vadd.f32 %v2241, %v2242
  %v2244 = vrot.slane %v2243, 2
  %v2245 = vadd.f32 %v2243, %v2244
  %v2246 = vrot.slane %v2245, 1
  %v2247 = vadd.f32 %v2245, %v2246
  %s2248 = vtos %v2247
  %s2249 = sadd.f32 %s2248, 0.0
  %v2250 = vadd.f32 %v2222, %v2225
  %v2252 = vrot.slane %v2250, 2
  %v2254 = vsel %vm2238, %v2252, 0.0
  %2255 = vadd.xlane.f32.xlu0 %v2254
  %v2256 = vpop.xlane.xlu0 %2255
  %v2257 = vrot.slane %v2256, 4
  %v2258 = vadd.f32 %v2256, %v2257
  %v2259 = vrot.slane %v2258, 2
  %v2260 = vadd.f32 %v2258, %v2259
  %v2261 = vrot.slane %v2260, 1
  %v2262 = vadd.f32 %v2260, %v2261
  %s2263 = vtos %v2262
  %s2264 = sadd.f32 %s2263, 0.0
  %s2265 = scalar_lea.vmem %s0, 32
  %v2266 = vld [vmem:[%s2265] sm:$0xff]
  %v2267 = vld [vmem:[%s2265 + $0x8] sm:$0xff]
  %v2268 = vld [vmem:[%s2265 + $0x10] sm:$0xff]
  %v2269 = vld [vmem:[%s2265 + $0x18] sm:$0xff]
  %v2270 = vrot.slane %v2266, 7
  %v2271 = vrot.slane %v2267, 7
  %v2272 = vrot.slane %v2268, 7
  %v2273 = vrot.slane %v2269, 7
  %v2274 = vsel %vm49, %v2272, %v2273
  %v2275 = vsel %vm49, %v2271, %v2272
  %v2276 = vsel %vm49, %v2270, %v2271
  %v2277 = vsel %vm49, %v2273, %v2270
  %v2278 = vrot.slane %v2266, 1
  %v2279 = vrot.slane %v2267, 1
  %v2280 = vrot.slane %v2268, 1
  %v2281 = vrot.slane %v2269, 1
  %v2282 = vsel %vm58, %v2280, %v2281
  %v2283 = vsel %vm58, %v2279, %v2280
  %v2284 = vsel %vm58, %v2278, %v2279
  %v2285 = vsel %vm58, %v2281, %v2278
  %2286 = vrot.lane.b32.xlu0 %v2266, 16
  %v2287 = vpop.permute.xlu0 %2286
  %v2288 = vsel %vm63, %v2287, %v2266
  %2289 = vrot.lane.b32.xlu0 %v2267, 16
  %v2290 = vpop.permute.xlu0 %2289
  %v2291 = vsel %vm63, %v2290, %v2267
  %2292 = vrot.lane.b32.xlu0 %v2268, 16
  %v2293 = vpop.permute.xlu0 %2292
  %v2294 = vsel %vm63, %v2293, %v2268
  %2295 = vrot.lane.b32.xlu0 %v2269, 16
  %v2296 = vpop.permute.xlu0 %2295
  %v2297 = vsel %vm63, %v2296, %v2269
  %2298 = vrot.lane.b32.xlu0 %v2288, 16
  %v2299 = vpop.permute.xlu0 %2298
  %2300 = vrot.lane.b32.xlu0 %v2291, 16
  %v2301 = vpop.permute.xlu0 %2300
  %2302 = vrot.lane.b32.xlu0 %v2294, 16
  %v2303 = vpop.permute.xlu0 %2302
  %2304 = vrot.lane.b32.xlu0 %v2297, 16
  %v2305 = vpop.permute.xlu0 %2304
  %v2306 = vsel %vm63, %v2299, %v2266
  %v2307 = vsel %vm63, %v2301, %v2267
  %v2308 = vsel %vm63, %v2303, %v2268
  %v2309 = vsel %vm63, %v2305, %v2269
  %v2310 = vsel %vm31, %v2266, %v2277
  %v2311 = vsel %vm32, %v2267, %v2276
  %v2312 = vsel %vm33, %v2268, %v2275
  %v2313 = vsel %vm34, %v2269, %v2274
  %v2314 = vsel %vm39, %v2266, %v2284
  %v2315 = vsel %vm40, %v2267, %v2283
  %v2316 = vsel %vm41, %v2268, %v2282
  %v2317 = vsel %vm42, %v2269, %v2285
  %2322 = vrot.lane.b32.xlu0 %v2306, 113
  %v2323 = vpop.permute.xlu0 %2322
  %2324 = vrot.lane.b32.xlu0 %v2307, 113
  %v2325 = vpop.permute.xlu0 %2324
  %2326 = vrot.lane.b32.xlu0 %v2308, 113
  %v2327 = vpop.permute.xlu0 %2326
  %2328 = vrot.lane.b32.xlu0 %v2309, 113
  %v2329 = vpop.permute.xlu0 %2328
  %v2334 = vsel %vm43, %v2266, %v2323
  %v2335 = vsel %vm43, %v2267, %v2325
  %v2336 = vsel %vm43, %v2268, %v2327
  %v2337 = vsel %vm43, %v2269, %v2329
  %2338 = vrot.lane.b32.xlu0 %v2306, 127
  %v2339 = vpop.permute.xlu0 %2338
  %2340 = vrot.lane.b32.xlu0 %v2307, 127
  %v2341 = vpop.permute.xlu0 %2340
  %2342 = vrot.lane.b32.xlu0 %v2308, 127
  %v2343 = vpop.permute.xlu0 %2342
  %2344 = vrot.lane.b32.xlu0 %v2309, 127
  %v2345 = vpop.permute.xlu0 %2344
  %v2350 = vsel %vm44, %v2266, %v2339
  %v2351 = vsel %vm44, %v2267, %v2341
  %v2352 = vsel %vm44, %v2268, %v2343
  %v2353 = vsel %vm44, %v2269, %v2345
  %v2354 = vmul.f32 %v2266, 2.0
  %v2355 = vmul.f32 %v2267, 2.0
  %v2356 = vmul.f32 %v2268, 2.0
  %v2357 = vmul.f32 %v2269, 2.0
  %v2358 = vadd.f32 %v2310, %v2354
  %v2359 = vadd.f32 %v2311, %v2355
  %v2360 = vadd.f32 %v2312, %v2356
  %v2361 = vadd.f32 %v2313, %v2357
  %v2362 = vadd.f32 %v2358, %v2314
  %v2363 = vadd.f32 %v2359, %v2315
  %v2364 = vadd.f32 %v2360, %v2316
  %v2365 = vadd.f32 %v2361, %v2317
  %v2366 = vadd.f32 %v2334, %v2354
  %v2367 = vadd.f32 %v2335, %v2355
  %v2368 = vadd.f32 %v2336, %v2356
  %v2369 = vadd.f32 %v2337, %v2357
  %v2370 = vadd.f32 %v2366, %v2350
  %v2371 = vadd.f32 %v2367, %v2351
  %v2372 = vadd.f32 %v2368, %v2352
  %v2373 = vadd.f32 %v2369, %v2353
  %2374 = vrot.lane.b32.xlu0 %v2362, 16
  %v2375 = vpop.permute.xlu0 %2374
  %v2376 = vsel %vm63, %v2375, %v2362
  %2377 = vrot.lane.b32.xlu0 %v2363, 16
  %v2378 = vpop.permute.xlu0 %2377
  %v2379 = vsel %vm63, %v2378, %v2363
  %2380 = vrot.lane.b32.xlu0 %v2364, 16
  %v2381 = vpop.permute.xlu0 %2380
  %v2382 = vsel %vm63, %v2381, %v2364
  %2383 = vrot.lane.b32.xlu0 %v2365, 16
  %v2384 = vpop.permute.xlu0 %2383
  %v2385 = vsel %vm63, %v2384, %v2365
  %2386 = vrot.lane.b32.xlu0 %v2376, 16
  %v2387 = vpop.permute.xlu0 %2386
  %2388 = vrot.lane.b32.xlu0 %v2379, 16
  %v2389 = vpop.permute.xlu0 %2388
  %2390 = vrot.lane.b32.xlu0 %v2382, 16
  %v2391 = vpop.permute.xlu0 %2390
  %2392 = vrot.lane.b32.xlu0 %v2385, 16
  %v2393 = vpop.permute.xlu0 %2392
  %v2394 = vsel %vm63, %v2387, %v2362
  %v2395 = vsel %vm63, %v2389, %v2363
  %v2396 = vsel %vm63, %v2391, %v2364
  %v2397 = vsel %vm63, %v2393, %v2365
  %2402 = vrot.lane.b32.xlu0 %v2394, 127
  %v2403 = vpop.permute.xlu0 %2402
  %2404 = vrot.lane.b32.xlu0 %v2395, 127
  %v2405 = vpop.permute.xlu0 %2404
  %2406 = vrot.lane.b32.xlu0 %v2396, 127
  %v2407 = vpop.permute.xlu0 %2406
  %2408 = vrot.lane.b32.xlu0 %v2397, 127
  %v2409 = vpop.permute.xlu0 %2408
  %v2414 = vsel %vm44, %v2362, %v2403
  %v2415 = vsel %vm44, %v2363, %v2405
  %v2416 = vsel %vm44, %v2364, %v2407
  %v2417 = vsel %vm44, %v2365, %v2409
  %2418 = vrot.lane.b32.xlu0 %v2394, 113
  %v2419 = vpop.permute.xlu0 %2418
  %2420 = vrot.lane.b32.xlu0 %v2395, 113
  %v2421 = vpop.permute.xlu0 %2420
  %2422 = vrot.lane.b32.xlu0 %v2396, 113
  %v2423 = vpop.permute.xlu0 %2422
  %2424 = vrot.lane.b32.xlu0 %v2397, 113
  %v2425 = vpop.permute.xlu0 %2424
  %v2430 = vsel %vm43, %v2362, %v2419
  %v2431 = vsel %vm43, %v2363, %v2421
  %v2432 = vsel %vm43, %v2364, %v2423
  %v2433 = vsel %vm43, %v2365, %v2425
  %v2434 = vsub.f32 %v2414, %v2430
  %v2435 = vsub.f32 %v2415, %v2431
  %v2436 = vsub.f32 %v2416, %v2432
  %v2437 = vsub.f32 %v2417, %v2433
  %v2438 = vmul.f32 %v2434, 0.125
  %v2439 = vmul.f32 %v2435, 0.125
  %v2440 = vmul.f32 %v2436, 0.125
  %v2441 = vmul.f32 %v2437, 0.125
  %v2442 = vrot.slane %v2370, 1
  %v2443 = vrot.slane %v2371, 1
  %v2444 = vrot.slane %v2372, 1
  %v2445 = vrot.slane %v2373, 1
  %v2446 = vsel %vm58, %v2444, %v2445
  %v2447 = vsel %vm58, %v2443, %v2444
  %v2448 = vsel %vm58, %v2442, %v2443
  %v2449 = vsel %vm58, %v2445, %v2442
  %v2450 = vsel %vm39, %v2370, %v2448
  %v2451 = vsel %vm40, %v2371, %v2447
  %v2452 = vsel %vm41, %v2372, %v2446
  %v2453 = vsel %vm42, %v2373, %v2449
  %v2454 = vrot.slane %v2370, 7
  %v2455 = vrot.slane %v2371, 7
  %v2456 = vrot.slane %v2372, 7
  %v2457 = vrot.slane %v2373, 7
  %v2458 = vsel %vm49, %v2456, %v2457
  %v2459 = vsel %vm49, %v2455, %v2456
  %v2460 = vsel %vm49, %v2454, %v2455
  %v2461 = vsel %vm49, %v2457, %v2454
  %v2462 = vsel %vm31, %v2370, %v2461
  %v2463 = vsel %vm32, %v2371, %v2460
  %v2464 = vsel %vm33, %v2372, %v2459
  %v2465 = vsel %vm34, %v2373, %v2458
  %v2466 = vsub.f32 %v2450, %v2462
  %v2467 = vsub.f32 %v2451, %v2463
  %v2468 = vsub.f32 %v2452, %v2464
  %v2469 = vsub.f32 %v2453, %v2465
  %v2470 = vmul.f32 %v2466, 0.125
  %v2471 = vmul.f32 %v2467, 0.125
  %v2472 = vmul.f32 %v2468, 0.125
  %v2473 = vmul.f32 %v2469, 0.125
  %v2474 = vsub.f32 %v2438, %v2440
  %v2475 = vsub.f32 %v2439, %v2441
  %v2476 = vsub.f32 %v2440, %v2438
  %v2477 = vsub.f32 %v2441, %v2439
  %v2478 = vand.u32 2147483647, %v2474
  %v2479 = vand.u32 2147483647, %v2475
  %v2480 = vand.u32 2147483647, %v2476
  %v2481 = vand.u32 2147483647, %v2477
  %v2482 = vsub.f32 %v2470, %v2472
  %v2483 = vsub.f32 %v2471, %v2473
  %v2484 = vsub.f32 %v2472, %v2470
  %v2485 = vsub.f32 %v2473, %v2471
  %v2486 = vand.u32 2147483647, %v2482
  %v2487 = vand.u32 2147483647, %v2483
  %v2488 = vand.u32 2147483647, %v2484
  %v2489 = vand.u32 2147483647, %v2485
  %vm2490 = vcmp.ne.f32.partialorder %v2440, 0.0
  %vm2491 = vcmp.ne.f32.partialorder %v2441, 0.0
  %vm2492 = vcmp.ne.f32.partialorder %v2438, 0.0
  %vm2493 = vcmp.ne.f32.partialorder %v2439, 0.0
  %vm2494 = vcmp.ne.f32.partialorder %v2472, 0.0
  %vm2495 = vcmp.ne.f32.partialorder %v2473, 0.0
  %vm2496 = vcmp.ne.f32.partialorder %v2470, 0.0
  %vm2497 = vcmp.ne.f32.partialorder %v2471, 0.0
  %v2498 = vsel %vm2490, 1, 0
  %v2499 = vsel %vm2491, 1, 0
  %v2500 = vsel %vm2492, 1, 0
  %v2501 = vsel %vm2493, 1, 0
  %v2502 = vcvt.s32.f32 %v2498
  %v2503 = vcvt.s32.f32 %v2499
  %v2504 = vcvt.s32.f32 %v2500
  %v2505 = vcvt.s32.f32 %v2501
  %v2506 = vmul.f32 %v2502, %v284
  %v2507 = vmul.f32 %v2503, %v285
  %v2508 = vmul.f32 %v2504, %v286
  %v2509 = vmul.f32 %v2505, %v287
  %v2510 = vsel %vm2494, 1, 0
  %v2511 = vsel %vm2495, 1, 0
  %v2512 = vsel %vm2496, 1, 0
  %v2513 = vsel %vm2497, 1, 0
  %v2514 = vcvt.s32.f32 %v2510
  %v2515 = vcvt.s32.f32 %v2511
  %v2516 = vcvt.s32.f32 %v2512
  %v2517 = vcvt.s32.f32 %v2513
  %v2518 = vmul.f32 %v2514, %v284
  %v2519 = vmul.f32 %v2515, %v285
  %v2520 = vmul.f32 %v2516, %v286
  %v2521 = vmul.f32 %v2517, %v287
  %v2522 = vmul.f32 %v2506, %v2478
  %v2523 = vmul.f32 %v2507, %v2479
  %v2524 = vmul.f32 %v2508, %v2480
  %v2525 = vmul.f32 %v2509, %v2481
  %v2526 = vmul.f32 %v2518, %v2486
  %v2527 = vmul.f32 %v2519, %v2487
  %v2528 = vmul.f32 %v2520, %v2488
  %v2529 = vmul.f32 %v2521, %v2489
  %v2530 = vadd.f32 %v2522, %v2526
  %v2531 = vadd.f32 %v2523, %v2527
  %v2532 = vadd.f32 %v2524, %v2528
  %v2533 = vadd.f32 %v2525, %v2529
  %v2534 = vsel %vm324, %v2530, 0.0
  %v2535 = vsel %vm324, %v2531, 0.0
  %v2536 = vadd.f32 %v2534, %v2535
  %v2537 = vsel %vm324, %v2532, 0.0
  %v2538 = vadd.f32 %v2536, %v2537
  %v2539 = vsel %vm324, %v2533, 0.0
  %v2540 = vadd.f32 %v2538, %v2539
  %2541 = vadd.xlane.f32.xlu0 %v2540
  %v2542 = vpop.xlane.xlu0 %2541
  %v2543 = vrot.slane %v2542, 4
  %v2544 = vadd.f32 %v2542, %v2543
  %v2545 = vrot.slane %v2544, 2
  %v2546 = vadd.f32 %v2544, %v2545
  %v2547 = vrot.slane %v2546, 1
  %v2548 = vadd.f32 %v2546, %v2547
  %s2549 = vtos %v2548
  %s2550 = sadd.f32 %s341, %s2549
  %v2551 = vadd.f32 %v2506, %v2518
  %v2552 = vadd.f32 %v2507, %v2519
  %v2553 = vadd.f32 %v2508, %v2520
  %v2554 = vadd.f32 %v2509, %v2521
  %v2555 = vsel %vm324, %v2551, 0.0
  %v2556 = vsel %vm324, %v2552, 0.0
  %v2557 = vadd.f32 %v2555, %v2556
  %v2558 = vsel %vm324, %v2553, 0.0
  %v2559 = vadd.f32 %v2557, %v2558
  %v2560 = vsel %vm324, %v2554, 0.0
  %v2561 = vadd.f32 %v2559, %v2560
  %2562 = vadd.xlane.f32.xlu0 %v2561
  %v2563 = vpop.xlane.xlu0 %2562
  %v2564 = vrot.slane %v2563, 4
  %v2565 = vadd.f32 %v2563, %v2564
  %v2566 = vrot.slane %v2565, 2
  %v2567 = vadd.f32 %v2565, %v2566
  %v2568 = vrot.slane %v2567, 1
  %v2569 = vadd.f32 %v2567, %v2568
  %s2570 = vtos %v2569
  %s2571 = sadd.f32 %s362, %s2570
  %v2572 = vsel %vm31, 0.0, %v2277
  %v2573 = vsel %vm32, 0.0, %v2276
  %v2574 = vsel %vm33, 0.0, %v2275
  %v2575 = vsel %vm34, 0.0, %v2274
  %v2576 = vsel %vm39, 0.0, %v2284
  %v2577 = vsel %vm40, 0.0, %v2283
  %v2578 = vsel %vm41, 0.0, %v2282
  %v2579 = vsel %vm42, 0.0, %v2285
  %v2580 = vadd.f32 %v2572, %v2576
  %v2581 = vadd.f32 %v2573, %v2577
  %v2582 = vadd.f32 %v2574, %v2578
  %v2583 = vadd.f32 %v2575, %v2579
  %v2584 = vmul.f32 %v2580, 0.25
  %v2585 = vmul.f32 %v2581, 0.25
  %v2586 = vmul.f32 %v2582, 0.25
  %v2587 = vmul.f32 %v2583, 0.25
  %v2588 = vmul.f32 %v2266, 0.5
  %v2589 = vmul.f32 %v2267, 0.5
  %v2590 = vmul.f32 %v2268, 0.5
  %v2591 = vmul.f32 %v2269, 0.5
  %v2592 = vadd.f32 %v2584, %v2588
  %v2593 = vadd.f32 %v2585, %v2589
  %v2594 = vadd.f32 %v2586, %v2590
  %v2595 = vadd.f32 %v2587, %v2591
  %2596 = vst.msk [vmem:[#allocation2] sm:$0xff] %vm324, %v2592
  %2597 = vst.msk [vmem:[#allocation2 + $0x8] sm:$0xff] %vm324, %v2593
  %2598 = vst.msk [vmem:[#allocation2 + $0x10] sm:$0xff] %vm324, %v2594
  %2599 = vst.msk [vmem:[#allocation2 + $0x18] sm:$0xff] %vm324, %v2595
  %v2600 = vld [vmem:[#allocation2] ss:$2 sm:$0xff]
  %v2601 = vld [vmem:[%s392] ss:$2 sm:$0xff]
  %v2603 = vsel %vm324, %v2600, 0
  %v2606 = vsel %vm324, %v2601, 0
  %2608 = vmatprep.subr.mxu0 0.0
  %2609 = vmatpush1.msra.mxu0 0.0
  %2610 = vmatprep.subr.mxu0 0.0
  %2611 = vmatpush1.msra.mxu0 0.0
  %2612 = vmatprep.subr.mxu0 0.0
  %2613 = vmatpush1.msra.mxu0 0.0
  %2614 = vmatprep.subr.mxu0 0.0
  %2615 = vmatpush1.msra.mxu0 0.0
  %2616 = vmatprep.subr.mxu0 0.0
  %2617 = vmatpush1.msra.mxu0 0.0
  %2618 = vmatprep.subr.mxu0 0.0
  %2619 = vmatpush1.msra.mxu0 0.0
  %2620 = vmatprep.subr.mxu0 0.0
  %2621 = vmatpush1.msra.mxu0 0.0
  %2622 = vmatprep.subr.mxu0 0.0
  %2623 = vmatpush1.msra.mxu0 0.0
  %2624 = vmatprep.subr.mxu0 0.0
  %2625 = vmatpush1.msra.mxu0 0.0
  %2626 = vmatprep.subr.mxu0 0.0
  %2627 = vmatpush1.msra.mxu0 0.0
  %2628 = vmatprep.subr.mxu0 0.0
  %2629 = vmatpush1.msra.mxu0 0.0
  %2630 = vmatprep.subr.mxu0 0.0
  %2631 = vmatpush1.msra.mxu0 0.0
  %2632 = vmatprep.subr.mxu0 0.0
  %2633 = vmatpush1.msra.mxu0 0.0
  %2634 = vmatprep.subr.mxu0 0.0
  %2635 = vmatpush1.msra.mxu0 0.0
  %2636 = vmatprep.subr.mxu0 0.0
  %v2637 = vand.u32 %v424, 4294901760
  %2638 = vmatpush1.msra.mxu0 %v2637
  %2639 = vmatprep.subr.mxu0 0.0
  %v2640 = vand.u32 %v423, 4294901760
  %2641 = vmatpush1.msra.mxu0 %v2640
  %2642 = vmatprep.subr.mxu0 0.0
  %2643 = vmatpush2.msra.mxu0 0.0
  %2644 = vmatprep.subr.mxu0 0.0
  %2645 = vmatpush2.msra.mxu0 0.0
  %2646 = vmatprep.subr.mxu0 0.0
  %2647 = vmatpush2.msra.mxu0 0.0
  %2648 = vmatprep.subr.mxu0 0.0
  %2649 = vmatpush2.msra.mxu0 0.0
  %2650 = vmatprep.subr.mxu0 0.0
  %2651 = vmatpush2.msra.mxu0 0.0
  %2652 = vmatprep.subr.mxu0 0.0
  %2653 = vmatpush2.msra.mxu0 0.0
  %2654 = vmatprep.subr.mxu0 0.0
  %2655 = vmatpush2.msra.mxu0 0.0
  %2656 = vmatprep.subr.mxu0 0.0
  %2657 = vmatpush2.msra.mxu0 0.0
  %2658 = vmatprep.subr.mxu0 0.0
  %2659 = vmatpush2.msra.mxu0 0.0
  %2660 = vmatprep.subr.mxu0 0.0
  %2661 = vmatpush2.msra.mxu0 0.0
  %2662 = vmatprep.subr.mxu0 0.0
  %2663 = vmatpush2.msra.mxu0 0.0
  %2664 = vmatprep.subr.mxu0 0.0
  %2665 = vmatpush2.msra.mxu0 0.0
  %2666 = vmatprep.subr.mxu0 0.0
  %2667 = vmatpush2.msra.mxu0 0.0
  %2668 = vmatprep.subr.mxu0 0.0
  %2669 = vmatpush2.msra.mxu0 0.0
  %2670 = vmatprep.subr.mxu0 0.0
  %2671 = vmatpush2.msra.mxu0 0.0
  %2672 = vmatprep.subr.mxu0 0.0
  %2673 = vmatpush2.msra.mxu0 0.0
  %2674 = vmatprep.mubr.f32.mxu0 0.0
  %v2675 = vand.u32 %v2603, 4294901760
  %v2676 = vsub.f32 %v2603, %v2675
  %v2677 = vand.u32 %v2676, 4294901760
  %v2678 = vsub.f32 %v2676, %v2677
  %v2679 = vand.u32 %v2678, 4294901760
  %2680 = vmatmul.mubr.f32.gmra.mxu0 %v2679
  %v2681 = vpop.f32.mrf.mxu0
  %v2682 = vadd.f32 0.0, %v2681
  %v2683 = vpop.f32.mrf.mxu0
  %2684 = vmatprep.mubr.f32.mxu0 0.0
  %v2685 = vand.u32 %v2606, 4294901760
  %v2686 = vsub.f32 %v2606, %v2685
  %v2687 = vand.u32 %v2686, 4294901760
  %v2688 = vsub.f32 %v2686, %v2687
  %v2689 = vand.u32 %v2688, 4294901760
  %2690 = vmatmul.mubr.f32.gmra.mxu0 %v2689
  %v2691 = vpop.f32.mrf.mxu0
  %v2692 = vadd.f32 0.0, %v2691
  %v2693 = vpop.f32.mrf.mxu0
  %2694 = vdwg.mxu0
  %2695 = vmatprep.subr.mxu0 0.0
  %2696 = vmatpush1.msra.mxu0 0.0
  %2697 = vmatprep.subr.mxu0 0.0
  %2698 = vmatpush1.msra.mxu0 0.0
  %2699 = vmatprep.subr.mxu0 0.0
  %2700 = vmatpush1.msra.mxu0 0.0
  %2701 = vmatprep.subr.mxu0 0.0
  %2702 = vmatpush1.msra.mxu0 0.0
  %2703 = vmatprep.subr.mxu0 0.0
  %2704 = vmatpush1.msra.mxu0 0.0
  %2705 = vmatprep.subr.mxu0 0.0
  %2706 = vmatpush1.msra.mxu0 0.0
  %2707 = vmatprep.subr.mxu0 0.0
  %2708 = vmatpush1.msra.mxu0 0.0
  %2709 = vmatprep.subr.mxu0 0.0
  %2710 = vmatpush1.msra.mxu0 0.0
  %2711 = vmatprep.subr.mxu0 0.0
  %2712 = vmatpush1.msra.mxu0 0.0
  %2713 = vmatprep.subr.mxu0 0.0
  %2714 = vmatpush1.msra.mxu0 0.0
  %2715 = vmatprep.subr.mxu0 0.0
  %2716 = vmatpush1.msra.mxu0 0.0
  %2717 = vmatprep.subr.mxu0 0.0
  %2718 = vmatpush1.msra.mxu0 0.0
  %2719 = vmatprep.subr.mxu0 0.0
  %2720 = vmatpush1.msra.mxu0 0.0
  %2721 = vmatprep.subr.mxu0 0.0
  %2722 = vmatpush1.msra.mxu0 0.0
  %2723 = vmatprep.subr.mxu0 0.0
  %v2724 = vand.u32 %v424, 4294901760
  %v2725 = vsub.f32 %v424, %v2724
  %v2726 = vand.u32 %v2725, 4294901760
  %v2727 = vsub.f32 %v2725, %v2726
  %v2728 = vand.u32 %v2727, 4294901760
  %2729 = vmatpush1.msra.mxu0 %v2728
  %2730 = vmatprep.subr.mxu0 0.0
  %v2731 = vand.u32 %v423, 4294901760
  %v2732 = vsub.f32 %v423, %v2731
  %v2733 = vand.u32 %v2732, 4294901760
  %v2734 = vsub.f32 %v2732, %v2733
  %v2735 = vand.u32 %v2734, 4294901760
  %2736 = vmatpush1.msra.mxu0 %v2735
  %2737 = vmatprep.subr.mxu0 0.0
  %2738 = vmatpush2.msra.mxu0 0.0
  %2739 = vmatprep.subr.mxu0 0.0
  %2740 = vmatpush2.msra.mxu0 0.0
  %2741 = vmatprep.subr.mxu0 0.0
  %2742 = vmatpush2.msra.mxu0 0.0
  %2743 = vmatprep.subr.mxu0 0.0
  %2744 = vmatpush2.msra.mxu0 0.0
  %2745 = vmatprep.subr.mxu0 0.0
  %2746 = vmatpush2.msra.mxu0 0.0
  %2747 = vmatprep.subr.mxu0 0.0
  %2748 = vmatpush2.msra.mxu0 0.0
  %2749 = vmatprep.subr.mxu0 0.0
  %2750 = vmatpush2.msra.mxu0 0.0
  %2751 = vmatprep.subr.mxu0 0.0
  %2752 = vmatpush2.msra.mxu0 0.0
  %2753 = vmatprep.subr.mxu0 0.0
  %2754 = vmatpush2.msra.mxu0 0.0
  %2755 = vmatprep.subr.mxu0 0.0
  %2756 = vmatpush2.msra.mxu0 0.0
  %2757 = vmatprep.subr.mxu0 0.0
  %2758 = vmatpush2.msra.mxu0 0.0
  %2759 = vmatprep.subr.mxu0 0.0
  %2760 = vmatpush2.msra.mxu0 0.0
  %2761 = vmatprep.subr.mxu0 0.0
  %2762 = vmatpush2.msra.mxu0 0.0
  %2763 = vmatprep.subr.mxu0 0.0
  %2764 = vmatpush2.msra.mxu0 0.0
  %2765 = vmatprep.subr.mxu0 0.0
  %2766 = vmatpush2.msra.mxu0 0.0
  %2767 = vmatprep.subr.mxu0 0.0
  %2768 = vmatpush2.msra.mxu0 0.0
  %2769 = vmatprep.mubr.f32.mxu0 0.0
  %v2770 = vand.u32 %v2603, 4294901760
  %2771 = vmatmul.mubr.f32.gmra.mxu0 %v2770
  %v2772 = vpop.f32.mrf.mxu0
  %v2773 = vadd.f32 %v2682, %v2772
  %v2774 = vpop.f32.mrf.mxu0
  %2775 = vmatprep.mubr.f32.mxu0 0.0
  %v2776 = vand.u32 %v2606, 4294901760
  %2777 = vmatmul.mubr.f32.gmra.mxu0 %v2776
  %v2778 = vpop.f32.mrf.mxu0
  %v2779 = vadd.f32 %v2692, %v2778
  %v2780 = vpop.f32.mrf.mxu0
  %2781 = vdwg.mxu0
  %2782 = vmatprep.subr.mxu0 0.0
  %2783 = vmatpush1.msra.mxu0 0.0
  %2784 = vmatprep.subr.mxu0 0.0
  %2785 = vmatpush1.msra.mxu0 0.0
  %2786 = vmatprep.subr.mxu0 0.0
  %2787 = vmatpush1.msra.mxu0 0.0
  %2788 = vmatprep.subr.mxu0 0.0
  %2789 = vmatpush1.msra.mxu0 0.0
  %2790 = vmatprep.subr.mxu0 0.0
  %2791 = vmatpush1.msra.mxu0 0.0
  %2792 = vmatprep.subr.mxu0 0.0
  %2793 = vmatpush1.msra.mxu0 0.0
  %2794 = vmatprep.subr.mxu0 0.0
  %2795 = vmatpush1.msra.mxu0 0.0
  %2796 = vmatprep.subr.mxu0 0.0
  %2797 = vmatpush1.msra.mxu0 0.0
  %2798 = vmatprep.subr.mxu0 0.0
  %2799 = vmatpush1.msra.mxu0 0.0
  %2800 = vmatprep.subr.mxu0 0.0
  %2801 = vmatpush1.msra.mxu0 0.0
  %2802 = vmatprep.subr.mxu0 0.0
  %2803 = vmatpush1.msra.mxu0 0.0
  %2804 = vmatprep.subr.mxu0 0.0
  %2805 = vmatpush1.msra.mxu0 0.0
  %2806 = vmatprep.subr.mxu0 0.0
  %2807 = vmatpush1.msra.mxu0 0.0
  %2808 = vmatprep.subr.mxu0 0.0
  %2809 = vmatpush1.msra.mxu0 0.0
  %2810 = vmatprep.subr.mxu0 0.0
  %v2811 = vand.u32 %v424, 4294901760
  %v2812 = vsub.f32 %v424, %v2811
  %2813 = vmatpush1.msra.mxu0 %v2812
  %2814 = vmatprep.subr.mxu0 0.0
  %v2815 = vand.u32 %v423, 4294901760
  %v2816 = vsub.f32 %v423, %v2815
  %2817 = vmatpush1.msra.mxu0 %v2816
  %2818 = vmatprep.subr.mxu0 0.0
  %2819 = vmatpush2.msra.mxu0 0.0
  %2820 = vmatprep.subr.mxu0 0.0
  %2821 = vmatpush2.msra.mxu0 0.0
  %2822 = vmatprep.subr.mxu0 0.0
  %2823 = vmatpush2.msra.mxu0 0.0
  %2824 = vmatprep.subr.mxu0 0.0
  %2825 = vmatpush2.msra.mxu0 0.0
  %2826 = vmatprep.subr.mxu0 0.0
  %2827 = vmatpush2.msra.mxu0 0.0
  %2828 = vmatprep.subr.mxu0 0.0
  %2829 = vmatpush2.msra.mxu0 0.0
  %2830 = vmatprep.subr.mxu0 0.0
  %2831 = vmatpush2.msra.mxu0 0.0
  %2832 = vmatprep.subr.mxu0 0.0
  %2833 = vmatpush2.msra.mxu0 0.0
  %2834 = vmatprep.subr.mxu0 0.0
  %2835 = vmatpush2.msra.mxu0 0.0
  %2836 = vmatprep.subr.mxu0 0.0
  %2837 = vmatpush2.msra.mxu0 0.0
  %2838 = vmatprep.subr.mxu0 0.0
  %2839 = vmatpush2.msra.mxu0 0.0
  %2840 = vmatprep.subr.mxu0 0.0
  %2841 = vmatpush2.msra.mxu0 0.0
  %2842 = vmatprep.subr.mxu0 0.0
  %2843 = vmatpush2.msra.mxu0 0.0
  %2844 = vmatprep.subr.mxu0 0.0
  %2845 = vmatpush2.msra.mxu0 0.0
  %2846 = vmatprep.subr.mxu0 0.0
  %2847 = vmatpush2.msra.mxu0 0.0
  %2848 = vmatprep.subr.mxu0 0.0
  %2849 = vmatpush2.msra.mxu0 0.0
  %2850 = vmatprep.mubr.f32.mxu0 0.0
  %v2851 = vand.u32 %v2603, 4294901760
  %v2852 = vsub.f32 %v2603, %v2851
  %2853 = vmatmul.mubr.f32.gmra.mxu0 %v2852
  %v2854 = vpop.f32.mrf.mxu0
  %v2855 = vadd.f32 %v2773, %v2854
  %v2856 = vpop.f32.mrf.mxu0
  %2857 = vmatprep.mubr.f32.mxu0 0.0
  %v2858 = vand.u32 %v2606, 4294901760
  %v2859 = vsub.f32 %v2606, %v2858
  %2860 = vmatmul.mubr.f32.gmra.mxu0 %v2859
  %v2861 = vpop.f32.mrf.mxu0
  %v2862 = vadd.f32 %v2779, %v2861
  %v2863 = vpop.f32.mrf.mxu0
  %2864 = vdwg.mxu0
  %2865 = vmatprep.subr.mxu0 0.0
  %2866 = vmatpush1.msra.mxu0 0.0
  %2867 = vmatprep.subr.mxu0 0.0
  %2868 = vmatpush1.msra.mxu0 0.0
  %2869 = vmatprep.subr.mxu0 0.0
  %2870 = vmatpush1.msra.mxu0 0.0
  %2871 = vmatprep.subr.mxu0 0.0
  %2872 = vmatpush1.msra.mxu0 0.0
  %2873 = vmatprep.subr.mxu0 0.0
  %2874 = vmatpush1.msra.mxu0 0.0
  %2875 = vmatprep.subr.mxu0 0.0
  %2876 = vmatpush1.msra.mxu0 0.0
  %2877 = vmatprep.subr.mxu0 0.0
  %2878 = vmatpush1.msra.mxu0 0.0
  %2879 = vmatprep.subr.mxu0 0.0
  %2880 = vmatpush1.msra.mxu0 0.0
  %2881 = vmatprep.subr.mxu0 0.0
  %2882 = vmatpush1.msra.mxu0 0.0
  %2883 = vmatprep.subr.mxu0 0.0
  %2884 = vmatpush1.msra.mxu0 0.0
  %2885 = vmatprep.subr.mxu0 0.0
  %2886 = vmatpush1.msra.mxu0 0.0
  %2887 = vmatprep.subr.mxu0 0.0
  %2888 = vmatpush1.msra.mxu0 0.0
  %2889 = vmatprep.subr.mxu0 0.0
  %2890 = vmatpush1.msra.mxu0 0.0
  %2891 = vmatprep.subr.mxu0 0.0
  %2892 = vmatpush1.msra.mxu0 0.0
  %2893 = vmatprep.subr.mxu0 0.0
  %v2894 = vand.u32 %v424, 4294901760
  %2895 = vmatpush1.msra.mxu0 %v2894
  %2896 = vmatprep.subr.mxu0 0.0
  %v2897 = vand.u32 %v423, 4294901760
  %2898 = vmatpush1.msra.mxu0 %v2897
  %2899 = vmatprep.subr.mxu0 0.0
  %2900 = vmatpush2.msra.mxu0 0.0
  %2901 = vmatprep.subr.mxu0 0.0
  %2902 = vmatpush2.msra.mxu0 0.0
  %2903 = vmatprep.subr.mxu0 0.0
  %2904 = vmatpush2.msra.mxu0 0.0
  %2905 = vmatprep.subr.mxu0 0.0
  %2906 = vmatpush2.msra.mxu0 0.0
  %2907 = vmatprep.subr.mxu0 0.0
  %2908 = vmatpush2.msra.mxu0 0.0
  %2909 = vmatprep.subr.mxu0 0.0
  %2910 = vmatpush2.msra.mxu0 0.0
  %2911 = vmatprep.subr.mxu0 0.0
  %2912 = vmatpush2.msra.mxu0 0.0
  %2913 = vmatprep.subr.mxu0 0.0
  %2914 = vmatpush2.msra.mxu0 0.0
  %2915 = vmatprep.subr.mxu0 0.0
  %2916 = vmatpush2.msra.mxu0 0.0
  %2917 = vmatprep.subr.mxu0 0.0
  %2918 = vmatpush2.msra.mxu0 0.0
  %2919 = vmatprep.subr.mxu0 0.0
  %2920 = vmatpush2.msra.mxu0 0.0
  %2921 = vmatprep.subr.mxu0 0.0
  %2922 = vmatpush2.msra.mxu0 0.0
  %2923 = vmatprep.subr.mxu0 0.0
  %2924 = vmatpush2.msra.mxu0 0.0
  %2925 = vmatprep.subr.mxu0 0.0
  %2926 = vmatpush2.msra.mxu0 0.0
  %2927 = vmatprep.subr.mxu0 0.0
  %2928 = vmatpush2.msra.mxu0 0.0
  %2929 = vmatprep.subr.mxu0 0.0
  %2930 = vmatpush2.msra.mxu0 0.0
  %2931 = vmatprep.mubr.f32.mxu0 0.0
  %v2932 = vand.u32 %v2603, 4294901760
  %v2933 = vsub.f32 %v2603, %v2932
  %v2934 = vand.u32 %v2933, 4294901760
  %2935 = vmatmul.mubr.f32.gmra.mxu0 %v2934
  %v2936 = vpop.f32.mrf.mxu0
  %v2937 = vadd.f32 %v2855, %v2936
  %v2938 = vpop.f32.mrf.mxu0
  %2939 = vmatprep.mubr.f32.mxu0 0.0
  %v2940 = vand.u32 %v2606, 4294901760
  %v2941 = vsub.f32 %v2606, %v2940
  %v2942 = vand.u32 %v2941, 4294901760
  %2943 = vmatmul.mubr.f32.gmra.mxu0 %v2942
  %v2944 = vpop.f32.mrf.mxu0
  %v2945 = vadd.f32 %v2862, %v2944
  %v2946 = vpop.f32.mrf.mxu0
  %2947 = vdwg.mxu0
  %2948 = vmatprep.subr.mxu0 0.0
  %2949 = vmatpush1.msra.mxu0 0.0
  %2950 = vmatprep.subr.mxu0 0.0
  %2951 = vmatpush1.msra.mxu0 0.0
  %2952 = vmatprep.subr.mxu0 0.0
  %2953 = vmatpush1.msra.mxu0 0.0
  %2954 = vmatprep.subr.mxu0 0.0
  %2955 = vmatpush1.msra.mxu0 0.0
  %2956 = vmatprep.subr.mxu0 0.0
  %2957 = vmatpush1.msra.mxu0 0.0
  %2958 = vmatprep.subr.mxu0 0.0
  %2959 = vmatpush1.msra.mxu0 0.0
  %2960 = vmatprep.subr.mxu0 0.0
  %2961 = vmatpush1.msra.mxu0 0.0
  %2962 = vmatprep.subr.mxu0 0.0
  %2963 = vmatpush1.msra.mxu0 0.0
  %2964 = vmatprep.subr.mxu0 0.0
  %2965 = vmatpush1.msra.mxu0 0.0
  %2966 = vmatprep.subr.mxu0 0.0
  %2967 = vmatpush1.msra.mxu0 0.0
  %2968 = vmatprep.subr.mxu0 0.0
  %2969 = vmatpush1.msra.mxu0 0.0
  %2970 = vmatprep.subr.mxu0 0.0
  %2971 = vmatpush1.msra.mxu0 0.0
  %2972 = vmatprep.subr.mxu0 0.0
  %2973 = vmatpush1.msra.mxu0 0.0
  %2974 = vmatprep.subr.mxu0 0.0
  %2975 = vmatpush1.msra.mxu0 0.0
  %2976 = vmatprep.subr.mxu0 0.0
  %v2977 = vand.u32 %v424, 4294901760
  %v2978 = vsub.f32 %v424, %v2977
  %v2979 = vand.u32 %v2978, 4294901760
  %2980 = vmatpush1.msra.mxu0 %v2979
  %2981 = vmatprep.subr.mxu0 0.0
  %v2982 = vand.u32 %v423, 4294901760
  %v2983 = vsub.f32 %v423, %v2982
  %v2984 = vand.u32 %v2983, 4294901760
  %2985 = vmatpush1.msra.mxu0 %v2984
  %2986 = vmatprep.subr.mxu0 0.0
  %2987 = vmatpush2.msra.mxu0 0.0
  %2988 = vmatprep.subr.mxu0 0.0
  %2989 = vmatpush2.msra.mxu0 0.0
  %2990 = vmatprep.subr.mxu0 0.0
  %2991 = vmatpush2.msra.mxu0 0.0
  %2992 = vmatprep.subr.mxu0 0.0
  %2993 = vmatpush2.msra.mxu0 0.0
  %2994 = vmatprep.subr.mxu0 0.0
  %2995 = vmatpush2.msra.mxu0 0.0
  %2996 = vmatprep.subr.mxu0 0.0
  %2997 = vmatpush2.msra.mxu0 0.0
  %2998 = vmatprep.subr.mxu0 0.0
  %2999 = vmatpush2.msra.mxu0 0.0
  %3000 = vmatprep.subr.mxu0 0.0
  %3001 = vmatpush2.msra.mxu0 0.0
  %3002 = vmatprep.subr.mxu0 0.0
  %3003 = vmatpush2.msra.mxu0 0.0
  %3004 = vmatprep.subr.mxu0 0.0
  %3005 = vmatpush2.msra.mxu0 0.0
  %3006 = vmatprep.subr.mxu0 0.0
  %3007 = vmatpush2.msra.mxu0 0.0
  %3008 = vmatprep.subr.mxu0 0.0
  %3009 = vmatpush2.msra.mxu0 0.0
  %3010 = vmatprep.subr.mxu0 0.0
  %3011 = vmatpush2.msra.mxu0 0.0
  %3012 = vmatprep.subr.mxu0 0.0
  %3013 = vmatpush2.msra.mxu0 0.0
  %3014 = vmatprep.subr.mxu0 0.0
  %3015 = vmatpush2.msra.mxu0 0.0
  %3016 = vmatprep.subr.mxu0 0.0
  %3017 = vmatpush2.msra.mxu0 0.0
  %3018 = vmatprep.mubr.f32.mxu0 0.0
  %v3019 = vand.u32 %v2603, 4294901760
  %3020 = vmatmul.mubr.f32.gmra.mxu0 %v3019
  %v3021 = vpop.f32.mrf.mxu0
  %v3022 = vadd.f32 %v2937, %v3021
  %v3023 = vpop.f32.mrf.mxu0
  %3024 = vmatprep.mubr.f32.mxu0 0.0
  %v3025 = vand.u32 %v2606, 4294901760
  %3026 = vmatmul.mubr.f32.gmra.mxu0 %v3025
  %v3027 = vpop.f32.mrf.mxu0
  %v3028 = vadd.f32 %v2945, %v3027
  %v3029 = vpop.f32.mrf.mxu0
  %3030 = vdwg.mxu0
  %3031 = vmatprep.subr.mxu0 0.0
  %3032 = vmatpush1.msra.mxu0 0.0
  %3033 = vmatprep.subr.mxu0 0.0
  %3034 = vmatpush1.msra.mxu0 0.0
  %3035 = vmatprep.subr.mxu0 0.0
  %3036 = vmatpush1.msra.mxu0 0.0
  %3037 = vmatprep.subr.mxu0 0.0
  %3038 = vmatpush1.msra.mxu0 0.0
  %3039 = vmatprep.subr.mxu0 0.0
  %3040 = vmatpush1.msra.mxu0 0.0
  %3041 = vmatprep.subr.mxu0 0.0
  %3042 = vmatpush1.msra.mxu0 0.0
  %3043 = vmatprep.subr.mxu0 0.0
  %3044 = vmatpush1.msra.mxu0 0.0
  %3045 = vmatprep.subr.mxu0 0.0
  %3046 = vmatpush1.msra.mxu0 0.0
  %3047 = vmatprep.subr.mxu0 0.0
  %3048 = vmatpush1.msra.mxu0 0.0
  %3049 = vmatprep.subr.mxu0 0.0
  %3050 = vmatpush1.msra.mxu0 0.0
  %3051 = vmatprep.subr.mxu0 0.0
  %3052 = vmatpush1.msra.mxu0 0.0
  %3053 = vmatprep.subr.mxu0 0.0
  %3054 = vmatpush1.msra.mxu0 0.0
  %3055 = vmatprep.subr.mxu0 0.0
  %3056 = vmatpush1.msra.mxu0 0.0
  %3057 = vmatprep.subr.mxu0 0.0
  %3058 = vmatpush1.msra.mxu0 0.0
  %3059 = vmatprep.subr.mxu0 0.0
  %v3060 = vand.u32 %v424, 4294901760
  %3061 = vmatpush1.msra.mxu0 %v3060
  %3062 = vmatprep.subr.mxu0 0.0
  %v3063 = vand.u32 %v423, 4294901760
  %3064 = vmatpush1.msra.mxu0 %v3063
  %3065 = vmatprep.subr.mxu0 0.0
  %3066 = vmatpush2.msra.mxu0 0.0
  %3067 = vmatprep.subr.mxu0 0.0
  %3068 = vmatpush2.msra.mxu0 0.0
  %3069 = vmatprep.subr.mxu0 0.0
  %3070 = vmatpush2.msra.mxu0 0.0
  %3071 = vmatprep.subr.mxu0 0.0
  %3072 = vmatpush2.msra.mxu0 0.0
  %3073 = vmatprep.subr.mxu0 0.0
  %3074 = vmatpush2.msra.mxu0 0.0
  %3075 = vmatprep.subr.mxu0 0.0
  %3076 = vmatpush2.msra.mxu0 0.0
  %3077 = vmatprep.subr.mxu0 0.0
  %3078 = vmatpush2.msra.mxu0 0.0
  %3079 = vmatprep.subr.mxu0 0.0
  %3080 = vmatpush2.msra.mxu0 0.0
  %3081 = vmatprep.subr.mxu0 0.0
  %3082 = vmatpush2.msra.mxu0 0.0
  %3083 = vmatprep.subr.mxu0 0.0
  %3084 = vmatpush2.msra.mxu0 0.0
  %3085 = vmatprep.subr.mxu0 0.0
  %3086 = vmatpush2.msra.mxu0 0.0
  %3087 = vmatprep.subr.mxu0 0.0
  %3088 = vmatpush2.msra.mxu0 0.0
  %3089 = vmatprep.subr.mxu0 0.0
  %3090 = vmatpush2.msra.mxu0 0.0
  %3091 = vmatprep.subr.mxu0 0.0
  %3092 = vmatpush2.msra.mxu0 0.0
  %3093 = vmatprep.subr.mxu0 0.0
  %3094 = vmatpush2.msra.mxu0 0.0
  %3095 = vmatprep.subr.mxu0 0.0
  %3096 = vmatpush2.msra.mxu0 0.0
  %3097 = vmatprep.mubr.f32.mxu0 0.0
  %v3098 = vand.u32 %v2603, 4294901760
  %3099 = vmatmul.mubr.f32.gmra.mxu0 %v3098
  %v3100 = vpop.f32.mrf.mxu0
  %v3101 = vadd.f32 %v3022, %v3100
  %v3102 = vpop.f32.mrf.mxu0
  %3103 = vmatprep.mubr.f32.mxu0 0.0
  %v3104 = vand.u32 %v2606, 4294901760
  %3105 = vmatmul.mubr.f32.gmra.mxu0 %v3104
  %v3106 = vpop.f32.mrf.mxu0
  %v3107 = vadd.f32 %v3028, %v3106
  %v3108 = vpop.f32.mrf.mxu0
  %3109 = vdwg.mxu0
  %v3110 = vrot.slane %v3101, 7
  %v3111 = vrot.slane %v3107, 7
  %v3112 = vsel %vm49, %v3110, %v3111
  %v3113 = vsel %vm49, %v3111, %v3110
  %v3114 = vrot.slane %v3101, 1
  %v3115 = vrot.slane %v3107, 1
  %v3116 = vsel %vm58, %v3114, %v3115
  %v3117 = vsel %vm58, %v3115, %v3114
  %3118 = vrot.lane.b32.xlu0 %v3101, 8
  %v3119 = vpop.permute.xlu0 %3118
  %v3120 = vsel %vm950, %v3119, %v3101
  %3121 = vrot.lane.b32.xlu0 %v3107, 8
  %v3122 = vpop.permute.xlu0 %3121
  %v3123 = vsel %vm950, %v3122, %v3107
  %3124 = vrot.lane.b32.xlu0 %v3120, 8
  %v3125 = vpop.permute.xlu0 %3124
  %3126 = vrot.lane.b32.xlu0 %v3123, 8
  %v3127 = vpop.permute.xlu0 %3126
  %v3128 = vsel %vm950, %v3125, %v3101
  %v3129 = vsel %vm950, %v3127, %v3107
  %v3130 = vsel %vm937, %v3101, %v3113
  %v3131 = vsel %vm938, %v3107, %v3112
  %v3132 = vsel %vm939, %v3101, %v3116
  %v3133 = vsel %vm940, %v3107, %v3117
  %3136 = vrot.lane.b32.xlu0 %v3128, 121
  %v3137 = vpop.permute.xlu0 %3136
  %3138 = vrot.lane.b32.xlu0 %v3129, 121
  %v3139 = vpop.permute.xlu0 %3138
  %v3142 = vsel %vm43, %v3101, %v3137
  %v3143 = vsel %vm43, %v3107, %v3139
  %3144 = vrot.lane.b32.xlu0 %v3128, 127
  %v3145 = vpop.permute.xlu0 %3144
  %3146 = vrot.lane.b32.xlu0 %v3129, 127
  %v3147 = vpop.permute.xlu0 %3146
  %v3150 = vsel %vm941, %v3101, %v3145
  %v3151 = vsel %vm941, %v3107, %v3147
  %v3152 = vmul.f32 %v3101, 2.0
  %v3153 = vmul.f32 %v3107, 2.0
  %v3154 = vadd.f32 %v3130, %v3152
  %v3155 = vadd.f32 %v3131, %v3153
  %v3156 = vadd.f32 %v3154, %v3132
  %v3157 = vadd.f32 %v3155, %v3133
  %v3158 = vadd.f32 %v3142, %v3152
  %v3159 = vadd.f32 %v3143, %v3153
  %v3160 = vadd.f32 %v3158, %v3150
  %v3161 = vadd.f32 %v3159, %v3151
  %3162 = vrot.lane.b32.xlu0 %v3156, 8
  %v3163 = vpop.permute.xlu0 %3162
  %v3164 = vsel %vm950, %v3163, %v3156
  %3165 = vrot.lane.b32.xlu0 %v3157, 8
  %v3166 = vpop.permute.xlu0 %3165
  %v3167 = vsel %vm950, %v3166, %v3157
  %3168 = vrot.lane.b32.xlu0 %v3164, 8
  %v3169 = vpop.permute.xlu0 %3168
  %3170 = vrot.lane.b32.xlu0 %v3167, 8
  %v3171 = vpop.permute.xlu0 %3170
  %v3172 = vsel %vm950, %v3169, %v3156
  %v3173 = vsel %vm950, %v3171, %v3157
  %3176 = vrot.lane.b32.xlu0 %v3172, 127
  %v3177 = vpop.permute.xlu0 %3176
  %3178 = vrot.lane.b32.xlu0 %v3173, 127
  %v3179 = vpop.permute.xlu0 %3178
  %v3182 = vsel %vm941, %v3156, %v3177
  %v3183 = vsel %vm941, %v3157, %v3179
  %3184 = vrot.lane.b32.xlu0 %v3172, 121
  %v3185 = vpop.permute.xlu0 %3184
  %3186 = vrot.lane.b32.xlu0 %v3173, 121
  %v3187 = vpop.permute.xlu0 %3186
  %v3190 = vsel %vm43, %v3156, %v3185
  %v3191 = vsel %vm43, %v3157, %v3187
  %v3192 = vsub.f32 %v3182, %v3190
  %v3193 = vsub.f32 %v3183, %v3191
  %v3194 = vmul.f32 %v3192, 0.125
  %v3195 = vmul.f32 %v3193, 0.125
  %v3196 = vrot.slane %v3160, 1
  %v3197 = vrot.slane %v3161, 1
  %v3198 = vsel %vm58, %v3196, %v3197
  %v3199 = vsel %vm58, %v3197, %v3196
  %v3200 = vsel %vm939, %v3160, %v3198
  %v3201 = vsel %vm940, %v3161, %v3199
  %v3202 = vrot.slane %v3160, 7
  %v3203 = vrot.slane %v3161, 7
  %v3204 = vsel %vm49, %v3202, %v3203
  %v3205 = vsel %vm49, %v3203, %v3202
  %v3206 = vsel %vm937, %v3160, %v3205
  %v3207 = vsel %vm938, %v3161, %v3204
  %v3208 = vsub.f32 %v3200, %v3206
  %v3209 = vsub.f32 %v3201, %v3207
  %v3210 = vmul.f32 %v3208, 0.125
  %v3211 = vmul.f32 %v3209, 0.125
  %v3212 = vsub.f32 %v3194, %v3195
  %v3213 = vsub.f32 %v3195, %v3194
  %v3214 = vand.u32 2147483647, %v3212
  %v3215 = vand.u32 2147483647, %v3213
  %v3216 = vsub.f32 %v3210, %v3211
  %v3217 = vsub.f32 %v3211, %v3210
  %v3218 = vand.u32 2147483647, %v3216
  %v3219 = vand.u32 2147483647, %v3217
  %vm3220 = vcmp.ne.f32.partialorder %v3195, 0.0
  %vm3221 = vcmp.ne.f32.partialorder %v3194, 0.0
  %vm3222 = vcmp.ne.f32.partialorder %v3211, 0.0
  %vm3223 = vcmp.ne.f32.partialorder %v3210, 0.0
  %v3224 = vsel %vm3220, 1, 0
  %v3225 = vsel %vm3221, 1, 0
  %v3226 = vcvt.s32.f32 %v3224
  %v3227 = vcvt.s32.f32 %v3225
  %v3228 = vmul.f32 %v3226, %v1061
  %v3229 = vmul.f32 %v3227, %v1062
  %v3230 = vsel %vm3222, 1, 0
  %v3231 = vsel %vm3223, 1, 0
  %v3232 = vcvt.s32.f32 %v3230
  %v3233 = vcvt.s32.f32 %v3231
  %v3234 = vmul.f32 %v3232, %v1061
  %v3235 = vmul.f32 %v3233, %v1062
  %v3236 = vmul.f32 %v3228, %v3214
  %v3237 = vmul.f32 %v3229, %v3215
  %v3238 = vmul.f32 %v3234, %v3218
  %v3239 = vmul.f32 %v3235, %v3219
  %v3240 = vadd.f32 %v3236, %v3238
  %v3241 = vadd.f32 %v3237, %v3239
  %v3242 = vsel %vm1081, %v3240, 0.0
  %v3243 = vsel %vm1081, %v3241, 0.0
  %v3244 = vadd.f32 %v3242, %v3243
  %3245 = vadd.xlane.f32.xlu0 %v3244
  %v3246 = vpop.xlane.xlu0 %3245
  %v3247 = vrot.slane %v3246, 4
  %v3248 = vadd.f32 %v3246, %v3247
  %v3249 = vrot.slane %v3248, 2
  %v3250 = vadd.f32 %v3248, %v3249
  %v3251 = vrot.slane %v3250, 1
  %v3252 = vadd.f32 %v3250, %v3251
  %s3253 = vtos %v3252
  %s3254 = sadd.f32 %s1094, %s3253
  %v3255 = vadd.f32 %v3228, %v3234
  %v3256 = vadd.f32 %v3229, %v3235
  %v3257 = vsel %vm1081, %v3255, 0.0
  %v3258 = vsel %vm1081, %v3256, 0.0
  %v3259 = vadd.f32 %v3257, %v3258
  %3260 = vadd.xlane.f32.xlu0 %v3259
  %v3261 = vpop.xlane.xlu0 %3260
  %v3262 = vrot.slane %v3261, 4
  %v3263 = vadd.f32 %v3261, %v3262
  %v3264 = vrot.slane %v3263, 2
  %v3265 = vadd.f32 %v3263, %v3264
  %v3266 = vrot.slane %v3265, 1
  %v3267 = vadd.f32 %v3265, %v3266
  %s3268 = vtos %v3267
  %s3269 = sadd.f32 %s1109, %s3268
  %v3270 = vsel %vm937, 0.0, %v3113
  %v3271 = vsel %vm938, 0.0, %v3112
  %v3272 = vsel %vm939, 0.0, %v3116
  %v3273 = vsel %vm940, 0.0, %v3117
  %v3274 = vadd.f32 %v3270, %v3272
  %v3275 = vadd.f32 %v3271, %v3273
  %v3276 = vmul.f32 %v3274, 0.25
  %v3277 = vmul.f32 %v3275, 0.25
  %v3278 = vmul.f32 %v3101, 0.5
  %v3279 = vmul.f32 %v3107, 0.5
  %v3280 = vadd.f32 %v3276, %v3278
  %v3281 = vadd.f32 %v3277, %v3279
  %3282 = vst.msk [vmem:[#allocation2] sm:$0xff] %vm1081, %v3280
  %3283 = vst.msk [vmem:[#allocation2 + $0x8] sm:$0xff] %vm1081, %v3281
  %v3284 = vld [vmem:[#allocation2] ss:$2 sm:$0xff]
  %v3286 = vsel %vm1081, %v3284, 0
  %3288 = vmatprep.subr.mxu0 0.0
  %3289 = vmatpush1.msra.mxu0 0.0
  %3290 = vmatprep.subr.mxu0 0.0
  %3291 = vmatpush1.msra.mxu0 0.0
  %3292 = vmatprep.subr.mxu0 0.0
  %3293 = vmatpush1.msra.mxu0 0.0
  %3294 = vmatprep.subr.mxu0 0.0
  %3295 = vmatpush1.msra.mxu0 0.0
  %3296 = vmatprep.subr.mxu0 0.0
  %3297 = vmatpush1.msra.mxu0 0.0
  %3298 = vmatprep.subr.mxu0 0.0
  %3299 = vmatpush1.msra.mxu0 0.0
  %3300 = vmatprep.subr.mxu0 0.0
  %3301 = vmatpush1.msra.mxu0 0.0
  %3302 = vmatprep.subr.mxu0 0.0
  %3303 = vmatpush1.msra.mxu0 0.0
  %3304 = vmatprep.subr.mxu0 0.0
  %3305 = vmatpush1.msra.mxu0 0.0
  %3306 = vmatprep.subr.mxu0 0.0
  %3307 = vmatpush1.msra.mxu0 0.0
  %3308 = vmatprep.subr.mxu0 0.0
  %3309 = vmatpush1.msra.mxu0 0.0
  %3310 = vmatprep.subr.mxu0 0.0
  %3311 = vmatpush1.msra.mxu0 0.0
  %3312 = vmatprep.subr.mxu0 0.0
  %3313 = vmatpush1.msra.mxu0 0.0
  %3314 = vmatprep.subr.mxu0 0.0
  %3315 = vmatpush1.msra.mxu0 0.0
  %3316 = vmatprep.subr.mxu0 0.0
  %3317 = vmatpush1.msra.mxu0 0.0
  %3318 = vmatprep.subr.mxu0 0.0
  %v3319 = vand.u32 %v423, 4294901760
  %3320 = vmatpush1.msra.mxu0 %v3319
  %3321 = vmatprep.subr.mxu0 0.0
  %3322 = vmatpush2.msra.mxu0 0.0
  %3323 = vmatprep.subr.mxu0 0.0
  %3324 = vmatpush2.msra.mxu0 0.0
  %3325 = vmatprep.subr.mxu0 0.0
  %3326 = vmatpush2.msra.mxu0 0.0
  %3327 = vmatprep.subr.mxu0 0.0
  %3328 = vmatpush2.msra.mxu0 0.0
  %3329 = vmatprep.subr.mxu0 0.0
  %3330 = vmatpush2.msra.mxu0 0.0
  %3331 = vmatprep.subr.mxu0 0.0
  %3332 = vmatpush2.msra.mxu0 0.0
  %3333 = vmatprep.subr.mxu0 0.0
  %3334 = vmatpush2.msra.mxu0 0.0
  %3335 = vmatprep.subr.mxu0 0.0
  %3336 = vmatpush2.msra.mxu0 0.0
  %3337 = vmatprep.subr.mxu0 0.0
  %3338 = vmatpush2.msra.mxu0 0.0
  %3339 = vmatprep.subr.mxu0 0.0
  %3340 = vmatpush2.msra.mxu0 0.0
  %3341 = vmatprep.subr.mxu0 0.0
  %3342 = vmatpush2.msra.mxu0 0.0
  %3343 = vmatprep.subr.mxu0 0.0
  %3344 = vmatpush2.msra.mxu0 0.0
  %3345 = vmatprep.subr.mxu0 0.0
  %3346 = vmatpush2.msra.mxu0 0.0
  %3347 = vmatprep.subr.mxu0 0.0
  %3348 = vmatpush2.msra.mxu0 0.0
  %3349 = vmatprep.subr.mxu0 0.0
  %3350 = vmatpush2.msra.mxu0 0.0
  %3351 = vmatprep.subr.mxu0 0.0
  %3352 = vmatpush2.msra.mxu0 0.0
  %3353 = vmatprep.mubr.f32.mxu0 0.0
  %v3354 = vand.u32 %v3286, 4294901760
  %v3355 = vsub.f32 %v3286, %v3354
  %v3356 = vand.u32 %v3355, 4294901760
  %v3357 = vsub.f32 %v3355, %v3356
  %v3358 = vand.u32 %v3357, 4294901760
  %3359 = vmatmul.mubr.f32.gmra.mxu0 %v3358
  %v3360 = vpop.f32.mrf.mxu0
  %v3361 = vadd.f32 0.0, %v3360
  %v3362 = vpop.f32.mrf.mxu0
  %3363 = vdwg.mxu0
  %3364 = vmatprep.subr.mxu0 0.0
  %3365 = vmatpush1.msra.mxu0 0.0
  %3366 = vmatprep.subr.mxu0 0.0
  %3367 = vmatpush1.msra.mxu0 0.0
  %3368 = vmatprep.subr.mxu0 0.0
  %3369 = vmatpush1.msra.mxu0 0.0
  %3370 = vmatprep.subr.mxu0 0.0
  %3371 = vmatpush1.msra.mxu0 0.0
  %3372 = vmatprep.subr.mxu0 0.0
  %3373 = vmatpush1.msra.mxu0 0.0
  %3374 = vmatprep.subr.mxu0 0.0
  %3375 = vmatpush1.msra.mxu0 0.0
  %3376 = vmatprep.subr.mxu0 0.0
  %3377 = vmatpush1.msra.mxu0 0.0
  %3378 = vmatprep.subr.mxu0 0.0
  %3379 = vmatpush1.msra.mxu0 0.0
  %3380 = vmatprep.subr.mxu0 0.0
  %3381 = vmatpush1.msra.mxu0 0.0
  %3382 = vmatprep.subr.mxu0 0.0
  %3383 = vmatpush1.msra.mxu0 0.0
  %3384 = vmatprep.subr.mxu0 0.0
  %3385 = vmatpush1.msra.mxu0 0.0
  %3386 = vmatprep.subr.mxu0 0.0
  %3387 = vmatpush1.msra.mxu0 0.0
  %3388 = vmatprep.subr.mxu0 0.0
  %3389 = vmatpush1.msra.mxu0 0.0
  %3390 = vmatprep.subr.mxu0 0.0
  %3391 = vmatpush1.msra.mxu0 0.0
  %3392 = vmatprep.subr.mxu0 0.0
  %3393 = vmatpush1.msra.mxu0 0.0
  %3394 = vmatprep.subr.mxu0 0.0
  %v3395 = vand.u32 %v423, 4294901760
  %v3396 = vsub.f32 %v423, %v3395
  %v3397 = vand.u32 %v3396, 4294901760
  %v3398 = vsub.f32 %v3396, %v3397
  %v3399 = vand.u32 %v3398, 4294901760
  %3400 = vmatpush1.msra.mxu0 %v3399
  %3401 = vmatprep.subr.mxu0 0.0
  %3402 = vmatpush2.msra.mxu0 0.0
  %3403 = vmatprep.subr.mxu0 0.0
  %3404 = vmatpush2.msra.mxu0 0.0
  %3405 = vmatprep.subr.mxu0 0.0
  %3406 = vmatpush2.msra.mxu0 0.0
  %3407 = vmatprep.subr.mxu0 0.0
  %3408 = vmatpush2.msra.mxu0 0.0
  %3409 = vmatprep.subr.mxu0 0.0
  %3410 = vmatpush2.msra.mxu0 0.0
  %3411 = vmatprep.subr.mxu0 0.0
  %3412 = vmatpush2.msra.mxu0 0.0
  %3413 = vmatprep.subr.mxu0 0.0
  %3414 = vmatpush2.msra.mxu0 0.0
  %3415 = vmatprep.subr.mxu0 0.0
  %3416 = vmatpush2.msra.mxu0 0.0
  %3417 = vmatprep.subr.mxu0 0.0
  %3418 = vmatpush2.msra.mxu0 0.0
  %3419 = vmatprep.subr.mxu0 0.0
  %3420 = vmatpush2.msra.mxu0 0.0
  %3421 = vmatprep.subr.mxu0 0.0
  %3422 = vmatpush2.msra.mxu0 0.0
  %3423 = vmatprep.subr.mxu0 0.0
  %3424 = vmatpush2.msra.mxu0 0.0
  %3425 = vmatprep.subr.mxu0 0.0
  %3426 = vmatpush2.msra.mxu0 0.0
  %3427 = vmatprep.subr.mxu0 0.0
  %3428 = vmatpush2.msra.mxu0 0.0
  %3429 = vmatprep.subr.mxu0 0.0
  %3430 = vmatpush2.msra.mxu0 0.0
  %3431 = vmatprep.subr.mxu0 0.0
  %3432 = vmatpush2.msra.mxu0 0.0
  %3433 = vmatprep.mubr.f32.mxu0 0.0
  %v3434 = vand.u32 %v3286, 4294901760
  %3435 = vmatmul.mubr.f32.gmra.mxu0 %v3434
  %v3436 = vpop.f32.mrf.mxu0
  %v3437 = vadd.f32 %v3361, %v3436
  %v3438 = vpop.f32.mrf.mxu0
  %3439 = vdwg.mxu0
  %3440 = vmatprep.subr.mxu0 0.0
  %3441 = vmatpush1.msra.mxu0 0.0
  %3442 = vmatprep.subr.mxu0 0.0
  %3443 = vmatpush1.msra.mxu0 0.0
  %3444 = vmatprep.subr.mxu0 0.0
  %3445 = vmatpush1.msra.mxu0 0.0
  %3446 = vmatprep.subr.mxu0 0.0
  %3447 = vmatpush1.msra.mxu0 0.0
  %3448 = vmatprep.subr.mxu0 0.0
  %3449 = vmatpush1.msra.mxu0 0.0
  %3450 = vmatprep.subr.mxu0 0.0
  %3451 = vmatpush1.msra.mxu0 0.0
  %3452 = vmatprep.subr.mxu0 0.0
  %3453 = vmatpush1.msra.mxu0 0.0
  %3454 = vmatprep.subr.mxu0 0.0
  %3455 = vmatpush1.msra.mxu0 0.0
  %3456 = vmatprep.subr.mxu0 0.0
  %3457 = vmatpush1.msra.mxu0 0.0
  %3458 = vmatprep.subr.mxu0 0.0
  %3459 = vmatpush1.msra.mxu0 0.0
  %3460 = vmatprep.subr.mxu0 0.0
  %3461 = vmatpush1.msra.mxu0 0.0
  %3462 = vmatprep.subr.mxu0 0.0
  %3463 = vmatpush1.msra.mxu0 0.0
  %3464 = vmatprep.subr.mxu0 0.0
  %3465 = vmatpush1.msra.mxu0 0.0
  %3466 = vmatprep.subr.mxu0 0.0
  %3467 = vmatpush1.msra.mxu0 0.0
  %3468 = vmatprep.subr.mxu0 0.0
  %3469 = vmatpush1.msra.mxu0 0.0
  %3470 = vmatprep.subr.mxu0 0.0
  %v3471 = vand.u32 %v423, 4294901760
  %v3472 = vsub.f32 %v423, %v3471
  %3473 = vmatpush1.msra.mxu0 %v3472
  %3474 = vmatprep.subr.mxu0 0.0
  %3475 = vmatpush2.msra.mxu0 0.0
  %3476 = vmatprep.subr.mxu0 0.0
  %3477 = vmatpush2.msra.mxu0 0.0
  %3478 = vmatprep.subr.mxu0 0.0
  %3479 = vmatpush2.msra.mxu0 0.0
  %3480 = vmatprep.subr.mxu0 0.0
  %3481 = vmatpush2.msra.mxu0 0.0
  %3482 = vmatprep.subr.mxu0 0.0
  %3483 = vmatpush2.msra.mxu0 0.0
  %3484 = vmatprep.subr.mxu0 0.0
  %3485 = vmatpush2.msra.mxu0 0.0
  %3486 = vmatprep.subr.mxu0 0.0
  %3487 = vmatpush2.msra.mxu0 0.0
  %3488 = vmatprep.subr.mxu0 0.0
  %3489 = vmatpush2.msra.mxu0 0.0
  %3490 = vmatprep.subr.mxu0 0.0
  %3491 = vmatpush2.msra.mxu0 0.0
  %3492 = vmatprep.subr.mxu0 0.0
  %3493 = vmatpush2.msra.mxu0 0.0
  %3494 = vmatprep.subr.mxu0 0.0
  %3495 = vmatpush2.msra.mxu0 0.0
  %3496 = vmatprep.subr.mxu0 0.0
  %3497 = vmatpush2.msra.mxu0 0.0
  %3498 = vmatprep.subr.mxu0 0.0
  %3499 = vmatpush2.msra.mxu0 0.0
  %3500 = vmatprep.subr.mxu0 0.0
  %3501 = vmatpush2.msra.mxu0 0.0
  %3502 = vmatprep.subr.mxu0 0.0
  %3503 = vmatpush2.msra.mxu0 0.0
  %3504 = vmatprep.subr.mxu0 0.0
  %3505 = vmatpush2.msra.mxu0 0.0
  %3506 = vmatprep.mubr.f32.mxu0 0.0
  %v3507 = vand.u32 %v3286, 4294901760
  %v3508 = vsub.f32 %v3286, %v3507
  %3509 = vmatmul.mubr.f32.gmra.mxu0 %v3508
  %v3510 = vpop.f32.mrf.mxu0
  %v3511 = vadd.f32 %v3437, %v3510
  %v3512 = vpop.f32.mrf.mxu0
  %3513 = vdwg.mxu0
  %3514 = vmatprep.subr.mxu0 0.0
  %3515 = vmatpush1.msra.mxu0 0.0
  %3516 = vmatprep.subr.mxu0 0.0
  %3517 = vmatpush1.msra.mxu0 0.0
  %3518 = vmatprep.subr.mxu0 0.0
  %3519 = vmatpush1.msra.mxu0 0.0
  %3520 = vmatprep.subr.mxu0 0.0
  %3521 = vmatpush1.msra.mxu0 0.0
  %3522 = vmatprep.subr.mxu0 0.0
  %3523 = vmatpush1.msra.mxu0 0.0
  %3524 = vmatprep.subr.mxu0 0.0
  %3525 = vmatpush1.msra.mxu0 0.0
  %3526 = vmatprep.subr.mxu0 0.0
  %3527 = vmatpush1.msra.mxu0 0.0
  %3528 = vmatprep.subr.mxu0 0.0
  %3529 = vmatpush1.msra.mxu0 0.0
  %3530 = vmatprep.subr.mxu0 0.0
  %3531 = vmatpush1.msra.mxu0 0.0
  %3532 = vmatprep.subr.mxu0 0.0
  %3533 = vmatpush1.msra.mxu0 0.0
  %3534 = vmatprep.subr.mxu0 0.0
  %3535 = vmatpush1.msra.mxu0 0.0
  %3536 = vmatprep.subr.mxu0 0.0
  %3537 = vmatpush1.msra.mxu0 0.0
  %3538 = vmatprep.subr.mxu0 0.0
  %3539 = vmatpush1.msra.mxu0 0.0
  %3540 = vmatprep.subr.mxu0 0.0
  %3541 = vmatpush1.msra.mxu0 0.0
  %3542 = vmatprep.subr.mxu0 0.0
  %3543 = vmatpush1.msra.mxu0 0.0
  %3544 = vmatprep.subr.mxu0 0.0
  %v3545 = vand.u32 %v423, 4294901760
  %3546 = vmatpush1.msra.mxu0 %v3545
  %3547 = vmatprep.subr.mxu0 0.0
  %3548 = vmatpush2.msra.mxu0 0.0
  %3549 = vmatprep.subr.mxu0 0.0
  %3550 = vmatpush2.msra.mxu0 0.0
  %3551 = vmatprep.subr.mxu0 0.0
  %3552 = vmatpush2.msra.mxu0 0.0
  %3553 = vmatprep.subr.mxu0 0.0
  %3554 = vmatpush2.msra.mxu0 0.0
  %3555 = vmatprep.subr.mxu0 0.0
  %3556 = vmatpush2.msra.mxu0 0.0
  %3557 = vmatprep.subr.mxu0 0.0
  %3558 = vmatpush2.msra.mxu0 0.0
  %3559 = vmatprep.subr.mxu0 0.0
  %3560 = vmatpush2.msra.mxu0 0.0
  %3561 = vmatprep.subr.mxu0 0.0
  %3562 = vmatpush2.msra.mxu0 0.0
  %3563 = vmatprep.subr.mxu0 0.0
  %3564 = vmatpush2.msra.mxu0 0.0
  %3565 = vmatprep.subr.mxu0 0.0
  %3566 = vmatpush2.msra.mxu0 0.0
  %3567 = vmatprep.subr.mxu0 0.0
  %3568 = vmatpush2.msra.mxu0 0.0
  %3569 = vmatprep.subr.mxu0 0.0
  %3570 = vmatpush2.msra.mxu0 0.0
  %3571 = vmatprep.subr.mxu0 0.0
  %3572 = vmatpush2.msra.mxu0 0.0
  %3573 = vmatprep.subr.mxu0 0.0
  %3574 = vmatpush2.msra.mxu0 0.0
  %3575 = vmatprep.subr.mxu0 0.0
  %3576 = vmatpush2.msra.mxu0 0.0
  %3577 = vmatprep.subr.mxu0 0.0
  %3578 = vmatpush2.msra.mxu0 0.0
  %3579 = vmatprep.mubr.f32.mxu0 0.0
  %v3580 = vand.u32 %v3286, 4294901760
  %v3581 = vsub.f32 %v3286, %v3580
  %v3582 = vand.u32 %v3581, 4294901760
  %3583 = vmatmul.mubr.f32.gmra.mxu0 %v3582
  %v3584 = vpop.f32.mrf.mxu0
  %v3585 = vadd.f32 %v3511, %v3584
  %v3586 = vpop.f32.mrf.mxu0
  %3587 = vdwg.mxu0
  %3588 = vmatprep.subr.mxu0 0.0
  %3589 = vmatpush1.msra.mxu0 0.0
  %3590 = vmatprep.subr.mxu0 0.0
  %3591 = vmatpush1.msra.mxu0 0.0
  %3592 = vmatprep.subr.mxu0 0.0
  %3593 = vmatpush1.msra.mxu0 0.0
  %3594 = vmatprep.subr.mxu0 0.0
  %3595 = vmatpush1.msra.mxu0 0.0
  %3596 = vmatprep.subr.mxu0 0.0
  %3597 = vmatpush1.msra.mxu0 0.0
  %3598 = vmatprep.subr.mxu0 0.0
  %3599 = vmatpush1.msra.mxu0 0.0
  %3600 = vmatprep.subr.mxu0 0.0
  %3601 = vmatpush1.msra.mxu0 0.0
  %3602 = vmatprep.subr.mxu0 0.0
  %3603 = vmatpush1.msra.mxu0 0.0
  %3604 = vmatprep.subr.mxu0 0.0
  %3605 = vmatpush1.msra.mxu0 0.0
  %3606 = vmatprep.subr.mxu0 0.0
  %3607 = vmatpush1.msra.mxu0 0.0
  %3608 = vmatprep.subr.mxu0 0.0
  %3609 = vmatpush1.msra.mxu0 0.0
  %3610 = vmatprep.subr.mxu0 0.0
  %3611 = vmatpush1.msra.mxu0 0.0
  %3612 = vmatprep.subr.mxu0 0.0
  %3613 = vmatpush1.msra.mxu0 0.0
  %3614 = vmatprep.subr.mxu0 0.0
  %3615 = vmatpush1.msra.mxu0 0.0
  %3616 = vmatprep.subr.mxu0 0.0
  %3617 = vmatpush1.msra.mxu0 0.0
  %3618 = vmatprep.subr.mxu0 0.0
  %v3619 = vand.u32 %v423, 4294901760
  %v3620 = vsub.f32 %v423, %v3619
  %v3621 = vand.u32 %v3620, 4294901760
  %3622 = vmatpush1.msra.mxu0 %v3621
  %3623 = vmatprep.subr.mxu0 0.0
  %3624 = vmatpush2.msra.mxu0 0.0
  %3625 = vmatprep.subr.mxu0 0.0
  %3626 = vmatpush2.msra.mxu0 0.0
  %3627 = vmatprep.subr.mxu0 0.0
  %3628 = vmatpush2.msra.mxu0 0.0
  %3629 = vmatprep.subr.mxu0 0.0
  %3630 = vmatpush2.msra.mxu0 0.0
  %3631 = vmatprep.subr.mxu0 0.0
  %3632 = vmatpush2.msra.mxu0 0.0
  %3633 = vmatprep.subr.mxu0 0.0
  %3634 = vmatpush2.msra.mxu0 0.0
  %3635 = vmatprep.subr.mxu0 0.0
  %3636 = vmatpush2.msra.mxu0 0.0
  %3637 = vmatprep.subr.mxu0 0.0
  %3638 = vmatpush2.msra.mxu0 0.0
  %3639 = vmatprep.subr.mxu0 0.0
  %3640 = vmatpush2.msra.mxu0 0.0
  %3641 = vmatprep.subr.mxu0 0.0
  %3642 = vmatpush2.msra.mxu0 0.0
  %3643 = vmatprep.subr.mxu0 0.0
  %3644 = vmatpush2.msra.mxu0 0.0
  %3645 = vmatprep.subr.mxu0 0.0
  %3646 = vmatpush2.msra.mxu0 0.0
  %3647 = vmatprep.subr.mxu0 0.0
  %3648 = vmatpush2.msra.mxu0 0.0
  %3649 = vmatprep.subr.mxu0 0.0
  %3650 = vmatpush2.msra.mxu0 0.0
  %3651 = vmatprep.subr.mxu0 0.0
  %3652 = vmatpush2.msra.mxu0 0.0
  %3653 = vmatprep.subr.mxu0 0.0
  %3654 = vmatpush2.msra.mxu0 0.0
  %3655 = vmatprep.mubr.f32.mxu0 0.0
  %v3656 = vand.u32 %v3286, 4294901760
  %3657 = vmatmul.mubr.f32.gmra.mxu0 %v3656
  %v3658 = vpop.f32.mrf.mxu0
  %v3659 = vadd.f32 %v3585, %v3658
  %v3660 = vpop.f32.mrf.mxu0
  %3661 = vdwg.mxu0
  %3662 = vmatprep.subr.mxu0 0.0
  %3663 = vmatpush1.msra.mxu0 0.0
  %3664 = vmatprep.subr.mxu0 0.0
  %3665 = vmatpush1.msra.mxu0 0.0
  %3666 = vmatprep.subr.mxu0 0.0
  %3667 = vmatpush1.msra.mxu0 0.0
  %3668 = vmatprep.subr.mxu0 0.0
  %3669 = vmatpush1.msra.mxu0 0.0
  %3670 = vmatprep.subr.mxu0 0.0
  %3671 = vmatpush1.msra.mxu0 0.0
  %3672 = vmatprep.subr.mxu0 0.0
  %3673 = vmatpush1.msra.mxu0 0.0
  %3674 = vmatprep.subr.mxu0 0.0
  %3675 = vmatpush1.msra.mxu0 0.0
  %3676 = vmatprep.subr.mxu0 0.0
  %3677 = vmatpush1.msra.mxu0 0.0
  %3678 = vmatprep.subr.mxu0 0.0
  %3679 = vmatpush1.msra.mxu0 0.0
  %3680 = vmatprep.subr.mxu0 0.0
  %3681 = vmatpush1.msra.mxu0 0.0
  %3682 = vmatprep.subr.mxu0 0.0
  %3683 = vmatpush1.msra.mxu0 0.0
  %3684 = vmatprep.subr.mxu0 0.0
  %3685 = vmatpush1.msra.mxu0 0.0
  %3686 = vmatprep.subr.mxu0 0.0
  %3687 = vmatpush1.msra.mxu0 0.0
  %3688 = vmatprep.subr.mxu0 0.0
  %3689 = vmatpush1.msra.mxu0 0.0
  %3690 = vmatprep.subr.mxu0 0.0
  %3691 = vmatpush1.msra.mxu0 0.0
  %3692 = vmatprep.subr.mxu0 0.0
  %v3693 = vand.u32 %v423, 4294901760
  %3694 = vmatpush1.msra.mxu0 %v3693
  %3695 = vmatprep.subr.mxu0 0.0
  %3696 = vmatpush2.msra.mxu0 0.0
  %3697 = vmatprep.subr.mxu0 0.0
  %3698 = vmatpush2.msra.mxu0 0.0
  %3699 = vmatprep.subr.mxu0 0.0
  %3700 = vmatpush2.msra.mxu0 0.0
  %3701 = vmatprep.subr.mxu0 0.0
  %3702 = vmatpush2.msra.mxu0 0.0
  %3703 = vmatprep.subr.mxu0 0.0
  %3704 = vmatpush2.msra.mxu0 0.0
  %3705 = vmatprep.subr.mxu0 0.0
  %3706 = vmatpush2.msra.mxu0 0.0
  %3707 = vmatprep.subr.mxu0 0.0
  %3708 = vmatpush2.msra.mxu0 0.0
  %3709 = vmatprep.subr.mxu0 0.0
  %3710 = vmatpush2.msra.mxu0 0.0
  %3711 = vmatprep.subr.mxu0 0.0
  %3712 = vmatpush2.msra.mxu0 0.0
  %3713 = vmatprep.subr.mxu0 0.0
  %3714 = vmatpush2.msra.mxu0 0.0
  %3715 = vmatprep.subr.mxu0 0.0
  %3716 = vmatpush2.msra.mxu0 0.0
  %3717 = vmatprep.subr.mxu0 0.0
  %3718 = vmatpush2.msra.mxu0 0.0
  %3719 = vmatprep.subr.mxu0 0.0
  %3720 = vmatpush2.msra.mxu0 0.0
  %3721 = vmatprep.subr.mxu0 0.0
  %3722 = vmatpush2.msra.mxu0 0.0
  %3723 = vmatprep.subr.mxu0 0.0
  %3724 = vmatpush2.msra.mxu0 0.0
  %3725 = vmatprep.subr.mxu0 0.0
  %3726 = vmatpush2.msra.mxu0 0.0
  %3727 = vmatprep.mubr.f32.mxu0 0.0
  %v3728 = vand.u32 %v3286, 4294901760
  %3729 = vmatmul.mubr.f32.gmra.mxu0 %v3728
  %v3730 = vpop.f32.mrf.mxu0
  %v3731 = vadd.f32 %v3659, %v3730
  %v3732 = vpop.f32.mrf.mxu0
  %3733 = vdwg.mxu0
  %v3734 = vrot.slane %v3731, 7
  %v3735 = vrot.slane %v3731, 1
  %3736 = vrot.lane.b32.xlu0 %v3731, 4
  %v3737 = vpop.permute.xlu0 %3736
  %v3738 = vsel %vm1581, %v3737, %v3731
  %3739 = vrot.lane.b32.xlu0 %v3738, 4
  %v3740 = vpop.permute.xlu0 %3739
  %v3741 = vsel %vm1581, %v3740, %v3731
  %v3742 = vsel %vm1576, %v3731, %v3734
  %v3743 = vsel %vm1577, %v3731, %v3735
  %3745 = vrot.lane.b32.xlu0 %v3741, 125
  %v3746 = vpop.permute.xlu0 %3745
  %v3748 = vsel %vm43, %v3731, %v3746
  %3749 = vrot.lane.b32.xlu0 %v3741, 127
  %v3750 = vpop.permute.xlu0 %3749
  %v3752 = vsel %vm1578, %v3731, %v3750
  %v3753 = vmul.f32 %v3731, 2.0
  %v3754 = vadd.f32 %v3742, %v3753
  %v3755 = vadd.f32 %v3754, %v3743
  %v3756 = vadd.f32 %v3748, %v3753
  %v3757 = vadd.f32 %v3756, %v3752
  %3758 = vrot.lane.b32.xlu0 %v3755, 4
  %v3759 = vpop.permute.xlu0 %3758
  %v3760 = vsel %vm1581, %v3759, %v3755
  %3761 = vrot.lane.b32.xlu0 %v3760, 4
  %v3762 = vpop.permute.xlu0 %3761
  %v3763 = vsel %vm1581, %v3762, %v3755
  %3765 = vrot.lane.b32.xlu0 %v3763, 127
  %v3766 = vpop.permute.xlu0 %3765
  %v3768 = vsel %vm1578, %v3755, %v3766
  %3769 = vrot.lane.b32.xlu0 %v3763, 125
  %v3770 = vpop.permute.xlu0 %3769
  %v3772 = vsel %vm43, %v3755, %v3770
  %v3773 = vsub.f32 %v3768, %v3772
  %v3774 = vmul.f32 %v3773, 0.125
  %v3775 = vrot.slane %v3757, 1
  %v3776 = vsel %vm1577, %v3757, %v3775
  %v3777 = vrot.slane %v3757, 7
  %v3778 = vsel %vm1576, %v3757, %v3777
  %v3779 = vsub.f32 %v3776, %v3778
  %v3780 = vmul.f32 %v3779, 0.125
  %v3781 = vrot.slane %v3774, 4
  %v3782 = vrot.slane %v3780, 4
  %v3783 = vsub.f32 %v3774, %v3781
  %v3784 = vand.u32 2147483647, %v3783
  %v3785 = vsub.f32 %v3780, %v3782
  %v3786 = vand.u32 2147483647, %v3785
  %vm3787 = vcmp.ne.f32.partialorder %v3781, 0.0
  %vm3788 = vcmp.ne.f32.partialorder %v3782, 0.0
  %v3789 = vsel %vm3787, 1, 0
  %v3790 = vcvt.s32.f32 %v3789
  %v3791 = vmul.f32 %v3790, %v1637
  %v3792 = vsel %vm3788, 1, 0
  %v3793 = vcvt.s32.f32 %v3792
  %v3794 = vmul.f32 %v3793, %v1637
  %v3795 = vmul.f32 %v3791, %v3784
  %v3796 = vmul.f32 %v3794, %v3786
  %v3797 = vadd.f32 %v3795, %v3796
  %v3798 = vsel %vm1647, %v3797, 0.0
  %3799 = vadd.xlane.f32.xlu0 %v3798
  %v3800 = vpop.xlane.xlu0 %3799
  %v3801 = vrot.slane %v3800, 4
  %v3802 = vadd.f32 %v3800, %v3801
  %v3803 = vrot.slane %v3802, 2
  %v3804 = vadd.f32 %v3802, %v3803
  %v3805 = vrot.slane %v3804, 1
  %v3806 = vadd.f32 %v3804, %v3805
  %s3807 = vtos %v3806
  %s3808 = sadd.f32 %s1658, %s3807
  %v3809 = vadd.f32 %v3791, %v3794
  %v3810 = vsel %vm1647, %v3809, 0.0
  %3811 = vadd.xlane.f32.xlu0 %v3810
  %v3812 = vpop.xlane.xlu0 %3811
  %v3813 = vrot.slane %v3812, 4
  %v3814 = vadd.f32 %v3812, %v3813
  %v3815 = vrot.slane %v3814, 2
  %v3816 = vadd.f32 %v3814, %v3815
  %v3817 = vrot.slane %v3816, 1
  %v3818 = vadd.f32 %v3816, %v3817
  %s3819 = vtos %v3818
  %s3820 = sadd.f32 %s1670, %s3819
  %v3821 = vsel %vm1576, 0.0, %v3734
  %v3822 = vsel %vm1577, 0.0, %v3735
  %v3823 = vadd.f32 %v3821, %v3822
  %v3824 = vmul.f32 %v3823, 0.25
  %v3825 = vmul.f32 %v3731, 0.5
  %v3826 = vadd.f32 %v3824, %v3825
  %3827 = vst.msk [vmem:[#allocation2] sm:$0xff] %vm1647, %v3826
  %v3828 = vld [vmem:[#allocation2] ss:$2 sm:$0xf]
  %v3830 = vsel %vm1647, %v3828, 0
  %3832 = vmatprep.subr.mxu0 0.0
  %3833 = vmatpush1.msra.mxu0 0.0
  %3834 = vmatprep.subr.mxu0 0.0
  %3835 = vmatpush1.msra.mxu0 0.0
  %3836 = vmatprep.subr.mxu0 0.0
  %3837 = vmatpush1.msra.mxu0 0.0
  %3838 = vmatprep.subr.mxu0 0.0
  %3839 = vmatpush1.msra.mxu0 0.0
  %3840 = vmatprep.subr.mxu0 0.0
  %3841 = vmatpush1.msra.mxu0 0.0
  %3842 = vmatprep.subr.mxu0 0.0
  %3843 = vmatpush1.msra.mxu0 0.0
  %3844 = vmatprep.subr.mxu0 0.0
  %3845 = vmatpush1.msra.mxu0 0.0
  %3846 = vmatprep.subr.mxu0 0.0
  %3847 = vmatpush1.msra.mxu0 0.0
  %3848 = vmatprep.subr.mxu0 0.0
  %3849 = vmatpush1.msra.mxu0 0.0
  %3850 = vmatprep.subr.mxu0 0.0
  %3851 = vmatpush1.msra.mxu0 0.0
  %3852 = vmatprep.subr.mxu0 0.0
  %3853 = vmatpush1.msra.mxu0 0.0
  %3854 = vmatprep.subr.mxu0 0.0
  %3855 = vmatpush1.msra.mxu0 0.0
  %3856 = vmatprep.subr.mxu0 0.0
  %3857 = vmatpush1.msra.mxu0 0.0
  %3858 = vmatprep.subr.mxu0 0.0
  %3859 = vmatpush1.msra.mxu0 0.0
  %3860 = vmatprep.subr.mxu0 0.0
  %3861 = vmatpush1.msra.mxu0 0.0
  %3862 = vmatprep.subr.mxu0 0.0
  %v3863 = vand.u32 %v1684, 4294901760
  %3864 = vmatpush1.msra.mxu0 %v3863
  %3865 = vmatprep.subr.mxu0 0.0
  %3866 = vmatpush2.msra.mxu0 0.0
  %3867 = vmatprep.subr.mxu0 0.0
  %3868 = vmatpush2.msra.mxu0 0.0
  %3869 = vmatprep.subr.mxu0 0.0
  %3870 = vmatpush2.msra.mxu0 0.0
  %3871 = vmatprep.subr.mxu0 0.0
  %3872 = vmatpush2.msra.mxu0 0.0
  %3873 = vmatprep.subr.mxu0 0.0
  %3874 = vmatpush2.msra.mxu0 0.0
  %3875 = vmatprep.subr.mxu0 0.0
  %3876 = vmatpush2.msra.mxu0 0.0
  %3877 = vmatprep.subr.mxu0 0.0
  %3878 = vmatpush2.msra.mxu0 0.0
  %3879 = vmatprep.subr.mxu0 0.0
  %3880 = vmatpush2.msra.mxu0 0.0
  %3881 = vmatprep.subr.mxu0 0.0
  %3882 = vmatpush2.msra.mxu0 0.0
  %3883 = vmatprep.subr.mxu0 0.0
  %3884 = vmatpush2.msra.mxu0 0.0
  %3885 = vmatprep.subr.mxu0 0.0
  %3886 = vmatpush2.msra.mxu0 0.0
  %3887 = vmatprep.subr.mxu0 0.0
  %3888 = vmatpush2.msra.mxu0 0.0
  %3889 = vmatprep.subr.mxu0 0.0
  %3890 = vmatpush2.msra.mxu0 0.0
  %3891 = vmatprep.subr.mxu0 0.0
  %3892 = vmatpush2.msra.mxu0 0.0
  %3893 = vmatprep.subr.mxu0 0.0
  %3894 = vmatpush2.msra.mxu0 0.0
  %3895 = vmatprep.subr.mxu0 0.0
  %3896 = vmatpush2.msra.mxu0 0.0
  %3897 = vmatprep.mubr.f32.mxu0 0.0
  %v3898 = vand.u32 %v3830, 4294901760
  %v3899 = vsub.f32 %v3830, %v3898
  %v3900 = vand.u32 %v3899, 4294901760
  %v3901 = vsub.f32 %v3899, %v3900
  %v3902 = vand.u32 %v3901, 4294901760
  %3903 = vmatmul.mubr.f32.gmra.mxu0 %v3902
  %v3904 = vpop.f32.mrf.mxu0
  %v3905 = vadd.f32 0.0, %v3904
  %v3906 = vpop.f32.mrf.mxu0
  %3907 = vdwg.mxu0
  %3908 = vmatprep.subr.mxu0 0.0
  %3909 = vmatpush1.msra.mxu0 0.0
  %3910 = vmatprep.subr.mxu0 0.0
  %3911 = vmatpush1.msra.mxu0 0.0
  %3912 = vmatprep.subr.mxu0 0.0
  %3913 = vmatpush1.msra.mxu0 0.0
  %3914 = vmatprep.subr.mxu0 0.0
  %3915 = vmatpush1.msra.mxu0 0.0
  %3916 = vmatprep.subr.mxu0 0.0
  %3917 = vmatpush1.msra.mxu0 0.0
  %3918 = vmatprep.subr.mxu0 0.0
  %3919 = vmatpush1.msra.mxu0 0.0
  %3920 = vmatprep.subr.mxu0 0.0
  %3921 = vmatpush1.msra.mxu0 0.0
  %3922 = vmatprep.subr.mxu0 0.0
  %3923 = vmatpush1.msra.mxu0 0.0
  %3924 = vmatprep.subr.mxu0 0.0
  %3925 = vmatpush1.msra.mxu0 0.0
  %3926 = vmatprep.subr.mxu0 0.0
  %3927 = vmatpush1.msra.mxu0 0.0
  %3928 = vmatprep.subr.mxu0 0.0
  %3929 = vmatpush1.msra.mxu0 0.0
  %3930 = vmatprep.subr.mxu0 0.0
  %3931 = vmatpush1.msra.mxu0 0.0
  %3932 = vmatprep.subr.mxu0 0.0
  %3933 = vmatpush1.msra.mxu0 0.0
  %3934 = vmatprep.subr.mxu0 0.0
  %3935 = vmatpush1.msra.mxu0 0.0
  %3936 = vmatprep.subr.mxu0 0.0
  %3937 = vmatpush1.msra.mxu0 0.0
  %3938 = vmatprep.subr.mxu0 0.0
  %v3939 = vand.u32 %v1684, 4294901760
  %v3940 = vsub.f32 %v1684, %v3939
  %v3941 = vand.u32 %v3940, 4294901760
  %v3942 = vsub.f32 %v3940, %v3941
  %v3943 = vand.u32 %v3942, 4294901760
  %3944 = vmatpush1.msra.mxu0 %v3943
  %3945 = vmatprep.subr.mxu0 0.0
  %3946 = vmatpush2.msra.mxu0 0.0
  %3947 = vmatprep.subr.mxu0 0.0
  %3948 = vmatpush2.msra.mxu0 0.0
  %3949 = vmatprep.subr.mxu0 0.0
  %3950 = vmatpush2.msra.mxu0 0.0
  %3951 = vmatprep.subr.mxu0 0.0
  %3952 = vmatpush2.msra.mxu0 0.0
  %3953 = vmatprep.subr.mxu0 0.0
  %3954 = vmatpush2.msra.mxu0 0.0
  %3955 = vmatprep.subr.mxu0 0.0
  %3956 = vmatpush2.msra.mxu0 0.0
  %3957 = vmatprep.subr.mxu0 0.0
  %3958 = vmatpush2.msra.mxu0 0.0
  %3959 = vmatprep.subr.mxu0 0.0
  %3960 = vmatpush2.msra.mxu0 0.0
  %3961 = vmatprep.subr.mxu0 0.0
  %3962 = vmatpush2.msra.mxu0 0.0
  %3963 = vmatprep.subr.mxu0 0.0
  %3964 = vmatpush2.msra.mxu0 0.0
  %3965 = vmatprep.subr.mxu0 0.0
  %3966 = vmatpush2.msra.mxu0 0.0
  %3967 = vmatprep.subr.mxu0 0.0
  %3968 = vmatpush2.msra.mxu0 0.0
  %3969 = vmatprep.subr.mxu0 0.0
  %3970 = vmatpush2.msra.mxu0 0.0
  %3971 = vmatprep.subr.mxu0 0.0
  %3972 = vmatpush2.msra.mxu0 0.0
  %3973 = vmatprep.subr.mxu0 0.0
  %3974 = vmatpush2.msra.mxu0 0.0
  %3975 = vmatprep.subr.mxu0 0.0
  %3976 = vmatpush2.msra.mxu0 0.0
  %3977 = vmatprep.mubr.f32.mxu0 0.0
  %v3978 = vand.u32 %v3830, 4294901760
  %3979 = vmatmul.mubr.f32.gmra.mxu0 %v3978
  %v3980 = vpop.f32.mrf.mxu0
  %v3981 = vadd.f32 %v3905, %v3980
  %v3982 = vpop.f32.mrf.mxu0
  %3983 = vdwg.mxu0
  %3984 = vmatprep.subr.mxu0 0.0
  %3985 = vmatpush1.msra.mxu0 0.0
  %3986 = vmatprep.subr.mxu0 0.0
  %3987 = vmatpush1.msra.mxu0 0.0
  %3988 = vmatprep.subr.mxu0 0.0
  %3989 = vmatpush1.msra.mxu0 0.0
  %3990 = vmatprep.subr.mxu0 0.0
  %3991 = vmatpush1.msra.mxu0 0.0
  %3992 = vmatprep.subr.mxu0 0.0
  %3993 = vmatpush1.msra.mxu0 0.0
  %3994 = vmatprep.subr.mxu0 0.0
  %3995 = vmatpush1.msra.mxu0 0.0
  %3996 = vmatprep.subr.mxu0 0.0
  %3997 = vmatpush1.msra.mxu0 0.0
  %3998 = vmatprep.subr.mxu0 0.0
  %3999 = vmatpush1.msra.mxu0 0.0
  %4000 = vmatprep.subr.mxu0 0.0
  %4001 = vmatpush1.msra.mxu0 0.0
  %4002 = vmatprep.subr.mxu0 0.0
  %4003 = vmatpush1.msra.mxu0 0.0
  %4004 = vmatprep.subr.mxu0 0.0
  %4005 = vmatpush1.msra.mxu0 0.0
  %4006 = vmatprep.subr.mxu0 0.0
  %4007 = vmatpush1.msra.mxu0 0.0
  %4008 = vmatprep.subr.mxu0 0.0
  %4009 = vmatpush1.msra.mxu0 0.0
  %4010 = vmatprep.subr.mxu0 0.0
  %4011 = vmatpush1.msra.mxu0 0.0
  %4012 = vmatprep.subr.mxu0 0.0
  %4013 = vmatpush1.msra.mxu0 0.0
  %4014 = vmatprep.subr.mxu0 0.0
  %v4015 = vand.u32 %v1684, 4294901760
  %v4016 = vsub.f32 %v1684, %v4015
  %4017 = vmatpush1.msra.mxu0 %v4016
  %4018 = vmatprep.subr.mxu0 0.0
  %4019 = vmatpush2.msra.mxu0 0.0
  %4020 = vmatprep.subr.mxu0 0.0
  %4021 = vmatpush2.msra.mxu0 0.0
  %4022 = vmatprep.subr.mxu0 0.0
  %4023 = vmatpush2.msra.mxu0 0.0
  %4024 = vmatprep.subr.mxu0 0.0
  %4025 = vmatpush2.msra.mxu0 0.0
  %4026 = vmatprep.subr.mxu0 0.0
  %4027 = vmatpush2.msra.mxu0 0.0
  %4028 = vmatprep.subr.mxu0 0.0
  %4029 = vmatpush2.msra.mxu0 0.0
  %4030 = vmatprep.subr.mxu0 0.0
  %4031 = vmatpush2.msra.mxu0 0.0
  %4032 = vmatprep.subr.mxu0 0.0
  %4033 = vmatpush2.msra.mxu0 0.0
  %4034 = vmatprep.subr.mxu0 0.0
  %4035 = vmatpush2.msra.mxu0 0.0
  %4036 = vmatprep.subr.mxu0 0.0
  %4037 = vmatpush2.msra.mxu0 0.0
  %4038 = vmatprep.subr.mxu0 0.0
  %4039 = vmatpush2.msra.mxu0 0.0
  %4040 = vmatprep.subr.mxu0 0.0
  %4041 = vmatpush2.msra.mxu0 0.0
  %4042 = vmatprep.subr.mxu0 0.0
  %4043 = vmatpush2.msra.mxu0 0.0
  %4044 = vmatprep.subr.mxu0 0.0
  %4045 = vmatpush2.msra.mxu0 0.0
  %4046 = vmatprep.subr.mxu0 0.0
  %4047 = vmatpush2.msra.mxu0 0.0
  %4048 = vmatprep.subr.mxu0 0.0
  %4049 = vmatpush2.msra.mxu0 0.0
  %4050 = vmatprep.mubr.f32.mxu0 0.0
  %v4051 = vand.u32 %v3830, 4294901760
  %v4052 = vsub.f32 %v3830, %v4051
  %4053 = vmatmul.mubr.f32.gmra.mxu0 %v4052
  %v4054 = vpop.f32.mrf.mxu0
  %v4055 = vadd.f32 %v3981, %v4054
  %v4056 = vpop.f32.mrf.mxu0
  %4057 = vdwg.mxu0
  %4058 = vmatprep.subr.mxu0 0.0
  %4059 = vmatpush1.msra.mxu0 0.0
  %4060 = vmatprep.subr.mxu0 0.0
  %4061 = vmatpush1.msra.mxu0 0.0
  %4062 = vmatprep.subr.mxu0 0.0
  %4063 = vmatpush1.msra.mxu0 0.0
  %4064 = vmatprep.subr.mxu0 0.0
  %4065 = vmatpush1.msra.mxu0 0.0
  %4066 = vmatprep.subr.mxu0 0.0
  %4067 = vmatpush1.msra.mxu0 0.0
  %4068 = vmatprep.subr.mxu0 0.0
  %4069 = vmatpush1.msra.mxu0 0.0
  %4070 = vmatprep.subr.mxu0 0.0
  %4071 = vmatpush1.msra.mxu0 0.0
  %4072 = vmatprep.subr.mxu0 0.0
  %4073 = vmatpush1.msra.mxu0 0.0
  %4074 = vmatprep.subr.mxu0 0.0
  %4075 = vmatpush1.msra.mxu0 0.0
  %4076 = vmatprep.subr.mxu0 0.0
  %4077 = vmatpush1.msra.mxu0 0.0
  %4078 = vmatprep.subr.mxu0 0.0
  %4079 = vmatpush1.msra.mxu0 0.0
  %4080 = vmatprep.subr.mxu0 0.0
  %4081 = vmatpush1.msra.mxu0 0.0
  %4082 = vmatprep.subr.mxu0 0.0
  %4083 = vmatpush1.msra.mxu0 0.0
  %4084 = vmatprep.subr.mxu0 0.0
  %4085 = vmatpush1.msra.mxu0 0.0
  %4086 = vmatprep.subr.mxu0 0.0
  %4087 = vmatpush1.msra.mxu0 0.0
  %4088 = vmatprep.subr.mxu0 0.0
  %v4089 = vand.u32 %v1684, 4294901760
  %4090 = vmatpush1.msra.mxu0 %v4089
  %4091 = vmatprep.subr.mxu0 0.0
  %4092 = vmatpush2.msra.mxu0 0.0
  %4093 = vmatprep.subr.mxu0 0.0
  %4094 = vmatpush2.msra.mxu0 0.0
  %4095 = vmatprep.subr.mxu0 0.0
  %4096 = vmatpush2.msra.mxu0 0.0
  %4097 = vmatprep.subr.mxu0 0.0
  %4098 = vmatpush2.msra.mxu0 0.0
  %4099 = vmatprep.subr.mxu0 0.0
  %4100 = vmatpush2.msra.mxu0 0.0
  %4101 = vmatprep.subr.mxu0 0.0
  %4102 = vmatpush2.msra.mxu0 0.0
  %4103 = vmatprep.subr.mxu0 0.0
  %4104 = vmatpush2.msra.mxu0 0.0
  %4105 = vmatprep.subr.mxu0 0.0
  %4106 = vmatpush2.msra.mxu0 0.0
  %4107 = vmatprep.subr.mxu0 0.0
  %4108 = vmatpush2.msra.mxu0 0.0
  %4109 = vmatprep.subr.mxu0 0.0
  %4110 = vmatpush2.msra.mxu0 0.0
  %4111 = vmatprep.subr.mxu0 0.0
  %4112 = vmatpush2.msra.mxu0 0.0
  %4113 = vmatprep.subr.mxu0 0.0
  %4114 = vmatpush2.msra.mxu0 0.0
  %4115 = vmatprep.subr.mxu0 0.0
  %4116 = vmatpush2.msra.mxu0 0.0
  %4117 = vmatprep.subr.mxu0 0.0
  %4118 = vmatpush2.msra.mxu0 0.0
  %4119 = vmatprep.subr.mxu0 0.0
  %4120 = vmatpush2.msra.mxu0 0.0
  %4121 = vmatprep.subr.mxu0 0.0
  %4122 = vmatpush2.msra.mxu0 0.0
  %4123 = vmatprep.mubr.f32.mxu0 0.0
  %v4124 = vand.u32 %v3830, 4294901760
  %v4125 = vsub.f32 %v3830, %v4124
  %v4126 = vand.u32 %v4125, 4294901760
  %4127 = vmatmul.mubr.f32.gmra.mxu0 %v4126
  %v4128 = vpop.f32.mrf.mxu0
  %v4129 = vadd.f32 %v4055, %v4128
  %v4130 = vpop.f32.mrf.mxu0
  %4131 = vdwg.mxu0
  %4132 = vmatprep.subr.mxu0 0.0
  %4133 = vmatpush1.msra.mxu0 0.0
  %4134 = vmatprep.subr.mxu0 0.0
  %4135 = vmatpush1.msra.mxu0 0.0
  %4136 = vmatprep.subr.mxu0 0.0
  %4137 = vmatpush1.msra.mxu0 0.0
  %4138 = vmatprep.subr.mxu0 0.0
  %4139 = vmatpush1.msra.mxu0 0.0
  %4140 = vmatprep.subr.mxu0 0.0
  %4141 = vmatpush1.msra.mxu0 0.0
  %4142 = vmatprep.subr.mxu0 0.0
  %4143 = vmatpush1.msra.mxu0 0.0
  %4144 = vmatprep.subr.mxu0 0.0
  %4145 = vmatpush1.msra.mxu0 0.0
  %4146 = vmatprep.subr.mxu0 0.0
  %4147 = vmatpush1.msra.mxu0 0.0
  %4148 = vmatprep.subr.mxu0 0.0
  %4149 = vmatpush1.msra.mxu0 0.0
  %4150 = vmatprep.subr.mxu0 0.0
  %4151 = vmatpush1.msra.mxu0 0.0
  %4152 = vmatprep.subr.mxu0 0.0
  %4153 = vmatpush1.msra.mxu0 0.0
  %4154 = vmatprep.subr.mxu0 0.0
  %4155 = vmatpush1.msra.mxu0 0.0
  %4156 = vmatprep.subr.mxu0 0.0
  %4157 = vmatpush1.msra.mxu0 0.0
  %4158 = vmatprep.subr.mxu0 0.0
  %4159 = vmatpush1.msra.mxu0 0.0
  %4160 = vmatprep.subr.mxu0 0.0
  %4161 = vmatpush1.msra.mxu0 0.0
  %4162 = vmatprep.subr.mxu0 0.0
  %v4163 = vand.u32 %v1684, 4294901760
  %v4164 = vsub.f32 %v1684, %v4163
  %v4165 = vand.u32 %v4164, 4294901760
  %4166 = vmatpush1.msra.mxu0 %v4165
  %4167 = vmatprep.subr.mxu0 0.0
  %4168 = vmatpush2.msra.mxu0 0.0
  %4169 = vmatprep.subr.mxu0 0.0
  %4170 = vmatpush2.msra.mxu0 0.0
  %4171 = vmatprep.subr.mxu0 0.0
  %4172 = vmatpush2.msra.mxu0 0.0
  %4173 = vmatprep.subr.mxu0 0.0
  %4174 = vmatpush2.msra.mxu0 0.0
  %4175 = vmatprep.subr.mxu0 0.0
  %4176 = vmatpush2.msra.mxu0 0.0
  %4177 = vmatprep.subr.mxu0 0.0
  %4178 = vmatpush2.msra.mxu0 0.0
  %4179 = vmatprep.subr.mxu0 0.0
  %4180 = vmatpush2.msra.mxu0 0.0
  %4181 = vmatprep.subr.mxu0 0.0
  %4182 = vmatpush2.msra.mxu0 0.0
  %4183 = vmatprep.subr.mxu0 0.0
  %4184 = vmatpush2.msra.mxu0 0.0
  %4185 = vmatprep.subr.mxu0 0.0
  %4186 = vmatpush2.msra.mxu0 0.0
  %4187 = vmatprep.subr.mxu0 0.0
  %4188 = vmatpush2.msra.mxu0 0.0
  %4189 = vmatprep.subr.mxu0 0.0
  %4190 = vmatpush2.msra.mxu0 0.0
  %4191 = vmatprep.subr.mxu0 0.0
  %4192 = vmatpush2.msra.mxu0 0.0
  %4193 = vmatprep.subr.mxu0 0.0
  %4194 = vmatpush2.msra.mxu0 0.0
  %4195 = vmatprep.subr.mxu0 0.0
  %4196 = vmatpush2.msra.mxu0 0.0
  %4197 = vmatprep.subr.mxu0 0.0
  %4198 = vmatpush2.msra.mxu0 0.0
  %4199 = vmatprep.mubr.f32.mxu0 0.0
  %v4200 = vand.u32 %v3830, 4294901760
  %4201 = vmatmul.mubr.f32.gmra.mxu0 %v4200
  %v4202 = vpop.f32.mrf.mxu0
  %v4203 = vadd.f32 %v4129, %v4202
  %v4204 = vpop.f32.mrf.mxu0
  %4205 = vdwg.mxu0
  %4206 = vmatprep.subr.mxu0 0.0
  %4207 = vmatpush1.msra.mxu0 0.0
  %4208 = vmatprep.subr.mxu0 0.0
  %4209 = vmatpush1.msra.mxu0 0.0
  %4210 = vmatprep.subr.mxu0 0.0
  %4211 = vmatpush1.msra.mxu0 0.0
  %4212 = vmatprep.subr.mxu0 0.0
  %4213 = vmatpush1.msra.mxu0 0.0
  %4214 = vmatprep.subr.mxu0 0.0
  %4215 = vmatpush1.msra.mxu0 0.0
  %4216 = vmatprep.subr.mxu0 0.0
  %4217 = vmatpush1.msra.mxu0 0.0
  %4218 = vmatprep.subr.mxu0 0.0
  %4219 = vmatpush1.msra.mxu0 0.0
  %4220 = vmatprep.subr.mxu0 0.0
  %4221 = vmatpush1.msra.mxu0 0.0
  %4222 = vmatprep.subr.mxu0 0.0
  %4223 = vmatpush1.msra.mxu0 0.0
  %4224 = vmatprep.subr.mxu0 0.0
  %4225 = vmatpush1.msra.mxu0 0.0
  %4226 = vmatprep.subr.mxu0 0.0
  %4227 = vmatpush1.msra.mxu0 0.0
  %4228 = vmatprep.subr.mxu0 0.0
  %4229 = vmatpush1.msra.mxu0 0.0
  %4230 = vmatprep.subr.mxu0 0.0
  %4231 = vmatpush1.msra.mxu0 0.0
  %4232 = vmatprep.subr.mxu0 0.0
  %4233 = vmatpush1.msra.mxu0 0.0
  %4234 = vmatprep.subr.mxu0 0.0
  %4235 = vmatpush1.msra.mxu0 0.0
  %4236 = vmatprep.subr.mxu0 0.0
  %v4237 = vand.u32 %v1684, 4294901760
  %4238 = vmatpush1.msra.mxu0 %v4237
  %4239 = vmatprep.subr.mxu0 0.0
  %4240 = vmatpush2.msra.mxu0 0.0
  %4241 = vmatprep.subr.mxu0 0.0
  %4242 = vmatpush2.msra.mxu0 0.0
  %4243 = vmatprep.subr.mxu0 0.0
  %4244 = vmatpush2.msra.mxu0 0.0
  %4245 = vmatprep.subr.mxu0 0.0
  %4246 = vmatpush2.msra.mxu0 0.0
  %4247 = vmatprep.subr.mxu0 0.0
  %4248 = vmatpush2.msra.mxu0 0.0
  %4249 = vmatprep.subr.mxu0 0.0
  %4250 = vmatpush2.msra.mxu0 0.0
  %4251 = vmatprep.subr.mxu0 0.0
  %4252 = vmatpush2.msra.mxu0 0.0
  %4253 = vmatprep.subr.mxu0 0.0
  %4254 = vmatpush2.msra.mxu0 0.0
  %4255 = vmatprep.subr.mxu0 0.0
  %4256 = vmatpush2.msra.mxu0 0.0
  %4257 = vmatprep.subr.mxu0 0.0
  %4258 = vmatpush2.msra.mxu0 0.0
  %4259 = vmatprep.subr.mxu0 0.0
  %4260 = vmatpush2.msra.mxu0 0.0
  %4261 = vmatprep.subr.mxu0 0.0
  %4262 = vmatpush2.msra.mxu0 0.0
  %4263 = vmatprep.subr.mxu0 0.0
  %4264 = vmatpush2.msra.mxu0 0.0
  %4265 = vmatprep.subr.mxu0 0.0
  %4266 = vmatpush2.msra.mxu0 0.0
  %4267 = vmatprep.subr.mxu0 0.0
  %4268 = vmatpush2.msra.mxu0 0.0
  %4269 = vmatprep.subr.mxu0 0.0
  %4270 = vmatpush2.msra.mxu0 0.0
  %4271 = vmatprep.mubr.f32.mxu0 0.0
  %v4272 = vand.u32 %v3830, 4294901760
  %4273 = vmatmul.mubr.f32.gmra.mxu0 %v4272
  %v4274 = vpop.f32.mrf.mxu0
  %v4275 = vadd.f32 %v4203, %v4274
  %v4276 = vpop.f32.mrf.mxu0
  %4277 = vdwg.mxu0
  %v4278 = vrot.slane %v4275, 4
  %v4279 = vsel %vm2137, %v4278, %v4275
  %v4280 = vrot.slane %v4279, 4
  %v4281 = vsel %vm2137, %v4280, %v4275
  %4282 = vrot.lane.b32.xlu0 %v4275, 2
  %v4283 = vpop.permute.xlu0 %4282
  %v4284 = vsel %vm2142, %v4283, %v4275
  %4285 = vrot.lane.b32.xlu0 %v4284, 2
  %v4286 = vpop.permute.xlu0 %4285
  %v4287 = vsel %vm2142, %v4286, %v4275
  %v4289 = vrot.slane %v4281, 3
  %v4291 = vsel %vm2134, %v4275, %v4289
  %v4292 = vrot.slane %v4281, 1
  %v4294 = vsel %vm2135, %v4275, %v4292
  %4296 = vrot.lane.b32.xlu0 %v4287, 127
  %v4297 = vpop.permute.xlu0 %4296
  %v4299 = vsel %vm43, %v4275, %v4297
  %v4300 = vsel %vm2136, %v4275, %v4297
  %v4301 = vmul.f32 %v4275, 2.0
  %v4302 = vadd.f32 %v4291, %v4301
  %v4303 = vadd.f32 %v4302, %v4294
  %v4304 = vadd.f32 %v4299, %v4301
  %v4305 = vadd.f32 %v4304, %v4300
  %4306 = vrot.lane.b32.xlu0 %v4303, 2
  %v4307 = vpop.permute.xlu0 %4306
  %v4308 = vsel %vm2142, %v4307, %v4303
  %4309 = vrot.lane.b32.xlu0 %v4308, 2
  %v4310 = vpop.permute.xlu0 %4309
  %v4311 = vsel %vm2142, %v4310, %v4303
  %4313 = vrot.lane.b32.xlu0 %v4311, 127
  %v4314 = vpop.permute.xlu0 %4313
  %v4316 = vsel %vm2136, %v4303, %v4314
  %v4317 = vsel %vm43, %v4303, %v4314
  %v4318 = vsub.f32 %v4316, %v4317
  %v4319 = vmul.f32 %v4318, 0.125
  %v4320 = vrot.slane %v4305, 4
  %v4321 = vsel %vm2137, %v4320, %v4305
  %v4322 = vrot.slane %v4321, 4
  %v4323 = vsel %vm2137, %v4322, %v4305
  %v4325 = vrot.slane %v4323, 1
  %v4327 = vsel %vm2135, %v4305, %v4325
  %v4328 = vrot.slane %v4323, 3
  %v4330 = vsel %vm2134, %v4305, %v4328
  %v4331 = vsub.f32 %v4327, %v4330
  %v4332 = vmul.f32 %v4331, 0.125
  %v4333 = vrot.slane %v4319, 4
  %v4334 = vsel %vm2137, %v4333, %v4319
  %v4335 = vrot.slane %v4334, 4
  %v4336 = vsel %vm2137, %v4335, %v4319
  %v4337 = vrot.slane %v4332, 4
  %v4338 = vsel %vm2137, %v4337, %v4332
  %v4339 = vrot.slane %v4338, 4
  %v4340 = vsel %vm2137, %v4339, %v4332
  %v4342 = vrot.slane %v4336, 2
  %v4344 = vsub.f32 %v4319, %v4342
  %v4345 = vand.u32 2147483647, %v4344
  %v4347 = vrot.slane %v4340, 2
  %v4349 = vsub.f32 %v4332, %v4347
  %v4350 = vand.u32 2147483647, %v4349
  %vm4351 = vcmp.ne.f32.partialorder %v4336, 0.0
  %vm4352 = vcmp.ne.f32.partialorder %v4340, 0.0
  %v4353 = vsel %vm4351, 1, 0
  %v4354 = vcvt.s32.f32 %v4353
  %v4355 = vmul.f32 %v4354, %v2220
  %v4356 = vsel %vm4352, 1, 0
  %v4357 = vcvt.s32.f32 %v4356
  %v4358 = vmul.f32 %v4357, %v2220
  %v4360 = vrot.slane %v4345, 6
  %v4362 = vmul.f32 %v4355, %v4360
  %v4364 = vrot.slane %v4350, 6
  %v4366 = vmul.f32 %v4358, %v4364
  %v4367 = vadd.f32 %v4362, %v4366
  %v4369 = vrot.slane %v4367, 2
  %v4371 = vsel %vm2238, %v4369, 0.0
  %4372 = vadd.xlane.f32.xlu0 %v4371
  %v4373 = vpop.xlane.xlu0 %4372
  %v4374 = vrot.slane %v4373, 4
  %v4375 = vadd.f32 %v4373, %v4374
  %v4376 = vrot.slane %v4375, 2
  %v4377 = vadd.f32 %v4375, %v4376
  %v4378 = vrot.slane %v4377, 1
  %v4379 = vadd.f32 %v4377, %v4378
  %s4380 = vtos %v4379
  %s4381 = sadd.f32 %s2249, %s4380
  %v4382 = vadd.f32 %v4355, %v4358
  %v4384 = vrot.slane %v4382, 2
  %v4386 = vsel %vm2238, %v4384, 0.0
  %4387 = vadd.xlane.f32.xlu0 %v4386
  %v4388 = vpop.xlane.xlu0 %4387
  %v4389 = vrot.slane %v4388, 4
  %v4390 = vadd.f32 %v4388, %v4389
  %v4391 = vrot.slane %v4390, 2
  %v4392 = vadd.f32 %v4390, %v4391
  %v4393 = vrot.slane %v4392, 1
  %v4394 = vadd.f32 %v4392, %v4393
  %s4395 = vtos %v4394
  %s4396 = sadd.f32 %s2264, %s4395
  %v4397 = vstv %s2550
  %v4398 = vsel %vm19, %v4397, 0.0
  %v4399 = vadd.f32 %v4398, 0.0
  %v4400 = vstv %s2571
  %v4401 = vsel %vm1575, %v4400, 0.0
  %v4402 = vadd.f32 %v4399, %v4401
  %v4403 = vstv %s3254
  %v4404 = vsel %vm2132, %v4403, 0.0
  %v4405 = vadd.f32 %v4402, %v4404
  %vm4406 = vcmp.eq.s32.totalorder %v13, 5
  %v4407 = vstv %s3269
  %v4408 = vsel %vm4406, %v4407, 0.0
  %v4409 = vadd.f32 %v4405, %v4408
  %v4410 = vstv %s3808
  %v4411 = vsel %vm2133, %v4410, 0.0
  %v4412 = vadd.f32 %v4409, %v4411
  %vm4413 = vcmp.eq.s32.totalorder %v13, 6
  %v4414 = vstv %s3820
  %v4415 = vsel %vm4413, %v4414, 0.0
  %v4416 = vadd.f32 %v4412, %v4415
  %v4417 = vstv %s4381
  %v4418 = vsel %vm1574, %v4417, 0.0
  %v4419 = vadd.f32 %v4416, %v4418
  %v4420 = vstv %s4396
  %v4421 = vsel %vm933, %v4420, 0.0
  %v4422 = vadd.f32 %v4419, %v4421
  %4423 = vst [vmem:[%s1] sm:$0xff] %v4422
  // Predicated region
  $region6: #{ms_gradient_loss.1} parent=0 // pred_check
    _
  $region7: #{ms_gradient_loss.1} parent=0 // pred_check_branch
    %4425 = sbr.rel (0) target = $region9
  $region8: #{ms_gradient_loss.1} parent=0 // pred_region
    _
  $region9: #{ms_gradient_loss.1} parent=0 // pred_fallthru
    _
  // Predicated region
  $region10: #{ms_gradient_loss.1} parent=0 // pred_check
    _
  $region11: #{ms_gradient_loss.1} parent=0 // pred_check_branch
    %4427 = sbr.rel (0) target = $region13
  $region12: #{ms_gradient_loss.1} parent=0 // pred_region
    _
  $region13: #{ms_gradient_loss.1} parent=0 // pred_fallthru
    _

</llo_original>
